<compile_context>
chip_gen: v6e
topology: v6e:2x2x1
jax: 0.10.0
libtpu: 0.0.40
codegen_flags: <defaults>
</compile_context>

<pallas_src>
import functools

import jax
import jax.numpy as jnp
import numpy as np
from jax import lax
from jax.experimental import pallas as pl
from jax.experimental.pallas import tpu as pltpu


# ------------------------------ BN folding --------------------------------- #

def _fold_1x1(w_oihw, bn):
    """Fold BN scale into 1x1 conv weight -> (Cin, Cout) bf16, bias f32."""
    scale, shift = bn
    w = w_oihw[:, :, 0, 0].T * scale[None, :]
    return w.astype(jnp.bfloat16), shift.astype(jnp.float32)


def _fold_3x3(w_oihw, bn):
    """Fold BN scale into 3x3 conv weight -> (3,3,Cin,Cout) bf16, bias f32."""
    scale, shift = bn
    w = jnp.transpose(w_oihw, (2, 3, 1, 0)) * scale[None, None, None, :]
    return w.astype(jnp.bfloat16), shift.astype(jnp.float32)


# ----------------------------- fused kernel -------------------------------- #

def _bottleneck_kernel(*refs, H, W, stride, has_proj):
    """Whole Bottleneck block for one image; only x is read and out is written
    to HBM. All intermediates (h1, padded h1, im2col, h2) stay in VMEM."""
    if stride != 1:
        (x_ref, xs_ref, w1_ref, b1_ref, w2_ref, b2_ref, w3_ref, b3_ref,
         ws_ref, bs_ref, o_ref, hp_ref, col_ref) = refs
    elif has_proj:
        (x_ref, w1_ref, b1_ref, w2_ref, b2_ref, w3_ref, b3_ref,
         ws_ref, bs_ref, o_ref, hp_ref, col_ref) = refs
        xs_ref = None
    else:
        (x_ref, w1_ref, b1_ref, w2_ref, b2_ref, w3_ref, b3_ref,
         o_ref, hp_ref, col_ref) = refs
        xs_ref = ws_ref = bs_ref = None

    Cin = x_ref.shape[-1]
    C1 = w1_ref.shape[1]
    C4 = w3_ref.shape[1]
    Ho = (H - 1) // stride + 1
    Wo = (W - 1) // stride + 1

    # ---- conv1 (1x1) + bn1 + relu ; h1 never touches HBM -------------------
    x2d = x_ref[...].reshape(H * W, Cin)
    h1 = jnp.dot(x2d, w1_ref[...], preferred_element_type=jnp.float32) + b1_ref[...]
    h1 = jnp.maximum(h1, 0.0).astype(jnp.bfloat16)

    # ---- zero-pad h1 into VMEM scratch (padding=1 of conv2, in-kernel) -----
    hp_ref[...] = jnp.zeros(hp_ref.shape, jnp.bfloat16)
    hp_ref[pl.ds(1, H), pl.ds(1, W), :] = h1.reshape(H, W, C1)

    # ---- in-VMEM im2col (Ho*Wo, 9*C1): one big-K matmul for the 3x3 conv ---
    for dy in range(3):
        for dx in range(3):
            t = dy * 3 + dx
            if stride == 1:
                patch = hp_ref[pl.ds(dy, H), pl.ds(dx, W), :]
            else:
                # contiguous over-read, then subsample rows / cols by reshape:
                blk = hp_ref[pl.ds(dy, stride * Ho), pl.ds(dx, stride * Wo), :]
                blk = blk.reshape(Ho, stride, stride * Wo, C1)[:, 0:1]
                blk = blk.reshape(Ho, stride * Wo, C1)
                patch = blk.reshape(Ho, Wo, stride * C1)[:, :, :C1]
            col_ref[:, pl.ds(t * C1, C1)] = patch.reshape(Ho * Wo, C1)

    # ---- conv2 (3x3) + bn2 + relu : K = 9*C1 MXU matmul --------------------
    h2 = jnp.dot(col_ref[...], w2_ref[...], preferred_element_type=jnp.float32)
    h2 = jnp.maximum(h2 + b2_ref[...], 0.0).astype(jnp.bfloat16)

    # ---- conv3 (1x1) + bn3 -------------------------------------------------
    y = jnp.dot(h2, w3_ref[...], preferred_element_type=jnp.float32) + b3_ref[...]

    # ---- shortcut (identity or fused 1x1 projection) + add + relu ----------
    if has_proj:
        src = x2d if stride == 1 else xs_ref[...].reshape(Ho * Wo, Cin)
        y = y + jnp.dot(src, ws_ref[...], preferred_element_type=jnp.float32)
        y = y + bs_ref[...]
    else:
        y = y + x2d.astype(jnp.float32)          # Cin == C4 (identity shortcut)

    o_ref[...] = jnp.maximum(y, 0.0).reshape(1, Ho, Wo, C4).astype(jnp.bfloat16)


# --------------------------- pallas_call wrapper ---------------------------- #

def bottleneck_forward_nhwc(x_nhwc, params, stride):
    """NHWC bf16 in -> NHWC bf16 out. Whole block = ONE pallas_call."""
    x = x_nhwc.astype(jnp.bfloat16)
    N, H, W, Cin = x.shape

    w1f, b1 = _fold_1x1(params["w1"], params["bn1"])
    w2f, b2 = _fold_3x3(params["w2"], params["bn2"])
    w3f, b3 = _fold_1x1(params["w3"], params["bn3"])
    C1 = w1f.shape[1]
    C2 = w2f.shape[-1]
    C4 = w3f.shape[1]
    w2r = w2f.reshape(9 * C1, C2)                 # tap-major / channel-minor

    Ho = (H - 1) // stride + 1
    Wo = (W - 1) // stride + 1
    has_proj = bool(params["has_shortcut"])
    if stride != 1:
        assert has_proj  # ResNet Bottleneck: stride != 1 always has projection

    args = [x]
    in_specs = [pl.BlockSpec((1, H, W, Cin), lambda n: (n, 0, 0, 0))]
    if stride != 1:
        # tiny subsampled x for the strided projection shortcut
        xs = x[:, ::stride, ::stride, :]
        args.append(xs)
        in_specs.append(pl.BlockSpec((1, Ho, Wo, Cin), lambda n: (n, 0, 0, 0)))

    args += [w1f, b1.reshape(1, -1), w2r, b2.reshape(1, -1), w3f, b3.reshape(1, -1)]
    in_specs += [
        pl.BlockSpec((Cin, C1), lambda n: (0, 0)),
        pl.BlockSpec((1, C1), lambda n: (0, 0)),
        pl.BlockSpec((9 * C1, C2), lambda n: (0, 0)),
        pl.BlockSpec((1, C2), lambda n: (0, 0)),
        pl.BlockSpec((C2, C4), lambda n: (0, 0)),
        pl.BlockSpec((1, C4), lambda n: (0, 0)),
    ]
    if has_proj:
        wsf, bs = _fold_1x1(params["ws"], params["bns"])
        args += [wsf, bs.reshape(1, -1)]
        in_specs += [
            pl.BlockSpec((Cin, C4), lambda n: (0, 0)),
            pl.BlockSpec((1, C4), lambda n: (0, 0)),
        ]

    # padded-h1 scratch sized so every tap's (possibly over-)read is in bounds
    Hs = max(H + 2, stride * Ho + 2)
    Ws = max(W + 2, stride * Wo + 2)

    grid_spec = pltpu.PrefetchScalarGridSpec(
        num_scalar_prefetch=0,
        grid=(N,),
        in_specs=in_specs,
        out_specs=pl.BlockSpec((1, Ho, Wo, C4), lambda n: (n, 0, 0, 0)),
        scratch_shapes=[
            pltpu.VMEM((Hs, Ws, C1), jnp.bfloat16),        # zero-padded h1
            pltpu.VMEM((Ho * Wo, 9 * C1), jnp.bfloat16),   # im2col for conv2
        ],
    )
    return pl.pallas_call(
        functools.partial(_bottleneck_kernel, H=H, W=W, stride=stride,
                          has_proj=has_proj),
        out_shape=jax.ShapeDtypeStruct((N, Ho, Wo, C4), jnp.bfloat16),
        grid_spec=grid_spec,
        compiler_params=pltpu.CompilerParams(
            dimension_semantics=("parallel",),
            vmem_limit_bytes=48 * 1024 * 1024,   # safe on v7x (64 MiB), raises v5e default
        ),
    )(*args)


def bottleneck_forward_pallas(x_nchw, params, stride):
    """Standalone PyTorch-module semantics: NCHW f32 in, NCHW f32 out.
    (When chaining blocks, call bottleneck_forward_nhwc directly and keep
    activations in NHWC bf16 to avoid per-block transposes.)"""
    x_nhwc = jnp.transpose(x_nchw, (0, 2, 3, 1))
    out = bottleneck_forward_nhwc(x_nhwc, params, stride)
    return jnp.transpose(out, (0, 3, 1, 2)).astype(jnp.float32)


# ------------------------------ params & ref -------------------------------- #

def init_bottleneck_params(key, in_planes, planes, stride):
    expansion = 4
    out_planes = expansion * planes
    keys = jax.random.split(key, 8)

    def conv_w(k, cout, cin, kh, kw):
        fan_in = cin * kh * kw
        return jax.random.normal(k, (cout, cin, kh, kw), jnp.float32) * (2.0 / fan_in) ** 0.5

    def bn(k, c):
        kg, kb, km, kv = jax.random.split(k, 4)
        gamma = jax.random.uniform(kg, (c,), jnp.float32, 0.5, 1.5)
        beta = 0.1 * jax.random.normal(kb, (c,), jnp.float32)
        mean = 0.1 * jax.random.normal(km, (c,), jnp.float32)
        var = jax.random.uniform(kv, (c,), jnp.float32, 0.5, 1.5)
        scale = gamma / jnp.sqrt(var + 1e-5)
        shift = beta - mean * scale
        return scale, shift

    params = {
        "w1": conv_w(keys[0], planes, in_planes, 1, 1),
        "bn1": bn(keys[1], planes),
        "w2": conv_w(keys[2], planes, planes, 3, 3),
        "bn2": bn(keys[3], planes),
        "w3": conv_w(keys[4], out_planes, planes, 1, 1),
        "bn3": bn(keys[5], out_planes),
        "has_shortcut": (stride != 1) or (in_planes != out_planes),
    }
    if params["has_shortcut"]:
        params["ws"] = conv_w(keys[6], out_planes, in_planes, 1, 1)
        params["bns"] = bn(keys[7], out_planes)
    return params


def bottleneck_forward_ref(x_nchw, params, stride):
    """Pure-JAX f32 reference (lax.conv), same NCHW in/out semantics."""
    x = jnp.transpose(x_nchw, (0, 2, 3, 1))
    dn = ("NHWC", "HWIO", "NHWC")

    def conv(h, w_oihw, s, pad):
        w = jnp.transpose(w_oihw, (2, 3, 1, 0))
        return lax.conv_general_dilated(h, w, (s, s), pad, dimension_numbers=dn)

    def bn(h, sb):
        return h * sb[0] + sb[1]

    h = jnp.maximum(bn(conv(x, params["w1"], 1, "VALID"), params["bn1"]), 0.0)
    h = jnp.maximum(bn(conv(h, params["w2"], stride, ((1, 1), (1, 1))), params["bn2"]), 0.0)
    h = bn(conv(h, params["w3"], 1, "VALID"), params["bn3"])
    if params["has_shortcut"]:
        sc = bn(conv(x, params["ws"], stride, "VALID"), params["bns"])
    else:
        sc = x
    out = jnp.maximum(h + sc, 0.0)
    return jnp.transpose(out, (0, 3, 1, 2))


if __name__ == "__main__":
    key = jax.random.PRNGKey(0)
    configs = [
        # (in_planes, planes, stride, N, H, W)
        (32, 32, 1, 2, 16, 16),    # projection shortcut, fused stride-1 path
        (128, 32, 1, 2, 8, 8),     # identity shortcut, fused stride-1 path
        (32, 32, 2, 2, 16, 16),    # stride 2: fused strided-tap path
    ]
    for in_planes, planes, stride, N, H, W in configs:
        key, kx, kp = jax.random.split(key, 3)
        x = jax.random.normal(kx, (N, in_planes, H, W), jnp.float32)   # PyTorch NCHW input
        params = init_bottleneck_params(kp, in_planes, planes, stride)

        out = jax.block_until_ready(bottleneck_forward_pallas(x, params, stride))
        ref = jax.block_until_ready(bottleneck_forward_ref(x, params, stride))

        Ho = (H - 1) // stride + 1
        Wo = (W - 1) // stride + 1
        assert out.shape == (N, 4 * planes, Ho, Wo)
        # bf16 operands / bf16 writeback (f32 MXU accumulation) vs f32 reference.
        np.testing.assert_allclose(np.asarray(out), np.asarray(ref), rtol=5e-2, atol=5e-2)
    print("KERNEL_OK")
</pallas_src>

<mosaic_0001>
module attributes {stable_mosaic.version = 11 : i64} {
  func.func @_bottleneck_kernel(%arg0: i32, %arg1: memref<1x16x16x32xbf16, #tpu.memory_space<vmem>>, %arg2: memref<32x32xbf16, #tpu.memory_space<vmem>>, %arg3: memref<1x32xf32, #tpu.memory_space<vmem>>, %arg4: memref<288x32xbf16, #tpu.memory_space<vmem>>, %arg5: memref<1x32xf32, #tpu.memory_space<vmem>>, %arg6: memref<32x128xbf16, #tpu.memory_space<vmem>>, %arg7: memref<1x128xf32, #tpu.memory_space<vmem>>, %arg8: memref<32x128xbf16, #tpu.memory_space<vmem>>, %arg9: memref<1x128xf32, #tpu.memory_space<vmem>>, %arg10: memref<1x16x16x128xbf16, #tpu.memory_space<vmem>>, %arg11: memref<18x18x32xbf16, #tpu.memory_space<vmem>>, %arg12: memref<256x288xbf16, #tpu.memory_space<vmem>>) attributes {dimension_semantics = [#tpu.dimension_semantics<parallel>], iteration_bounds = array<i64: 2>, scalar_prefetch = 0 : i64, scratch_operands = 2 : i64, tpu.core_type = #tpu.core_type<tc>, window_params = [{transform_indices = @transform_0, window_bounds = array<i64: 1, 16, 16, 32>}, {pipeline_mode = #tpu.pipeline_mode<synchronous>, transform_indices = @transform_1, window_bounds = array<i64: 32, 32>}, {pipeline_mode = #tpu.pipeline_mode<synchronous>, transform_indices = @transform_2, window_bounds = array<i64: 1, 32>}, {pipeline_mode = #tpu.pipeline_mode<synchronous>, transform_indices = @transform_3, window_bounds = array<i64: 288, 32>}, {pipeline_mode = #tpu.pipeline_mode<synchronous>, transform_indices = @transform_4, window_bounds = array<i64: 1, 32>}, {pipeline_mode = #tpu.pipeline_mode<synchronous>, transform_indices = @transform_5, window_bounds = array<i64: 32, 128>}, {pipeline_mode = #tpu.pipeline_mode<synchronous>, transform_indices = @transform_6, window_bounds = array<i64: 1, 128>}, {pipeline_mode = #tpu.pipeline_mode<synchronous>, transform_indices = @transform_7, window_bounds = array<i64: 32, 128>}, {pipeline_mode = #tpu.pipeline_mode<synchronous>, transform_indices = @transform_8, window_bounds = array<i64: 1, 128>}, {transform_indices = @transform_9, window_bounds = array<i64: 1, 16, 16, 128>}]} {
    %c0 = arith.constant 0 : index
    %c0_0 = arith.constant 0 : index
    %c0_1 = arith.constant 0 : index
    %c0_2 = arith.constant 0 : index
    %0 = vector.load %arg1[%c0, %c0_0, %c0_1, %c0_2] : memref<1x16x16x32xbf16, #tpu.memory_space<vmem>>, vector<1x16x16x32xbf16>
    %1 = vector.shape_cast %0 : vector<1x16x16x32xbf16> to vector<256x32xbf16>
    %c0_3 = arith.constant 0 : index
    %c0_4 = arith.constant 0 : index
    %2 = vector.load %arg2[%c0_3, %c0_4] : memref<32x32xbf16, #tpu.memory_space<vmem>>, vector<32x32xbf16>
    %cst = arith.constant dense<0.000000e+00> : vector<256x32xf32>
    %3 = tpu.matmul %1, %2, %cst {dimension_numbers = #tpu.dot_dimension_numbers<[1], [0], [0], [1], [0, 0, 1, 1], [], []>} : vector<256x32xbf16>, vector<32x32xbf16>, vector<256x32xf32> -> vector<256x32xf32>
    %c0_5 = arith.constant 0 : index
    %c0_6 = arith.constant 0 : index
    %4 = vector.load %arg3[%c0_5, %c0_6] : memref<1x32xf32, #tpu.memory_space<vmem>>, vector<1x32xf32>
    %5 = vector.broadcast %4 : vector<1x32xf32> to vector<256x32xf32>
    %6 = arith.addf %3, %5 : vector<256x32xf32>
    %cst_7 = arith.constant 0.000000e+00 : f32
    %7 = vector.broadcast %cst_7 : f32 to vector<256x32xf32>
    %8 = arith.maximumf %6, %7 : vector<256x32xf32>
    %9 = arith.truncf %8 : vector<256x32xf32> to vector<256x32xbf16>
    %cst_8 = arith.constant 0.000000e+00 : bf16
    %10 = vector.broadcast %cst_8 : bf16 to vector<18x18x32xbf16>
    %c0_9 = arith.constant 0 : index
    %c0_10 = arith.constant 0 : index
    %c0_11 = arith.constant 0 : index
    %11 = vector.load %arg11[%c0_9, %c0_10, %c0_11] : memref<18x18x32xbf16, #tpu.memory_space<vmem>>, vector<18x18x32xbf16>
    tpu.vector_store %arg11[%c0_9, %c0_10, %c0_11], %10 {strides = array<i32>} : memref<18x18x32xbf16, #tpu.memory_space<vmem>>, vector<18x18x32xbf16>,
    %12 = vector.shape_cast %9 : vector<256x32xbf16> to vector<16x16x32xbf16>
    %c1 = arith.constant 1 : index
    %c1_12 = arith.constant 1 : index
    %c0_13 = arith.constant 0 : index
    %13 = vector.load %arg11[%c1, %c1_12, %c0_13] : memref<18x18x32xbf16, #tpu.memory_space<vmem>>, vector<16x16x32xbf16>
    tpu.vector_store %arg11[%c1, %c1_12, %c0_13], %12 {strides = array<i32>} : memref<18x18x32xbf16, #tpu.memory_space<vmem>>, vector<16x16x32xbf16>,
    %c0_14 = arith.constant 0 : index
    %c0_15 = arith.constant 0 : index
    %c0_16 = arith.constant 0 : index
    %14 = vector.load %arg11[%c0_14, %c0_15, %c0_16] : memref<18x18x32xbf16, #tpu.memory_space<vmem>>, vector<16x16x32xbf16>
    %15 = vector.shape_cast %14 : vector<16x16x32xbf16> to vector<256x32xbf16>
    %c0_17 = arith.constant 0 : index
    %c0_18 = arith.constant 0 : index
    %16 = vector.load %arg12[%c0_17, %c0_18] : memref<256x288xbf16, #tpu.memory_space<vmem>>, vector<256x32xbf16>
    tpu.vector_store %arg12[%c0_17, %c0_18], %15 {strides = array<i32>} : memref<256x288xbf16, #tpu.memory_space<vmem>>, vector<256x32xbf16>,
    %c0_19 = arith.constant 0 : index
    %c1_20 = arith.constant 1 : index
    %c0_21 = arith.constant 0 : index
    %17 = vector.load %arg11[%c0_19, %c1_20, %c0_21] : memref<18x18x32xbf16, #tpu.memory_space<vmem>>, vector<16x16x32xbf16>
    %18 = vector.shape_cast %17 : vector<16x16x32xbf16> to vector<256x32xbf16>
    %c0_22 = arith.constant 0 : index
    %c32 = arith.constant 32 : index
    %19 = vector.load %arg12[%c0_22, %c32] : memref<256x288xbf16, #tpu.memory_space<vmem>>, vector<256x32xbf16>
    tpu.vector_store %arg12[%c0_22, %c32], %18 {strides = array<i32>} : memref<256x288xbf16, #tpu.memory_space<vmem>>, vector<256x32xbf16>,
    %c0_23 = arith.constant 0 : index
    %c2 = arith.constant 2 : index
    %c0_24 = arith.constant 0 : index
    %20 = vector.load %arg11[%c0_23, %c2, %c0_24] : memref<18x18x32xbf16, #tpu.memory_space<vmem>>, vector<16x16x32xbf16>
    %21 = vector.shape_cast %20 : vector<16x16x32xbf16> to vector<256x32xbf16>
    %c0_25 = arith.constant 0 : index
    %c64 = arith.constant 64 : index
    %22 = vector.load %arg12[%c0_25, %c64] : memref<256x288xbf16, #tpu.memory_space<vmem>>, vector<256x32xbf16>
    tpu.vector_store %arg12[%c0_25, %c64], %21 {strides = array<i32>} : memref<256x288xbf16, #tpu.memory_space<vmem>>, vector<256x32xbf16>,
    %c1_26 = arith.constant 1 : index
    %c0_27 = arith.constant 0 : index
    %c0_28 = arith.constant 0 : index
    %23 = vector.load %arg11[%c1_26, %c0_27, %c0_28] : memref<18x18x32xbf16, #tpu.memory_space<vmem>>, vector<16x16x32xbf16>
    %24 = vector.shape_cast %23 : vector<16x16x32xbf16> to vector<256x32xbf16>
    %c0_29 = arith.constant 0 : index
    %c96 = arith.constant 96 : index
    %25 = vector.load %arg12[%c0_29, %c96] : memref<256x288xbf16, #tpu.memory_space<vmem>>, vector<256x32xbf16>
    tpu.vector_store %arg12[%c0_29, %c96], %24 {strides = array<i32>} : memref<256x288xbf16, #tpu.memory_space<vmem>>, vector<256x32xbf16>,
    %c1_30 = arith.constant 1 : index
    %c1_31 = arith.constant 1 : index
    %c0_32 = arith.constant 0 : index
    %26 = vector.load %arg11[%c1_30, %c1_31, %c0_32] : memref<18x18x32xbf16, #tpu.memory_space<vmem>>, vector<16x16x32xbf16>
    %27 = vector.shape_cast %26 : vector<16x16x32xbf16> to vector<256x32xbf16>
    %c0_33 = arith.constant 0 : index
    %c128 = arith.constant 128 : index
    %28 = vector.load %arg12[%c0_33, %c128] : memref<256x288xbf16, #tpu.memory_space<vmem>>, vector<256x32xbf16>
    tpu.vector_store %arg12[%c0_33, %c128], %27 {strides = array<i32>} : memref<256x288xbf16, #tpu.memory_space<vmem>>, vector<256x32xbf16>,
    %c1_34 = arith.constant 1 : index
    %c2_35 = arith.constant 2 : index
    %c0_36 = arith.constant 0 : index
    %29 = vector.load %arg11[%c1_34, %c2_35, %c0_36] : memref<18x18x32xbf16, #tpu.memory_space<vmem>>, vector<16x16x32xbf16>
    %30 = vector.shape_cast %29 : vector<16x16x32xbf16> to vector<256x32xbf16>
    %c0_37 = arith.constant 0 : index
    %c160 = arith.constant 160 : index
    %31 = vector.load %arg12[%c0_37, %c160] : memref<256x288xbf16, #tpu.memory_space<vmem>>, vector<256x32xbf16>
    tpu.vector_store %arg12[%c0_37, %c160], %30 {strides = array<i32>} : memref<256x288xbf16, #tpu.memory_space<vmem>>, vector<256x32xbf16>,
    %c2_38 = arith.constant 2 : index
    %c0_39 = arith.constant 0 : index
    %c0_40 = arith.constant 0 : index
    %32 = vector.load %arg11[%c2_38, %c0_39, %c0_40] : memref<18x18x32xbf16, #tpu.memory_space<vmem>>, vector<16x16x32xbf16>
    %33 = vector.shape_cast %32 : vector<16x16x32xbf16> to vector<256x32xbf16>
    %c0_41 = arith.constant 0 : index
    %c192 = arith.constant 192 : index
    %34 = vector.load %arg12[%c0_41, %c192] : memref<256x288xbf16, #tpu.memory_space<vmem>>, vector<256x32xbf16>
    tpu.vector_store %arg12[%c0_41, %c192], %33 {strides = array<i32>} : memref<256x288xbf16, #tpu.memory_space<vmem>>, vector<256x32xbf16>,
    %c2_42 = arith.constant 2 : index
    %c1_43 = arith.constant 1 : index
    %c0_44 = arith.constant 0 : index
    %35 = vector.load %arg11[%c2_42, %c1_43, %c0_44] : memref<18x18x32xbf16, #tpu.memory_space<vmem>>, vector<16x16x32xbf16>
    %36 = vector.shape_cast %35 : vector<16x16x32xbf16> to vector<256x32xbf16>
    %c0_45 = arith.constant 0 : index
    %c224 = arith.constant 224 : index
    %37 = vector.load %arg12[%c0_45, %c224] : memref<256x288xbf16, #tpu.memory_space<vmem>>, vector<256x32xbf16>
    tpu.vector_store %arg12[%c0_45, %c224], %36 {strides = array<i32>} : memref<256x288xbf16, #tpu.memory_space<vmem>>, vector<256x32xbf16>,
    %c2_46 = arith.constant 2 : index
    %c2_47 = arith.constant 2 : index
    %c0_48 = arith.constant 0 : index
    %38 = vector.load %arg11[%c2_46, %c2_47, %c0_48] : memref<18x18x32xbf16, #tpu.memory_space<vmem>>, vector<16x16x32xbf16>
    %39 = vector.shape_cast %38 : vector<16x16x32xbf16> to vector<256x32xbf16>
    %c0_49 = arith.constant 0 : index
    %c256 = arith.constant 256 : index
    %40 = vector.load %arg12[%c0_49, %c256] : memref<256x288xbf16, #tpu.memory_space<vmem>>, vector<256x32xbf16>
    tpu.vector_store %arg12[%c0_49, %c256], %39 {strides = array<i32>} : memref<256x288xbf16, #tpu.memory_space<vmem>>, vector<256x32xbf16>,
    %c0_50 = arith.constant 0 : index
    %c0_51 = arith.constant 0 : index
    %41 = vector.load %arg12[%c0_50, %c0_51] : memref<256x288xbf16, #tpu.memory_space<vmem>>, vector<256x288xbf16>
    %c0_52 = arith.constant 0 : index
    %c0_53 = arith.constant 0 : index
    %42 = vector.load %arg4[%c0_52, %c0_53] : memref<288x32xbf16, #tpu.memory_space<vmem>>, vector<288x32xbf16>
    %cst_54 = arith.constant dense<0.000000e+00> : vector<256x32xf32>
    %43 = tpu.matmul %41, %42, %cst_54 {dimension_numbers = #tpu.dot_dimension_numbers<[1], [0], [0], [1], [0, 0, 1, 1], [], []>} : vector<256x288xbf16>, vector<288x32xbf16>, vector<256x32xf32> -> vector<256x32xf32>
    %c0_55 = arith.constant 0 : index
    %c0_56 = arith.constant 0 : index
    %44 = vector.load %arg5[%c0_55, %c0_56] : memref<1x32xf32, #tpu.memory_space<vmem>>, vector<1x32xf32>
    %45 = vector.broadcast %44 : vector<1x32xf32> to vector<256x32xf32>
    %46 = arith.addf %43, %45 : vector<256x32xf32>
    %cst_57 = arith.constant 0.000000e+00 : f32
    %47 = vector.broadcast %cst_57 : f32 to vector<256x32xf32>
    %48 = arith.maximumf %46, %47 : vector<256x32xf32>
    %49 = arith.truncf %48 : vector<256x32xf32> to vector<256x32xbf16>
    %c0_58 = arith.constant 0 : index
    %c0_59 = arith.constant 0 : index
    %50 = vector.load %arg6[%c0_58, %c0_59] : memref<32x128xbf16, #tpu.memory_space<vmem>>, vector<32x128xbf16>
    %cst_60 = arith.constant dense<0.000000e+00> : vector<256x128xf32>
    %51 = tpu.matmul %49, %50, %cst_60 {dimension_numbers = #tpu.dot_dimension_numbers<[1], [0], [0], [1], [0, 0, 1, 1], [], []>} : vector<256x32xbf16>, vector<32x128xbf16>, vector<256x128xf32> -> vector<256x128xf32>
    %c0_61 = arith.constant 0 : index
    %c0_62 = arith.constant 0 : index
    %52 = vector.load %arg7[%c0_61, %c0_62] : memref<1x128xf32, #tpu.memory_space<vmem>>, vector<1x128xf32>
    %53 = vector.broadcast %52 : vector<1x128xf32> to vector<256x128xf32>
    %54 = arith.addf %51, %53 : vector<256x128xf32>
    %c0_63 = arith.constant 0 : index
    %c0_64 = arith.constant 0 : index
    %55 = vector.load %arg8[%c0_63, %c0_64] : memref<32x128xbf16, #tpu.memory_space<vmem>>, vector<32x128xbf16>
    %cst_65 = arith.constant dense<0.000000e+00> : vector<256x128xf32>
    %56 = tpu.matmul %1, %55, %cst_65 {dimension_numbers = #tpu.dot_dimension_numbers<[1], [0], [0], [1], [0, 0, 1, 1], [], []>} : vector<256x32xbf16>, vector<32x128xbf16>, vector<256x128xf32> -> vector<256x128xf32>
    %57 = arith.addf %54, %56 : vector<256x128xf32>
    %c0_66 = arith.constant 0 : index
    %c0_67 = arith.constant 0 : index
    %58 = vector.load %arg9[%c0_66, %c0_67] : memref<1x128xf32, #tpu.memory_space<vmem>>, vector<1x128xf32>
    %59 = vector.broadcast %58 : vector<1x128xf32> to vector<256x128xf32>
    %60 = arith.addf %57, %59 : vector<256x128xf32>
    %cst_68 = arith.constant 0.000000e+00 : f32
    %61 = vector.broadcast %cst_68 : f32 to vector<256x128xf32>
    %62 = arith.maximumf %60, %61 : vector<256x128xf32>
    %63 = vector.shape_cast %62 : vector<256x128xf32> to vector<1x16x16x128xf32>
    %64 = arith.truncf %63 : vector<1x16x16x128xf32> to vector<1x16x16x128xbf16>
    %c0_69 = arith.constant 0 : index
    %c0_70 = arith.constant 0 : index
    %c0_71 = arith.constant 0 : index
    %c0_72 = arith.constant 0 : index
    %65 = vector.load %arg10[%c0_69, %c0_70, %c0_71, %c0_72] : memref<1x16x16x128xbf16, #tpu.memory_space<vmem>>, vector<1x16x16x128xbf16>
    tpu.vector_store %arg10[%c0_69, %c0_70, %c0_71, %c0_72], %64 {strides = array<i32>} : memref<1x16x16x128xbf16, #tpu.memory_space<vmem>>, vector<1x16x16x128xbf16>,
    return
  }
  func.func @transform_0(%arg0: i32) -> (i32, i32, i32, i32) {
    %c0_i32 = arith.constant 0 : i32
    %c0_i32_0 = arith.constant 0 : i32
    %c0_i32_1 = arith.constant 0 : i32
    %c0_i32_2 = arith.constant 0 : i32
    return %arg0, %c0_i32, %c0_i32_0, %c0_i32_1 : i32, i32, i32, i32
  }
  func.func @transform_1(%arg0: i32) -> (i32, i32) {
    %c0_i32 = arith.constant 0 : i32
    %c0_i32_0 = arith.constant 0 : i32
    %c0_i32_1 = arith.constant 0 : i32
    return %c0_i32, %c0_i32_0 : i32, i32
  }
  func.func @transform_2(%arg0: i32) -> (i32, i32) {
    %c0_i32 = arith.constant 0 : i32
    %c0_i32_0 = arith.constant 0 : i32
    %c0_i32_1 = arith.constant 0 : i32
    return %c0_i32, %c0_i32_0 : i32, i32
  }
  func.func @transform_3(%arg0: i32) -> (i32, i32) {
    %c0_i32 = arith.constant 0 : i32
    %c0_i32_0 = arith.constant 0 : i32
    %c0_i32_1 = arith.constant 0 : i32
    return %c0_i32, %c0_i32_0 : i32, i32
  }
  func.func @transform_4(%arg0: i32) -> (i32, i32) {
    %c0_i32 = arith.constant 0 : i32
    %c0_i32_0 = arith.constant 0 : i32
    %c0_i32_1 = arith.constant 0 : i32
    return %c0_i32, %c0_i32_0 : i32, i32
  }
  func.func @transform_5(%arg0: i32) -> (i32, i32) {
    %c0_i32 = arith.constant 0 : i32
    %c0_i32_0 = arith.constant 0 : i32
    %c0_i32_1 = arith.constant 0 : i32
    return %c0_i32, %c0_i32_0 : i32, i32
  }
  func.func @transform_6(%arg0: i32) -> (i32, i32) {
    %c0_i32 = arith.constant 0 : i32
    %c0_i32_0 = arith.constant 0 : i32
    %c0_i32_1 = arith.constant 0 : i32
    return %c0_i32, %c0_i32_0 : i32, i32
  }
  func.func @transform_7(%arg0: i32) -> (i32, i32) {
    %c0_i32 = arith.constant 0 : i32
    %c0_i32_0 = arith.constant 0 : i32
    %c0_i32_1 = arith.constant 0 : i32
    return %c0_i32, %c0_i32_0 : i32, i32
  }
  func.func @transform_8(%arg0: i32) -> (i32, i32) {
    %c0_i32 = arith.constant 0 : i32
    %c0_i32_0 = arith.constant 0 : i32
    %c0_i32_1 = arith.constant 0 : i32
    return %c0_i32, %c0_i32_0 : i32, i32
  }
  func.func @transform_9(%arg0: i32) -> (i32, i32, i32, i32) {
    %c0_i32 = arith.constant 0 : i32
    %c0_i32_0 = arith.constant 0 : i32
    %c0_i32_1 = arith.constant 0 : i32
    %c0_i32_2 = arith.constant 0 : i32
    return %arg0, %c0_i32, %c0_i32_0, %c0_i32_1 : i32, i32, i32, i32
  }
}

</mosaic_0001>

<llo_original>
// kernel: tpu_custom_call.1
$region0: #{tpu_custom_call.1}
  #allocation0 [shape = 'u32[]', space=smem, size = 0x4, offset = 0x4, fixed_abs, tag = 'smem constant byte address 0x4 - core index']
  #allocation1 [shape = 'u32[144,128]{1,0:T(1,128)}', space=vmem, size = 0x12000, scoped, tag = 'internal scratch']
  #allocation2 [shape = 'bf16[18,18,32]{2,1,0:T(8,128)(2,1)}', space=vmem, size = 0x1b000, scoped, tag = 'scratch operand']
  #allocation3 [shape = 'bf16[256,288]{1,0:T(8,128)(2,1)}', space=vmem, size = 0x30000, scoped, tag = 'scratch operand']
  %s0 = inlined_call_operand.hbm [shape: bf16[2,16,16,32], index: 0, kind: input, shape index: {}]
  %s1 = inlined_call_operand.vmem [shape: bf16[32,32], index: 1, kind: input, shape index: {}]
  %s2 = inlined_call_operand.vmem [shape: f32[1,32], index: 2, kind: input, shape index: {}]
  %s3 = inlined_call_operand.vmem [shape: bf16[288,32], index: 3, kind: input, shape index: {}]
  %s4 = inlined_call_operand.vmem [shape: f32[1,32], index: 4, kind: input, shape index: {}]
  %s5 = inlined_call_operand.vmem [shape: bf16[32,128], index: 5, kind: input, shape index: {}]
  %s6 = inlined_call_operand.vmem [shape: f32[1,128], index: 6, kind: input, shape index: {}]
  %s7 = inlined_call_operand.vmem [shape: bf16[32,128], index: 7, kind: input, shape index: {}]
  %s8 = inlined_call_operand.vmem [shape: f32[1,128], index: 8, kind: input, shape index: {}]
  %s9 = inlined_call_operand.hbm [shape: bf16[2,16,16,128], index: 9, kind: output, shape index: {}]
  %s10 = sld [smem:[#allocation0]]
  $region73: #{tpu_custom_call.1} parent=0
    _
  %s12 = ssub.s32 1, %s10
  %s13 = scalar_select 0, %s12, %s10
  $region1: #{tpu_custom_call.1} parent=0
    #allocation4 [shape = 'u8[131072]{0}', space=vmem, size = 0x20000, scoped, tag = 'input window, operand 0']
    #allocation5 [shape = 's32[2]{0}', space=sflag, size = 0x8, scoped, tag = 'scoped memory for tpu_custom_call.1']
    #allocation6 [shape = 's32[2]{0}', space=sflag, size = 0x8, scoped, tag = 'scoped memory for tpu_custom_call.1']
    #allocation7 [shape = 'u8[131072]{0}', space=vmem, size = 0x20000, scoped, tag = 'output window, operand 0']
    %14 = vsyncpa [#allocation5], 0
    %s15 = scalar_lea.sflag [#allocation5], 1
    %16 = vsyncpa %s15, 0
    %17 = vsyncpa [#allocation6], 0
    %s18 = scalar_lea.sflag [#allocation6], 1
    %19 = vsyncpa %s18, 0
    loop: start=0, step=1, limit=4
    $region2: #{tpu_custom_call.1} parent=1 // loop_pre_header
      _
    $region3: #{tpu_custom_call.1} parent=1 // loop_header
      %s21 = sphi 0, %s25
      %p22 = scmp.ge.s32.totalorder %s21, 4
      %s31 = sphi 0, %s33
      %s34 = sphi 0, %s31
      %s35 = sphi 0, %s34
      %s51 = sphi 0, %s35
      %s55 = sphi 0, %s55
      %s57 = sphi 0, %s55
      %s58 = sphi 0, %s57
      %s72 = sphi 0, %s58
      %s76 = sphi 0, %s76
      %s78 = sphi 0, %s76
      %s79 = sphi 0, %s78
      %s93 = sphi 0, %s79
      %s97 = sphi 0, %s97
      %s99 = sphi 0, %s97
      %s100 = sphi 0, %s99
      %s114 = sphi 0, %s100
      %s118 = sphi 0, %s118
      %s120 = sphi 0, %s118
      %s121 = sphi 0, %s120
      %s135 = sphi 0, %s121
      %s139 = sphi 0, %s139
      %s141 = sphi 0, %s139
      %s142 = sphi 0, %s141
      %s156 = sphi 0, %s142
      %s160 = sphi 0, %s160
      %s162 = sphi 0, %s160
      %s163 = sphi 0, %s162
      %s177 = sphi 0, %s163
      %s181 = sphi 0, %s181
      %s183 = sphi 0, %s181
      %s184 = sphi 0, %s183
      %s198 = sphi 0, %s184
      %s202 = sphi 0, %s202
      %s204 = sphi 0, %s202
      %s205 = sphi 0, %s204
      %s219 = sphi 0, %s205
      %s225 = sphi 0, %s227
      %s228 = sphi 0, %s225
      %s229 = sphi 0, %s228
      %s245 = sphi 0, %s229
    $region4: #{tpu_custom_call.1} parent=1 // loop_header_branch
      %24 = sbr.rel (%p22) target = $region8
    $region5: #{tpu_custom_call.1} parent=1 // loop_body
      %s26 = ssub.s32 %s21, 1
      %s27 = ssub.s32 %s21, 2
      %s28 = sadd.s32 %s21, 1
      %s29 = ssub.s32 %s21, %s28
      %p30 = scmp.eq.s32.totalorder %s29, 0
      %s32 = sadd.s32 %s31, 1
      %s33 = scalar_select %p30, %s31, %s32
      %p36 = pneg %p30
      %p37 = scmp.eq.s32.totalorder %s21, 1
      %p38 = por %p36, %p37
      %p39 = scmp.ne.s32.totalorder %s31, %s34
      %p40 = scmp.eq.s32.totalorder %s21, 0
      %p41 = por %p39, %p40
      %p42 = scmp.ne.s32.totalorder %s31, %s34
      %p43 = scmp.eq.s32.totalorder %s26, 1
      %p44 = por %p42, %p43
      %p45 = scmp.ne.s32.totalorder %s34, %s35
      %p46 = scmp.eq.s32.totalorder %s26, 0
      %p47 = por %p45, %p46
      %p48 = scmp.ne.s32.totalorder %s34, %s35
      %p49 = scmp.eq.s32.totalorder %s27, 1
      %p50 = por %p48, %p49
      %p52 = scmp.ne.s32.totalorder %s35, %s51
      %p53 = scmp.eq.s32.totalorder %s27, 0
      %p54 = por %p52, %p53
      %s56 = sadd.s32 %s55, 1
      %p59 = scmp.eq.s32.totalorder %s21, 1
      %p60 = scmp.ne.s32.totalorder %s55, %s57
      %p61 = scmp.eq.s32.totalorder %s21, 0
      %p62 = por %p60, %p61
      %p63 = scmp.ne.s32.totalorder %s55, %s57
      %p64 = scmp.eq.s32.totalorder %s26, 1
      %p65 = por %p63, %p64
      %p66 = scmp.ne.s32.totalorder %s57, %s58
      %p67 = scmp.eq.s32.totalorder %s26, 0
      %p68 = por %p66, %p67
      %p69 = scmp.ne.s32.totalorder %s57, %s58
      %p70 = scmp.eq.s32.totalorder %s27, 1
      %p71 = por %p69, %p70
      %p73 = scmp.ne.s32.totalorder %s58, %s72
      %p74 = scmp.eq.s32.totalorder %s27, 0
      %p75 = por %p73, %p74
      %s77 = sadd.s32 %s76, 1
      %p80 = scmp.eq.s32.totalorder %s21, 1
      %p81 = scmp.ne.s32.totalorder %s76, %s78
      %p82 = scmp.eq.s32.totalorder %s21, 0
      %p83 = por %p81, %p82
      %p84 = scmp.ne.s32.totalorder %s76, %s78
      %p85 = scmp.eq.s32.totalorder %s26, 1
      %p86 = por %p84, %p85
      %p87 = scmp.ne.s32.totalorder %s78, %s79
      %p88 = scmp.eq.s32.totalorder %s26, 0
      %p89 = por %p87, %p88
      %p90 = scmp.ne.s32.totalorder %s78, %s79
      %p91 = scmp.eq.s32.totalorder %s27, 1
      %p92 = por %p90, %p91
      %p94 = scmp.ne.s32.totalorder %s79, %s93
      %p95 = scmp.eq.s32.totalorder %s27, 0
      %p96 = por %p94, %p95
      %s98 = sadd.s32 %s97, 1
      %p101 = scmp.eq.s32.totalorder %s21, 1
      %p102 = scmp.ne.s32.totalorder %s97, %s99
      %p103 = scmp.eq.s32.totalorder %s21, 0
      %p104 = por %p102, %p103
      %p105 = scmp.ne.s32.totalorder %s97, %s99
      %p106 = scmp.eq.s32.totalorder %s26, 1
      %p107 = por %p105, %p106
      %p108 = scmp.ne.s32.totalorder %s99, %s100
      %p109 = scmp.eq.s32.totalorder %s26, 0
      %p110 = por %p108, %p109
      %p111 = scmp.ne.s32.totalorder %s99, %s100
      %p112 = scmp.eq.s32.totalorder %s27, 1
      %p113 = por %p111, %p112
      %p115 = scmp.ne.s32.totalorder %s100, %s114
      %p116 = scmp.eq.s32.totalorder %s27, 0
      %p117 = por %p115, %p116
      %s119 = sadd.s32 %s118, 1
      %p122 = scmp.eq.s32.totalorder %s21, 1
      %p123 = scmp.ne.s32.totalorder %s118, %s120
      %p124 = scmp.eq.s32.totalorder %s21, 0
      %p125 = por %p123, %p124
      %p126 = scmp.ne.s32.totalorder %s118, %s120
      %p127 = scmp.eq.s32.totalorder %s26, 1
      %p128 = por %p126, %p127
      %p129 = scmp.ne.s32.totalorder %s120, %s121
      %p130 = scmp.eq.s32.totalorder %s26, 0
      %p131 = por %p129, %p130
      %p132 = scmp.ne.s32.totalorder %s120, %s121
      %p133 = scmp.eq.s32.totalorder %s27, 1
      %p134 = por %p132, %p133
      %p136 = scmp.ne.s32.totalorder %s121, %s135
      %p137 = scmp.eq.s32.totalorder %s27, 0
      %p138 = por %p136, %p137
      %s140 = sadd.s32 %s139, 1
      %p143 = scmp.eq.s32.totalorder %s21, 1
      %p144 = scmp.ne.s32.totalorder %s139, %s141
      %p145 = scmp.eq.s32.totalorder %s21, 0
      %p146 = por %p144, %p145
      %p147 = scmp.ne.s32.totalorder %s139, %s141
      %p148 = scmp.eq.s32.totalorder %s26, 1
      %p149 = por %p147, %p148
      %p150 = scmp.ne.s32.totalorder %s141, %s142
      %p151 = scmp.eq.s32.totalorder %s26, 0
      %p152 = por %p150, %p151
      %p153 = scmp.ne.s32.totalorder %s141, %s142
      %p154 = scmp.eq.s32.totalorder %s27, 1
      %p155 = por %p153, %p154
      %p157 = scmp.ne.s32.totalorder %s142, %s156
      %p158 = scmp.eq.s32.totalorder %s27, 0
      %p159 = por %p157, %p158
      %s161 = sadd.s32 %s160, 1
      %p164 = scmp.eq.s32.totalorder %s21, 1
      %p165 = scmp.ne.s32.totalorder %s160, %s162
      %p166 = scmp.eq.s32.totalorder %s21, 0
      %p167 = por %p165, %p166
      %p168 = scmp.ne.s32.totalorder %s160, %s162
      %p169 = scmp.eq.s32.totalorder %s26, 1
      %p170 = por %p168, %p169
      %p171 = scmp.ne.s32.totalorder %s162, %s163
      %p172 = scmp.eq.s32.totalorder %s26, 0
      %p173 = por %p171, %p172
      %p174 = scmp.ne.s32.totalorder %s162, %s163
      %p175 = scmp.eq.s32.totalorder %s27, 1
      %p176 = por %p174, %p175
      %p178 = scmp.ne.s32.totalorder %s163, %s177
      %p179 = scmp.eq.s32.totalorder %s27, 0
      %p180 = por %p178, %p179
      %s182 = sadd.s32 %s181, 1
      %p185 = scmp.eq.s32.totalorder %s21, 1
      %p186 = scmp.ne.s32.totalorder %s181, %s183
      %p187 = scmp.eq.s32.totalorder %s21, 0
      %p188 = por %p186, %p187
      %p189 = scmp.ne.s32.totalorder %s181, %s183
      %p190 = scmp.eq.s32.totalorder %s26, 1
      %p191 = por %p189, %p190
      %p192 = scmp.ne.s32.totalorder %s183, %s184
      %p193 = scmp.eq.s32.totalorder %s26, 0
      %p194 = por %p192, %p193
      %p195 = scmp.ne.s32.totalorder %s183, %s184
      %p196 = scmp.eq.s32.totalorder %s27, 1
      %p197 = por %p195, %p196
      %p199 = scmp.ne.s32.totalorder %s184, %s198
      %p200 = scmp.eq.s32.totalorder %s27, 0
      %p201 = por %p199, %p200
      %s203 = sadd.s32 %s202, 1
      %p206 = scmp.eq.s32.totalorder %s21, 1
      %p207 = scmp.ne.s32.totalorder %s202, %s204
      %p208 = scmp.eq.s32.totalorder %s21, 0
      %p209 = por %p207, %p208
      %p210 = scmp.ne.s32.totalorder %s202, %s204
      %p211 = scmp.eq.s32.totalorder %s26, 1
      %p212 = por %p210, %p211
      %p213 = scmp.ne.s32.totalorder %s204, %s205
      %p214 = scmp.eq.s32.totalorder %s26, 0
      %p215 = por %p213, %p214
      %p216 = scmp.ne.s32.totalorder %s204, %s205
      %p217 = scmp.eq.s32.totalorder %s27, 1
      %p218 = por %p216, %p217
      %p220 = scmp.ne.s32.totalorder %s205, %s219
      %p221 = scmp.eq.s32.totalorder %s27, 0
      %p222 = por %p220, %p221
      %s223 = ssub.s32 %s21, %s28
      %p224 = scmp.eq.s32.totalorder %s223, 0
      %s226 = sadd.s32 %s225, 1
      %s227 = scalar_select %p224, %s225, %s226
      %p230 = pneg %p224
      %p231 = scmp.eq.s32.totalorder %s21, 1
      %p232 = por %p230, %p231
      %p233 = scmp.ne.s32.totalorder %s225, %s228
      %p234 = scmp.eq.s32.totalorder %s21, 0
      %p235 = por %p233, %p234
      %p236 = scmp.ne.s32.totalorder %s225, %s228
      %p237 = scmp.eq.s32.totalorder %s26, 1
      %p238 = por %p236, %p237
      %p239 = scmp.ne.s32.totalorder %s228, %s229
      %p240 = scmp.eq.s32.totalorder %s26, 0
      %p241 = por %p239, %p240
      %p242 = scmp.ne.s32.totalorder %s228, %s229
      %p243 = scmp.eq.s32.totalorder %s27, 1
      %p244 = por %p242, %p243
      %p246 = scmp.ne.s32.totalorder %s229, %s245
      %p247 = scmp.eq.s32.totalorder %s27, 0
      %p248 = por %p246, %p247
      %p249 = scmp.le.s32.totalorder 1, %s21
      %p250 = scmp.lt.s32.totalorder %s21, 3
      %p251 = pnand %p249, %p250
      %p252 = pneg %p251
      // Predicated region
      $region9: #{tpu_custom_call.1} parent=5 // pred_check
        _
      $region10: #{tpu_custom_call.1} parent=5 // pred_check_branch
        %254 = sbr.rel (%p251) target = $region12
      $region11: #{tpu_custom_call.1} parent=5 // pred_region
        %s255 = ssub.s32 %s21, 1
        // Predicated region
        $region13: #{tpu_custom_call.1} parent=11 // pred_check
          %p256 = pneg %p68
        $region14: #{tpu_custom_call.1} parent=11 // pred_check_branch
          %258 = sbr.rel (%p256) target = $region16
        $region15: #{tpu_custom_call.1} parent=11 // pred_region
          _
        $region16: #{tpu_custom_call.1} parent=11 // pred_fallthru
          _
        // Predicated region
        $region17: #{tpu_custom_call.1} parent=11 // pred_check
          %p259 = pneg %p89
        $region18: #{tpu_custom_call.1} parent=11 // pred_check_branch
          %261 = sbr.rel (%p259) target = $region20
        $region19: #{tpu_custom_call.1} parent=11 // pred_region
          _
        $region20: #{tpu_custom_call.1} parent=11 // pred_fallthru
          _
        // Predicated region
        $region21: #{tpu_custom_call.1} parent=11 // pred_check
          %p262 = pneg %p110
        $region22: #{tpu_custom_call.1} parent=11 // pred_check_branch
          %264 = sbr.rel (%p262) target = $region24
        $region23: #{tpu_custom_call.1} parent=11 // pred_region
          _
        $region24: #{tpu_custom_call.1} parent=11 // pred_fallthru
          _
        // Predicated region
        $region25: #{tpu_custom_call.1} parent=11 // pred_check
          %p265 = pneg %p131
        $region26: #{tpu_custom_call.1} parent=11 // pred_check_branch
          %267 = sbr.rel (%p265) target = $region28
        $region27: #{tpu_custom_call.1} parent=11 // pred_region
          _
        $region28: #{tpu_custom_call.1} parent=11 // pred_fallthru
          _
        // Predicated region
        $region29: #{tpu_custom_call.1} parent=11 // pred_check
          %p268 = pneg %p152
        $region30: #{tpu_custom_call.1} parent=11 // pred_check_branch
          %270 = sbr.rel (%p268) target = $region32
        $region31: #{tpu_custom_call.1} parent=11 // pred_region
          _
        $region32: #{tpu_custom_call.1} parent=11 // pred_fallthru
          _
        // Predicated region
        $region33: #{tpu_custom_call.1} parent=11 // pred_check
          %p271 = pneg %p173
        $region34: #{tpu_custom_call.1} parent=11 // pred_check_branch
          %273 = sbr.rel (%p271) target = $region36
        $region35: #{tpu_custom_call.1} parent=11 // pred_region
          _
        $region36: #{tpu_custom_call.1} parent=11 // pred_fallthru
          _
        // Predicated region
        $region37: #{tpu_custom_call.1} parent=11 // pred_check
          %p274 = pneg %p194
        $region38: #{tpu_custom_call.1} parent=11 // pred_check_branch
          %276 = sbr.rel (%p274) target = $region40
        $region39: #{tpu_custom_call.1} parent=11 // pred_region
          _
        $region40: #{tpu_custom_call.1} parent=11 // pred_fallthru
          _
        // Predicated region
        $region41: #{tpu_custom_call.1} parent=11 // pred_check
          %p277 = pneg %p215
        $region42: #{tpu_custom_call.1} parent=11 // pred_check_branch
          %279 = sbr.rel (%p277) target = $region44
        $region43: #{tpu_custom_call.1} parent=11 // pred_region
          _
        $region44: #{tpu_custom_call.1} parent=11 // pred_fallthru
          _
      $region12: #{tpu_custom_call.1} parent=5 // pred_fallthru
        _
      %p280 = scmp.lt.s32.totalorder %s21, 2
      // Predicated region
      $region45: #{tpu_custom_call.1} parent=5 // pred_check
        %p281 = pneg %p280
      $region46: #{tpu_custom_call.1} parent=5 // pred_check_branch
        %283 = sbr.rel (%p281) target = $region48
      $region47: #{tpu_custom_call.1} parent=5 // pred_region
        // Predicated region
        $region49: #{tpu_custom_call.1} parent=47 // pred_check
          %p284 = pneg %p41
        $region50: #{tpu_custom_call.1} parent=47 // pred_check_branch
          %286 = sbr.rel (%p284) target = $region52
        $region51: #{tpu_custom_call.1} parent=47 // pred_region
          %s287 = sand.u32 %s31, 1
          %s288 = scalar_lea.sflag [#allocation5], %s287
          %s289 = sand.u32 %s31, 1
          %s290 = smul.addr %s289, 128
          %s291 = scalar_lea.vmem [#allocation4], %s290
          %s293 = ssub.s32 2048, 2048
          %294 = vsyncadd %s288, %s293
          %s295 = smul.addr %s21, 32
          %s296 = smul.addr %s295, 64
          %s297 = scalar_lea.hbm %s0, %s296
          %s298 = sshll.u32 %s291, 4
          %s299 = int_to_ptr.vmem [resolvable:$true] %s298
          %304 = dma.hbm_to_vmem [thread:$0]  %s297, 2048, %s299, %s288, 64, 64, 4
        $region52: #{tpu_custom_call.1} parent=47 // pred_fallthru
          _
      $region48: #{tpu_custom_call.1} parent=5 // pred_fallthru
        _
      %p305 = scmp.le.s32.totalorder 1, %s21
      %p306 = scmp.lt.s32.totalorder %s21, 3
      %p307 = pnand %p305, %p306
      %p308 = pneg %p307
      // Predicated region
      $region53: #{tpu_custom_call.1} parent=5 // pred_check
        _
      $region54: #{tpu_custom_call.1} parent=5 // pred_check_branch
        %310 = sbr.rel (%p307) target = $region56
      $region55: #{tpu_custom_call.1} parent=5 // pred_region
        %s311 = ssub.s32 %s21, 1
        %s312 = sand.u32 %s34, 1
        %s313 = scalar_lea.sflag [#allocation5], %s312
        %s314 = sand.u32 %s34, 1
        %s315 = smul.addr %s314, 128
        %s316 = scalar_lea.vmem [#allocation4], %s315
        // Predicated region
        $region57: #{tpu_custom_call.1} parent=55 // pred_check
          %p317 = pneg %p47
        $region58: #{tpu_custom_call.1} parent=55 // pred_check_branch
          %319 = sbr.rel (%p317) target = $region60
        $region59: #{tpu_custom_call.1} parent=55 // pred_region
          %320 = dma.done %s313, 2048
        $region60: #{tpu_custom_call.1} parent=55 // pred_fallthru
          _
        %s321 = sand.u32 %s34, 1
        %s322 = scalar_lea.sflag [#allocation5], %s321
        %s323 = sand.u32 %s34, 1
        %s324 = smul.addr %s323, 128
        %s325 = scalar_lea.vmem [#allocation4], %s324
        %p326 = pneg %p47
        %p327 = pneg %p44
        %p328 = pneg %p68
        %p329 = pneg %p65
        %p330 = pneg %p89
        %p331 = pneg %p86
        %p332 = pneg %p110
        %p333 = pneg %p107
        %p334 = pneg %p131
        %p335 = pneg %p128
        %p336 = pneg %p152
        %p337 = pneg %p149
        %p338 = pneg %p173
        %p339 = pneg %p170
        %p340 = pneg %p194
        %p341 = pneg %p191
        %p342 = pneg %p215
        %p343 = pneg %p212
        %p344 = pneg %p241
        %p345 = pneg %p238
        %s346 = sand.u32 %s228, 1
        %s347 = scalar_lea.sflag [#allocation6], %s346
        %s348 = sand.u32 %s228, 1
        %s349 = smul.addr %s348, 128
        %s350 = scalar_lea.vmem [#allocation7], %s349
        %v352 = vld [vmem:[%s316] sm:$0xf]
        %v353 = vld [vmem:[%s316 + $0x4] sm:$0xf]
        %v354 = vld [vmem:[%s316 + $0x8] sm:$0xf]
        %v355 = vld [vmem:[%s316 + $0xc] sm:$0xf]
        %v356 = vld [vmem:[%s316 + $0x10] sm:$0xf]
        %v357 = vld [vmem:[%s316 + $0x14] sm:$0xf]
        %v358 = vld [vmem:[%s316 + $0x18] sm:$0xf]
        %v359 = vld [vmem:[%s316 + $0x1c] sm:$0xf]
        %v360 = vld [vmem:[%s316 + $0x20] sm:$0xf]
        %v361 = vld [vmem:[%s316 + $0x24] sm:$0xf]
        %v362 = vld [vmem:[%s316 + $0x28] sm:$0xf]
        %v363 = vld [vmem:[%s316 + $0x2c] sm:$0xf]
        %v364 = vld [vmem:[%s316 + $0x30] sm:$0xf]
        %v365 = vld [vmem:[%s316 + $0x34] sm:$0xf]
        %v366 = vld [vmem:[%s316 + $0x38] sm:$0xf]
        %v367 = vld [vmem:[%s316 + $0x3c] sm:$0xf]
        %v368 = vld [vmem:[%s316 + $0x40] sm:$0xf]
        %v369 = vld [vmem:[%s316 + $0x44] sm:$0xf]
        %v370 = vld [vmem:[%s316 + $0x48] sm:$0xf]
        %v371 = vld [vmem:[%s316 + $0x4c] sm:$0xf]
        %v372 = vld [vmem:[%s316 + $0x50] sm:$0xf]
        %v373 = vld [vmem:[%s316 + $0x54] sm:$0xf]
        %v374 = vld [vmem:[%s316 + $0x58] sm:$0xf]
        %v375 = vld [vmem:[%s316 + $0x5c] sm:$0xf]
        %v376 = vld [vmem:[%s316 + $0x60] sm:$0xf]
        %v377 = vld [vmem:[%s316 + $0x64] sm:$0xf]
        %v378 = vld [vmem:[%s316 + $0x68] sm:$0xf]
        %v379 = vld [vmem:[%s316 + $0x6c] sm:$0xf]
        %v380 = vld [vmem:[%s316 + $0x70] sm:$0xf]
        %v381 = vld [vmem:[%s316 + $0x74] sm:$0xf]
        %v382 = vld [vmem:[%s316 + $0x78] sm:$0xf]
        %v383 = vld [vmem:[%s316 + $0x7c] sm:$0xf]
        %v384 = vld [vmem:[%s1] sm:$0xf]
        %v385 = vld [vmem:[%s1 + $0x4] sm:$0xf]
        %v386 = vld [vmem:[%s1 + $0x8] sm:$0xf]
        %v387 = vld [vmem:[%s1 + $0xc] sm:$0xf]
        %v388 = vld [vmem:[%s2] sm:$0x1]
        %v390 = vlaneseq
        %v391 = vshrl.u32 %v390, 7
        %v392 = vsub.s32 0, %v391
        %v393 = vrot.slane %v388, %v392
        %v427 = vunpack.c.l.b16 %v352
        %v428 = vunpack.c.l.b16 %v353
        %v429 = vunpack.c.l.b16 %v354
        %v430 = vunpack.c.l.b16 %v355
        %v431 = vunpack.c.l.b16 %v356
        %v432 = vunpack.c.l.b16 %v357
        %v433 = vunpack.c.l.b16 %v358
        %v434 = vunpack.c.l.b16 %v359
        %v435 = vunpack.c.l.b16 %v360
        %v436 = vunpack.c.l.b16 %v361
        %v437 = vunpack.c.l.b16 %v362
        %v438 = vunpack.c.l.b16 %v363
        %v439 = vunpack.c.l.b16 %v364
        %v440 = vunpack.c.l.b16 %v365
        %v441 = vunpack.c.l.b16 %v366
        %v442 = vunpack.c.l.b16 %v367
        %v443 = vunpack.c.l.b16 %v368
        %v444 = vunpack.c.l.b16 %v369
        %v445 = vunpack.c.l.b16 %v370
        %v446 = vunpack.c.l.b16 %v371
        %v447 = vunpack.c.l.b16 %v372
        %v448 = vunpack.c.l.b16 %v373
        %v449 = vunpack.c.l.b16 %v374
        %v450 = vunpack.c.l.b16 %v375
        %v451 = vunpack.c.l.b16 %v376
        %v452 = vunpack.c.l.b16 %v377
        %v453 = vunpack.c.l.b16 %v378
        %v454 = vunpack.c.l.b16 %v379
        %v455 = vunpack.c.l.b16 %v380
        %v456 = vunpack.c.l.b16 %v381
        %v457 = vunpack.c.l.b16 %v382
        %v458 = vunpack.c.l.b16 %v383
        %v459 = vpack.c.b16 %v428, %v427
        %v460 = vpack.c.b16 %v430, %v429
        %v461 = vpack.c.b16 %v432, %v431
        %v462 = vpack.c.b16 %v434, %v433
        %v463 = vpack.c.b16 %v436, %v435
        %v464 = vpack.c.b16 %v438, %v437
        %v465 = vpack.c.b16 %v440, %v439
        %v466 = vpack.c.b16 %v442, %v441
        %v467 = vpack.c.b16 %v444, %v443
        %v468 = vpack.c.b16 %v446, %v445
        %v469 = vpack.c.b16 %v448, %v447
        %v470 = vpack.c.b16 %v450, %v449
        %v471 = vpack.c.b16 %v452, %v451
        %v472 = vpack.c.b16 %v454, %v453
        %v473 = vpack.c.b16 %v456, %v455
        %v474 = vpack.c.b16 %v458, %v457
        %v479 = vunpack.c.l.b16 %v384
        %v480 = vunpack.c.l.b16 %v385
        %v481 = vunpack.c.l.b16 %v386
        %v482 = vunpack.c.l.b16 %v387
        %v483 = vpack.c.b16 %v480, %v479
        %v484 = vpack.c.b16 %v482, %v481
        %vm487 = vcmask 261120
        %v489 = vsel %vm487, %v459, 0
        %v492 = vsel %vm487, %v460, 0
        %v495 = vsel %vm487, %v461, 0
        %v498 = vsel %vm487, %v462, 0
        %v501 = vsel %vm487, %v463, 0
        %v504 = vsel %vm487, %v464, 0
        %v507 = vsel %vm487, %v465, 0
        %v510 = vsel %vm487, %v466, 0
        %v513 = vsel %vm487, %v467, 0
        %v516 = vsel %vm487, %v468, 0
        %v519 = vsel %vm487, %v469, 0
        %v522 = vsel %vm487, %v470, 0
        %v525 = vsel %vm487, %v471, 0
        %v528 = vsel %vm487, %v472, 0
        %v531 = vsel %vm487, %v473, 0
        %v534 = vsel %vm487, %v474, 0
        %536 = vmatprep.subr.bf16.mxu0 0
        %537 = vmatpush1.bf16.msra.mxu0 0
        %538 = vmatprep.subr.bf16.mxu0 0
        %539 = vmatpush1.bf16.msra.mxu0 0
        %540 = vmatprep.subr.bf16.mxu0 0
        %541 = vmatpush1.bf16.msra.mxu0 0
        %542 = vmatprep.subr.bf16.mxu0 0
        %543 = vmatpush1.bf16.msra.mxu0 0
        %544 = vmatprep.subr.bf16.mxu0 0
        %545 = vmatpush1.bf16.msra.mxu0 0
        %546 = vmatprep.subr.bf16.mxu0 0
        %547 = vmatpush1.bf16.msra.mxu0 0
        %548 = vmatprep.subr.bf16.mxu0 0
        %549 = vmatpush1.bf16.msra.mxu0 %v484
        %550 = vmatprep.subr.bf16.mxu0 0
        %551 = vmatpush1.bf16.msra.mxu0 %v483
        %552 = vmatprep.subr.bf16.mxu0 0
        %553 = vmatpush2.bf16.msra.mxu0 0
        %554 = vmatprep.subr.bf16.mxu0 0
        %555 = vmatpush2.bf16.msra.mxu0 0
        %556 = vmatprep.subr.bf16.mxu0 0
        %557 = vmatpush2.bf16.msra.mxu0 0
        %558 = vmatprep.subr.bf16.mxu0 0
        %559 = vmatpush2.bf16.msra.mxu0 0
        %560 = vmatprep.subr.bf16.mxu0 0
        %561 = vmatpush2.bf16.msra.mxu0 0
        %562 = vmatprep.subr.bf16.mxu0 0
        %563 = vmatpush2.bf16.msra.mxu0 0
        %564 = vmatprep.subr.bf16.mxu0 0
        %565 = vmatpush2.bf16.msra.mxu0 0
        %566 = vmatprep.subr.bf16.mxu0 0
        %567 = vmatpush2.bf16.msra.mxu0 0
        %568 = vmatprep.mubr.bf16.mxu0 0
        %569 = vmatmul.mubr.bf16.gmra.mxu0 %v489
        %v570 = vpop.f32.mrf.mxu0
        %v571 = vadd.f32 %v393, %v570
        %v572 = vpop.f32.mrf.mxu0
        %v573 = vpop.f32.mrf.mxu0
        %v574 = vadd.f32 %v393, %v573
        %v575 = vpop.f32.mrf.mxu0
        %576 = vmatprep.mubr.bf16.mxu0 0
        %577 = vmatmul.mubr.bf16.gmra.mxu0 %v492
        %v578 = vpop.f32.mrf.mxu0
        %v579 = vadd.f32 %v393, %v578
        %v580 = vpop.f32.mrf.mxu0
        %v581 = vpop.f32.mrf.mxu0
        %v582 = vadd.f32 %v393, %v581
        %v583 = vpop.f32.mrf.mxu0
        %584 = vmatprep.mubr.bf16.mxu0 0
        %585 = vmatmul.mubr.bf16.gmra.mxu0 %v495
        %v586 = vpop.f32.mrf.mxu0
        %v587 = vadd.f32 %v393, %v586
        %v588 = vpop.f32.mrf.mxu0
        %v589 = vpop.f32.mrf.mxu0
        %v590 = vadd.f32 %v393, %v589
        %v591 = vpop.f32.mrf.mxu0
        %592 = vmatprep.mubr.bf16.mxu0 0
        %593 = vmatmul.mubr.bf16.gmra.mxu0 %v498
        %v594 = vpop.f32.mrf.mxu0
        %v595 = vadd.f32 %v393, %v594
        %v596 = vpop.f32.mrf.mxu0
        %v597 = vpop.f32.mrf.mxu0
        %v598 = vadd.f32 %v393, %v597
        %v599 = vpop.f32.mrf.mxu0
        %600 = vmatprep.mubr.bf16.mxu0 0
        %601 = vmatmul.mubr.bf16.gmra.mxu0 %v501
        %v602 = vpop.f32.mrf.mxu0
        %v603 = vadd.f32 %v393, %v602
        %v604 = vpop.f32.mrf.mxu0
        %v605 = vpop.f32.mrf.mxu0
        %v606 = vadd.f32 %v393, %v605
        %v607 = vpop.f32.mrf.mxu0
        %608 = vmatprep.mubr.bf16.mxu0 0
        %609 = vmatmul.mubr.bf16.gmra.mxu0 %v504
        %v610 = vpop.f32.mrf.mxu0
        %v611 = vadd.f32 %v393, %v610
        %v612 = vpop.f32.mrf.mxu0
        %v613 = vpop.f32.mrf.mxu0
        %v614 = vadd.f32 %v393, %v613
        %v615 = vpop.f32.mrf.mxu0
        %616 = vmatprep.mubr.bf16.mxu0 0
        %617 = vmatmul.mubr.bf16.gmra.mxu0 %v507
        %v618 = vpop.f32.mrf.mxu0
        %v619 = vadd.f32 %v393, %v618
        %v620 = vpop.f32.mrf.mxu0
        %v621 = vpop.f32.mrf.mxu0
        %v622 = vadd.f32 %v393, %v621
        %v623 = vpop.f32.mrf.mxu0
        %624 = vmatprep.mubr.bf16.mxu0 0
        %625 = vmatmul.mubr.bf16.gmra.mxu0 %v510
        %v626 = vpop.f32.mrf.mxu0
        %v627 = vadd.f32 %v393, %v626
        %v628 = vpop.f32.mrf.mxu0
        %v629 = vpop.f32.mrf.mxu0
        %v630 = vadd.f32 %v393, %v629
        %v631 = vpop.f32.mrf.mxu0
        %632 = vmatprep.mubr.bf16.mxu0 0
        %633 = vmatmul.mubr.bf16.gmra.mxu0 %v513
        %v634 = vpop.f32.mrf.mxu0
        %v635 = vadd.f32 %v393, %v634
        %v636 = vpop.f32.mrf.mxu0
        %v637 = vpop.f32.mrf.mxu0
        %v638 = vadd.f32 %v393, %v637
        %v639 = vpop.f32.mrf.mxu0
        %640 = vmatprep.mubr.bf16.mxu0 0
        %641 = vmatmul.mubr.bf16.gmra.mxu0 %v516
        %v642 = vpop.f32.mrf.mxu0
        %v643 = vadd.f32 %v393, %v642
        %v644 = vpop.f32.mrf.mxu0
        %v645 = vpop.f32.mrf.mxu0
        %v646 = vadd.f32 %v393, %v645
        %v647 = vpop.f32.mrf.mxu0
        %648 = vmatprep.mubr.bf16.mxu0 0
        %649 = vmatmul.mubr.bf16.gmra.mxu0 %v519
        %v650 = vpop.f32.mrf.mxu0
        %v651 = vadd.f32 %v393, %v650
        %v652 = vpop.f32.mrf.mxu0
        %v653 = vpop.f32.mrf.mxu0
        %v654 = vadd.f32 %v393, %v653
        %v655 = vpop.f32.mrf.mxu0
        %656 = vmatprep.mubr.bf16.mxu0 0
        %657 = vmatmul.mubr.bf16.gmra.mxu0 %v522
        %v658 = vpop.f32.mrf.mxu0
        %v659 = vadd.f32 %v393, %v658
        %v660 = vpop.f32.mrf.mxu0
        %v661 = vpop.f32.mrf.mxu0
        %v662 = vadd.f32 %v393, %v661
        %v663 = vpop.f32.mrf.mxu0
        %664 = vmatprep.mubr.bf16.mxu0 0
        %665 = vmatmul.mubr.bf16.gmra.mxu0 %v525
        %v666 = vpop.f32.mrf.mxu0
        %v667 = vadd.f32 %v393, %v666
        %v668 = vpop.f32.mrf.mxu0
        %v669 = vpop.f32.mrf.mxu0
        %v670 = vadd.f32 %v393, %v669
        %v671 = vpop.f32.mrf.mxu0
        %672 = vmatprep.mubr.bf16.mxu0 0
        %673 = vmatmul.mubr.bf16.gmra.mxu0 %v528
        %v674 = vpop.f32.mrf.mxu0
        %v675 = vadd.f32 %v393, %v674
        %v676 = vpop.f32.mrf.mxu0
        %v677 = vpop.f32.mrf.mxu0
        %v678 = vadd.f32 %v393, %v677
        %v679 = vpop.f32.mrf.mxu0
        %680 = vmatprep.mubr.bf16.mxu0 0
        %681 = vmatmul.mubr.bf16.gmra.mxu0 %v531
        %v682 = vpop.f32.mrf.mxu0
        %v683 = vadd.f32 %v393, %v682
        %v684 = vpop.f32.mrf.mxu0
        %v685 = vpop.f32.mrf.mxu0
        %v686 = vadd.f32 %v393, %v685
        %v687 = vpop.f32.mrf.mxu0
        %688 = vmatprep.mubr.bf16.mxu0 0
        %689 = vmatmul.mubr.bf16.gmra.mxu0 %v534
        %v690 = vpop.f32.mrf.mxu0
        %v691 = vadd.f32 %v393, %v690
        %v692 = vpop.f32.mrf.mxu0
        %v693 = vpop.f32.mrf.mxu0
        %v694 = vadd.f32 %v393, %v693
        %v695 = vpop.f32.mrf.mxu0
        %696 = vdwg.mxu0
        %v697 = vmax.f32 %v571, 0.0
        %v698 = vmax.f32 %v574, 0.0
        %v699 = vmax.f32 %v579, 0.0
        %v700 = vmax.f32 %v582, 0.0
        %v701 = vmax.f32 %v587, 0.0
        %v702 = vmax.f32 %v590, 0.0
        %v703 = vmax.f32 %v595, 0.0
        %v704 = vmax.f32 %v598, 0.0
        %v705 = vmax.f32 %v603, 0.0
        %v706 = vmax.f32 %v606, 0.0
        %v707 = vmax.f32 %v611, 0.0
        %v708 = vmax.f32 %v614, 0.0
        %v709 = vmax.f32 %v619, 0.0
        %v710 = vmax.f32 %v622, 0.0
        %v711 = vmax.f32 %v627, 0.0
        %v712 = vmax.f32 %v630, 0.0
        %v713 = vmax.f32 %v635, 0.0
        %v714 = vmax.f32 %v638, 0.0
        %v715 = vmax.f32 %v643, 0.0
        %v716 = vmax.f32 %v646, 0.0
        %v717 = vmax.f32 %v651, 0.0
        %v718 = vmax.f32 %v654, 0.0
        %v719 = vmax.f32 %v659, 0.0
        %v720 = vmax.f32 %v662, 0.0
        %v721 = vmax.f32 %v667, 0.0
        %v722 = vmax.f32 %v670, 0.0
        %v723 = vmax.f32 %v675, 0.0
        %v724 = vmax.f32 %v678, 0.0
        %v725 = vmax.f32 %v683, 0.0
        %v726 = vmax.f32 %v686, 0.0
        %v727 = vmax.f32 %v691, 0.0
        %v728 = vmax.f32 %v694, 0.0
        %v729 = vpack.c.bf16 %v698, %v697
        %v730 = vpack.c.bf16 %v700, %v699
        %v731 = vpack.c.bf16 %v702, %v701
        %v732 = vpack.c.bf16 %v704, %v703
        %v733 = vpack.c.bf16 %v706, %v705
        %v734 = vpack.c.bf16 %v708, %v707
        %v735 = vpack.c.bf16 %v710, %v709
        %v736 = vpack.c.bf16 %v712, %v711
        %v737 = vpack.c.bf16 %v714, %v713
        %v738 = vpack.c.bf16 %v716, %v715
        %v739 = vpack.c.bf16 %v718, %v717
        %v740 = vpack.c.bf16 %v720, %v719
        %v741 = vpack.c.bf16 %v722, %v721
        %v742 = vpack.c.bf16 %v724, %v723
        %v743 = vpack.c.bf16 %v726, %v725
        %v744 = vpack.c.bf16 %v728, %v727
        %vm745 = vcmask 257024
        %746 = vst.msk [vmem:[#allocation2] sm:$0xf] %vm745, 0
        %747 = vst.msk [vmem:[#allocation2 + $0x4] sm:$0xf] %vm745, 0
        %vm748 = vcmask 253952
        %749 = vst.msk [vmem:[#allocation2 + $0x8] sm:$0x1] %vm748, 0
        %750 = vst.msk [vmem:[#allocation2 + $0xc] sm:$0xf] %vm745, 0
        %751 = vst.msk [vmem:[#allocation2 + $0x10] sm:$0xf] %vm745, 0
        %752 = vst.msk [vmem:[#allocation2 + $0x14] sm:$0x1] %vm748, 0
        %753 = vst.msk [vmem:[#allocation2 + $0x18] sm:$0xf] %vm745, 0
        %754 = vst.msk [vmem:[#allocation2 + $0x1c] sm:$0xf] %vm745, 0
        %755 = vst.msk [vmem:[#allocation2 + $0x20] sm:$0x1] %vm748, 0
        %756 = vst.msk [vmem:[#allocation2 + $0x24] sm:$0xf] %vm745, 0
        %757 = vst.msk [vmem:[#allocation2 + $0x28] sm:$0xf] %vm745, 0
        %758 = vst.msk [vmem:[#allocation2 + $0x2c] sm:$0x1] %vm748, 0
        %759 = vst.msk [vmem:[#allocation2 + $0x30] sm:$0xf] %vm745, 0
        %760 = vst.msk [vmem:[#allocation2 + $0x34] sm:$0xf] %vm745, 0
        %761 = vst.msk [vmem:[#allocation2 + $0x38] sm:$0x1] %vm748, 0
        %762 = vst.msk [vmem:[#allocation2 + $0x3c] sm:$0xf] %vm745, 0
        %763 = vst.msk [vmem:[#allocation2 + $0x40] sm:$0xf] %vm745, 0
        %764 = vst.msk [vmem:[#allocation2 + $0x44] sm:$0x1] %vm748, 0
        %765 = vst.msk [vmem:[#allocation2 + $0x48] sm:$0xf] %vm745, 0
        %766 = vst.msk [vmem:[#allocation2 + $0x4c] sm:$0xf] %vm745, 0
        %767 = vst.msk [vmem:[#allocation2 + $0x50] sm:$0x1] %vm748, 0
        %768 = vst.msk [vmem:[#allocation2 + $0x54] sm:$0xf] %vm745, 0
        %769 = vst.msk [vmem:[#allocation2 + $0x58] sm:$0xf] %vm745, 0
        %770 = vst.msk [vmem:[#allocation2 + $0x5c] sm:$0x1] %vm748, 0
        %771 = vst.msk [vmem:[#allocation2 + $0x60] sm:$0xf] %vm745, 0
        %772 = vst.msk [vmem:[#allocation2 + $0x64] sm:$0xf] %vm745, 0
        %773 = vst.msk [vmem:[#allocation2 + $0x68] sm:$0x1] %vm748, 0
        %774 = vst.msk [vmem:[#allocation2 + $0x6c] sm:$0xf] %vm745, 0
        %775 = vst.msk [vmem:[#allocation2 + $0x70] sm:$0xf] %vm745, 0
        %776 = vst.msk [vmem:[#allocation2 + $0x74] sm:$0x1] %vm748, 0
        %777 = vst.msk [vmem:[#allocation2 + $0x78] sm:$0xf] %vm745, 0
        %778 = vst.msk [vmem:[#allocation2 + $0x7c] sm:$0xf] %vm745, 0
        %779 = vst.msk [vmem:[#allocation2 + $0x80] sm:$0x1] %vm748, 0
        %780 = vst.msk [vmem:[#allocation2 + $0x84] sm:$0xf] %vm745, 0
        %781 = vst.msk [vmem:[#allocation2 + $0x88] sm:$0xf] %vm745, 0
        %782 = vst.msk [vmem:[#allocation2 + $0x8c] sm:$0x1] %vm748, 0
        %783 = vst.msk [vmem:[#allocation2 + $0x90] sm:$0xf] %vm745, 0
        %784 = vst.msk [vmem:[#allocation2 + $0x94] sm:$0xf] %vm745, 0
        %785 = vst.msk [vmem:[#allocation2 + $0x98] sm:$0x1] %vm748, 0
        %786 = vst.msk [vmem:[#allocation2 + $0x9c] sm:$0xf] %vm745, 0
        %787 = vst.msk [vmem:[#allocation2 + $0xa0] sm:$0xf] %vm745, 0
        %788 = vst.msk [vmem:[#allocation2 + $0xa4] sm:$0x1] %vm748, 0
        %789 = vst.msk [vmem:[#allocation2 + $0xa8] sm:$0xf] %vm745, 0
        %790 = vst.msk [vmem:[#allocation2 + $0xac] sm:$0xf] %vm745, 0
        %791 = vst.msk [vmem:[#allocation2 + $0xb0] sm:$0x1] %vm748, 0
        %792 = vst.msk [vmem:[#allocation2 + $0xb4] sm:$0xf] %vm745, 0
        %793 = vst.msk [vmem:[#allocation2 + $0xb8] sm:$0xf] %vm745, 0
        %794 = vst.msk [vmem:[#allocation2 + $0xbc] sm:$0x1] %vm748, 0
        %795 = vst.msk [vmem:[#allocation2 + $0xc0] sm:$0xf] %vm745, 0
        %796 = vst.msk [vmem:[#allocation2 + $0xc4] sm:$0xf] %vm745, 0
        %797 = vst.msk [vmem:[#allocation2 + $0xc8] sm:$0x1] %vm748, 0
        %798 = vst.msk [vmem:[#allocation2 + $0xcc] sm:$0xf] %vm745, 0
        %799 = vst.msk [vmem:[#allocation2 + $0xd0] sm:$0xf] %vm745, 0
        %800 = vst.msk [vmem:[#allocation2 + $0xd4] sm:$0x1] %vm748, 0
        %v817 = vunpack.c.l.b16 %v729
        %v818 = vunpack.c.h.b16 %v729
        %v819 = vunpack.c.l.b16 %v730
        %v820 = vunpack.c.h.b16 %v730
        %v821 = vunpack.c.l.b16 %v731
        %v822 = vunpack.c.h.b16 %v731
        %v823 = vunpack.c.l.b16 %v732
        %v824 = vunpack.c.h.b16 %v732
        %v825 = vunpack.c.l.b16 %v733
        %v826 = vunpack.c.h.b16 %v733
        %v827 = vunpack.c.l.b16 %v734
        %v828 = vunpack.c.h.b16 %v734
        %v829 = vunpack.c.l.b16 %v735
        %v830 = vunpack.c.h.b16 %v735
        %v831 = vunpack.c.l.b16 %v736
        %v832 = vunpack.c.h.b16 %v736
        %v833 = vunpack.c.l.b16 %v737
        %v834 = vunpack.c.h.b16 %v737
        %v835 = vunpack.c.l.b16 %v738
        %v836 = vunpack.c.h.b16 %v738
        %v837 = vunpack.c.l.b16 %v739
        %v838 = vunpack.c.h.b16 %v739
        %v839 = vunpack.c.l.b16 %v740
        %v840 = vunpack.c.h.b16 %v740
        %v841 = vunpack.c.l.b16 %v741
        %v842 = vunpack.c.h.b16 %v741
        %v843 = vunpack.c.l.b16 %v742
        %v844 = vunpack.c.h.b16 %v742
        %v845 = vunpack.c.l.b16 %v743
        %v846 = vunpack.c.h.b16 %v743
        %v847 = vunpack.c.l.b16 %v744
        %v848 = vunpack.c.h.b16 %v744
        %v849 = vpack.c.b16 %v817, %v817
        %v850 = vpack.c.b16 %v818, %v818
        %v851 = vpack.c.b16 %v819, %v819
        %v852 = vpack.c.b16 %v820, %v820
        %v853 = vpack.c.b16 %v821, %v821
        %v854 = vpack.c.b16 %v822, %v822
        %v855 = vpack.c.b16 %v823, %v823
        %v856 = vpack.c.b16 %v824, %v824
        %v857 = vpack.c.b16 %v825, %v825
        %v858 = vpack.c.b16 %v826, %v826
        %v859 = vpack.c.b16 %v827, %v827
        %v860 = vpack.c.b16 %v828, %v828
        %v861 = vpack.c.b16 %v829, %v829
        %v862 = vpack.c.b16 %v830, %v830
        %v863 = vpack.c.b16 %v831, %v831
        %v864 = vpack.c.b16 %v832, %v832
        %v865 = vpack.c.b16 %v833, %v833
        %v866 = vpack.c.b16 %v834, %v834
        %v867 = vpack.c.b16 %v835, %v835
        %v868 = vpack.c.b16 %v836, %v836
        %v869 = vpack.c.b16 %v837, %v837
        %v870 = vpack.c.b16 %v838, %v838
        %v871 = vpack.c.b16 %v839, %v839
        %v872 = vpack.c.b16 %v840, %v840
        %v873 = vpack.c.b16 %v841, %v841
        %v874 = vpack.c.b16 %v842, %v842
        %v875 = vpack.c.b16 %v843, %v843
        %v876 = vpack.c.b16 %v844, %v844
        %v877 = vpack.c.b16 %v845, %v845
        %v878 = vpack.c.b16 %v846, %v846
        %v879 = vpack.c.b16 %v847, %v847
        %v880 = vpack.c.b16 %v848, %v848
        %vm881 = vsmask.f32 256
        %vm882 = vsmask.f32 4368
        %vm883 = vmor %vm881, %vm882
        %v885 = vshrl.u32 %v849, 16
        %v887 = vrot.slane %v885, 7
        %v888 = vshll.u32 %v849, 16
        %v890 = vor.u32 %v887, %v888
        %v891 = vrot.slane %v887, 4
        %v893 = vshrl.u32 %v850, 16
        %v895 = vrot.slane %v893, 7
        %v896 = vshll.u32 %v850, 16
        %v898 = vor.u32 %v895, %v896
        %v899 = vsel %vm883, %v891, %v898
        %v900 = vrot.slane %v895, 4
        %v902 = vshrl.u32 %v851, 16
        %v904 = vrot.slane %v902, 7
        %v905 = vshll.u32 %v851, 16
        %v907 = vor.u32 %v904, %v905
        %v908 = vrot.slane %v904, 4
        %v910 = vshrl.u32 %v852, 16
        %v912 = vrot.slane %v910, 7
        %v913 = vshll.u32 %v852, 16
        %v915 = vor.u32 %v912, %v913
        %v916 = vsel %vm883, %v908, %v915
        %v917 = vrot.slane %v912, 4
        %v919 = vshrl.u32 %v853, 16
        %v921 = vrot.slane %v919, 7
        %v922 = vshll.u32 %v853, 16
        %v924 = vor.u32 %v921, %v922
        %v925 = vrot.slane %v921, 4
        %v927 = vshrl.u32 %v854, 16
        %v929 = vrot.slane %v927, 7
        %v930 = vshll.u32 %v854, 16
        %v932 = vor.u32 %v929, %v930
        %v933 = vsel %vm883, %v925, %v932
        %v934 = vrot.slane %v929, 4
        %v936 = vshrl.u32 %v855, 16
        %v938 = vrot.slane %v936, 7
        %v939 = vshll.u32 %v855, 16
        %v941 = vor.u32 %v938, %v939
        %v942 = vrot.slane %v938, 4
        %v944 = vshrl.u32 %v856, 16
        %v946 = vrot.slane %v944, 7
        %v947 = vshll.u32 %v856, 16
        %v949 = vor.u32 %v946, %v947
        %v950 = vsel %vm883, %v942, %v949
        %v951 = vrot.slane %v946, 4
        %v953 = vshrl.u32 %v857, 16
        %v955 = vrot.slane %v953, 7
        %v956 = vshll.u32 %v857, 16
        %v958 = vor.u32 %v955, %v956
        %v959 = vrot.slane %v955, 4
        %v961 = vshrl.u32 %v858, 16
        %v963 = vrot.slane %v961, 7
        %v964 = vshll.u32 %v858, 16
        %v966 = vor.u32 %v963, %v964
        %v967 = vsel %vm883, %v959, %v966
        %v968 = vrot.slane %v963, 4
        %v970 = vshrl.u32 %v859, 16
        %v972 = vrot.slane %v970, 7
        %v973 = vshll.u32 %v859, 16
        %v975 = vor.u32 %v972, %v973
        %v976 = vrot.slane %v972, 4
        %v978 = vshrl.u32 %v860, 16
        %v980 = vrot.slane %v978, 7
        %v981 = vshll.u32 %v860, 16
        %v983 = vor.u32 %v980, %v981
        %v984 = vsel %vm883, %v976, %v983
        %v985 = vrot.slane %v980, 4
        %v987 = vshrl.u32 %v861, 16
        %v989 = vrot.slane %v987, 7
        %v990 = vshll.u32 %v861, 16
        %v992 = vor.u32 %v989, %v990
        %v993 = vrot.slane %v989, 4
        %v995 = vshrl.u32 %v862, 16
        %v997 = vrot.slane %v995, 7
        %v998 = vshll.u32 %v862, 16
        %v1000 = vor.u32 %v997, %v998
        %v1001 = vsel %vm883, %v993, %v1000
        %v1002 = vrot.slane %v997, 4
        %v1004 = vshrl.u32 %v863, 16
        %v1006 = vrot.slane %v1004, 7
        %v1007 = vshll.u32 %v863, 16
        %v1009 = vor.u32 %v1006, %v1007
        %v1010 = vrot.slane %v1006, 4
        %v1012 = vshrl.u32 %v864, 16
        %v1014 = vrot.slane %v1012, 7
        %v1015 = vshll.u32 %v864, 16
        %v1017 = vor.u32 %v1014, %v1015
        %v1018 = vsel %vm883, %v1010, %v1017
        %v1019 = vrot.slane %v1014, 4
        %v1021 = vshrl.u32 %v865, 16
        %v1023 = vrot.slane %v1021, 7
        %v1024 = vshll.u32 %v865, 16
        %v1026 = vor.u32 %v1023, %v1024
        %v1027 = vrot.slane %v1023, 4
        %v1029 = vshrl.u32 %v866, 16
        %v1031 = vrot.slane %v1029, 7
        %v1032 = vshll.u32 %v866, 16
        %v1034 = vor.u32 %v1031, %v1032
        %v1035 = vsel %vm883, %v1027, %v1034
        %v1036 = vrot.slane %v1031, 4
        %v1038 = vshrl.u32 %v867, 16
        %v1040 = vrot.slane %v1038, 7
        %v1041 = vshll.u32 %v867, 16
        %v1043 = vor.u32 %v1040, %v1041
        %v1044 = vrot.slane %v1040, 4
        %v1046 = vshrl.u32 %v868, 16
        %v1048 = vrot.slane %v1046, 7
        %v1049 = vshll.u32 %v868, 16
        %v1051 = vor.u32 %v1048, %v1049
        %v1052 = vsel %vm883, %v1044, %v1051
        %v1053 = vrot.slane %v1048, 4
        %v1055 = vshrl.u32 %v869, 16
        %v1057 = vrot.slane %v1055, 7
        %v1058 = vshll.u32 %v869, 16
        %v1060 = vor.u32 %v1057, %v1058
        %v1061 = vrot.slane %v1057, 4
        %v1063 = vshrl.u32 %v870, 16
        %v1065 = vrot.slane %v1063, 7
        %v1066 = vshll.u32 %v870, 16
        %v1068 = vor.u32 %v1065, %v1066
        %v1069 = vsel %vm883, %v1061, %v1068
        %v1070 = vrot.slane %v1065, 4
        %v1072 = vshrl.u32 %v871, 16
        %v1074 = vrot.slane %v1072, 7
        %v1075 = vshll.u32 %v871, 16
        %v1077 = vor.u32 %v1074, %v1075
        %v1078 = vrot.slane %v1074, 4
        %v1080 = vshrl.u32 %v872, 16
        %v1082 = vrot.slane %v1080, 7
        %v1083 = vshll.u32 %v872, 16
        %v1085 = vor.u32 %v1082, %v1083
        %v1086 = vsel %vm883, %v1078, %v1085
        %v1087 = vrot.slane %v1082, 4
        %v1089 = vshrl.u32 %v873, 16
        %v1091 = vrot.slane %v1089, 7
        %v1092 = vshll.u32 %v873, 16
        %v1094 = vor.u32 %v1091, %v1092
        %v1095 = vrot.slane %v1091, 4
        %v1097 = vshrl.u32 %v874, 16
        %v1099 = vrot.slane %v1097, 7
        %v1100 = vshll.u32 %v874, 16
        %v1102 = vor.u32 %v1099, %v1100
        %v1103 = vsel %vm883, %v1095, %v1102
        %v1104 = vrot.slane %v1099, 4
        %v1106 = vshrl.u32 %v875, 16
        %v1108 = vrot.slane %v1106, 7
        %v1109 = vshll.u32 %v875, 16
        %v1111 = vor.u32 %v1108, %v1109
        %v1112 = vrot.slane %v1108, 4
        %v1114 = vshrl.u32 %v876, 16
        %v1116 = vrot.slane %v1114, 7
        %v1117 = vshll.u32 %v876, 16
        %v1119 = vor.u32 %v1116, %v1117
        %v1120 = vsel %vm883, %v1112, %v1119
        %v1121 = vrot.slane %v1116, 4
        %v1123 = vshrl.u32 %v877, 16
        %v1125 = vrot.slane %v1123, 7
        %v1126 = vshll.u32 %v877, 16
        %v1128 = vor.u32 %v1125, %v1126
        %v1129 = vrot.slane %v1125, 4
        %v1131 = vshrl.u32 %v878, 16
        %v1133 = vrot.slane %v1131, 7
        %v1134 = vshll.u32 %v878, 16
        %v1136 = vor.u32 %v1133, %v1134
        %v1137 = vsel %vm883, %v1129, %v1136
        %v1138 = vrot.slane %v1133, 4
        %v1140 = vshrl.u32 %v879, 16
        %v1142 = vrot.slane %v1140, 7
        %v1143 = vshll.u32 %v879, 16
        %v1145 = vor.u32 %v1142, %v1143
        %v1146 = vrot.slane %v1142, 4
        %v1148 = vshrl.u32 %v880, 16
        %v1150 = vrot.slane %v1148, 7
        %v1151 = vshll.u32 %v880, 16
        %v1153 = vor.u32 %v1150, %v1151
        %v1154 = vsel %vm883, %v1146, %v1153
        %v1155 = vrot.slane %v1150, 4
        %s1204 = scalar_lea.vmem [#allocation2], 12
        %vm1205 = vcmask 257024
        %vm1206 = vsmask.f32 7938
        %vm1207 = vmand %vm1205, %vm1206
        %v1208 = vld [vmem:[%s1204] sm:$0xf]
        %v1209 = vsel %vm1207, %v890, %v1208
        %1210 = vst [vmem:[%s1204] sm:$0xf] %v1209
        %1211 = vst.msk [vmem:[%s1204 + $0x4] sm:$0xf] %vm745, %v899
        %vm1212 = vcmask 253952
        %vm1213 = vmand %vm1212, %vm881
        %v1214 = vld [vmem:[%s1204 + $0x8] sm:$0x1]
        %v1215 = vsel %vm1213, %v900, %v1214
        %1216 = vst [vmem:[%s1204 + $0x8] sm:$0x1] %v1215
        %v1217 = vld [vmem:[%s1204 + $0xc] sm:$0xf]
        %v1218 = vsel %vm1207, %v907, %v1217
        %1219 = vst [vmem:[%s1204 + $0xc] sm:$0xf] %v1218
        %1220 = vst.msk [vmem:[%s1204 + $0x10] sm:$0xf] %vm745, %v916
        %v1221 = vld [vmem:[%s1204 + $0x14] sm:$0x1]
        %v1222 = vsel %vm1213, %v917, %v1221
        %1223 = vst [vmem:[%s1204 + $0x14] sm:$0x1] %v1222
        %v1224 = vld [vmem:[%s1204 + $0x18] sm:$0xf]
        %v1225 = vsel %vm1207, %v924, %v1224
        %1226 = vst [vmem:[%s1204 + $0x18] sm:$0xf] %v1225
        %1227 = vst.msk [vmem:[%s1204 + $0x1c] sm:$0xf] %vm745, %v933
        %v1228 = vld [vmem:[%s1204 + $0x20] sm:$0x1]
        %v1229 = vsel %vm1213, %v934, %v1228
        %1230 = vst [vmem:[%s1204 + $0x20] sm:$0x1] %v1229
        %v1231 = vld [vmem:[%s1204 + $0x24] sm:$0xf]
        %v1232 = vsel %vm1207, %v941, %v1231
        %1233 = vst [vmem:[%s1204 + $0x24] sm:$0xf] %v1232
        %1234 = vst.msk [vmem:[%s1204 + $0x28] sm:$0xf] %vm745, %v950
        %v1235 = vld [vmem:[%s1204 + $0x2c] sm:$0x1]
        %v1236 = vsel %vm1213, %v951, %v1235
        %1237 = vst [vmem:[%s1204 + $0x2c] sm:$0x1] %v1236
        %v1238 = vld [vmem:[%s1204 + $0x30] sm:$0xf]
        %v1239 = vsel %vm1207, %v958, %v1238
        %1240 = vst [vmem:[%s1204 + $0x30] sm:$0xf] %v1239
        %1241 = vst.msk [vmem:[%s1204 + $0x34] sm:$0xf] %vm745, %v967
        %v1242 = vld [vmem:[%s1204 + $0x38] sm:$0x1]
        %v1243 = vsel %vm1213, %v968, %v1242
        %1244 = vst [vmem:[%s1204 + $0x38] sm:$0x1] %v1243
        %v1245 = vld [vmem:[%s1204 + $0x3c] sm:$0xf]
        %v1246 = vsel %vm1207, %v975, %v1245
        %1247 = vst [vmem:[%s1204 + $0x3c] sm:$0xf] %v1246
        %1248 = vst.msk [vmem:[%s1204 + $0x40] sm:$0xf] %vm745, %v984
        %v1249 = vld [vmem:[%s1204 + $0x44] sm:$0x1]
        %v1250 = vsel %vm1213, %v985, %v1249
        %1251 = vst [vmem:[%s1204 + $0x44] sm:$0x1] %v1250
        %v1252 = vld [vmem:[%s1204 + $0x48] sm:$0xf]
        %v1253 = vsel %vm1207, %v992, %v1252
        %1254 = vst [vmem:[%s1204 + $0x48] sm:$0xf] %v1253
        %1255 = vst.msk [vmem:[%s1204 + $0x4c] sm:$0xf] %vm745, %v1001
        %v1256 = vld [vmem:[%s1204 + $0x50] sm:$0x1]
        %v1257 = vsel %vm1213, %v1002, %v1256
        %1258 = vst [vmem:[%s1204 + $0x50] sm:$0x1] %v1257
        %v1259 = vld [vmem:[%s1204 + $0x54] sm:$0xf]
        %v1260 = vsel %vm1207, %v1009, %v1259
        %1261 = vst [vmem:[%s1204 + $0x54] sm:$0xf] %v1260
        %1262 = vst.msk [vmem:[%s1204 + $0x58] sm:$0xf] %vm745, %v1018
        %v1263 = vld [vmem:[%s1204 + $0x5c] sm:$0x1]
        %v1264 = vsel %vm1213, %v1019, %v1263
        %1265 = vst [vmem:[%s1204 + $0x5c] sm:$0x1] %v1264
        %v1266 = vld [vmem:[%s1204 + $0x60] sm:$0xf]
        %v1267 = vsel %vm1207, %v1026, %v1266
        %1268 = vst [vmem:[%s1204 + $0x60] sm:$0xf] %v1267
        %1269 = vst.msk [vmem:[%s1204 + $0x64] sm:$0xf] %vm745, %v1035
        %v1270 = vld [vmem:[%s1204 + $0x68] sm:$0x1]
        %v1271 = vsel %vm1213, %v1036, %v1270
        %1272 = vst [vmem:[%s1204 + $0x68] sm:$0x1] %v1271
        %v1273 = vld [vmem:[%s1204 + $0x6c] sm:$0xf]
        %v1274 = vsel %vm1207, %v1043, %v1273
        %1275 = vst [vmem:[%s1204 + $0x6c] sm:$0xf] %v1274
        %1276 = vst.msk [vmem:[%s1204 + $0x70] sm:$0xf] %vm745, %v1052
        %v1277 = vld [vmem:[%s1204 + $0x74] sm:$0x1]
        %v1278 = vsel %vm1213, %v1053, %v1277
        %1279 = vst [vmem:[%s1204 + $0x74] sm:$0x1] %v1278
        %v1280 = vld [vmem:[%s1204 + $0x78] sm:$0xf]
        %v1281 = vsel %vm1207, %v1060, %v1280
        %1282 = vst [vmem:[%s1204 + $0x78] sm:$0xf] %v1281
        %1283 = vst.msk [vmem:[%s1204 + $0x7c] sm:$0xf] %vm745, %v1069
        %v1284 = vld [vmem:[%s1204 + $0x80] sm:$0x1]
        %v1285 = vsel %vm1213, %v1070, %v1284
        %1286 = vst [vmem:[%s1204 + $0x80] sm:$0x1] %v1285
        %v1287 = vld [vmem:[%s1204 + $0x84] sm:$0xf]
        %v1288 = vsel %vm1207, %v1077, %v1287
        %1289 = vst [vmem:[%s1204 + $0x84] sm:$0xf] %v1288
        %1290 = vst.msk [vmem:[%s1204 + $0x88] sm:$0xf] %vm745, %v1086
        %v1291 = vld [vmem:[%s1204 + $0x8c] sm:$0x1]
        %v1292 = vsel %vm1213, %v1087, %v1291
        %1293 = vst [vmem:[%s1204 + $0x8c] sm:$0x1] %v1292
        %v1294 = vld [vmem:[%s1204 + $0x90] sm:$0xf]
        %v1295 = vsel %vm1207, %v1094, %v1294
        %1296 = vst [vmem:[%s1204 + $0x90] sm:$0xf] %v1295
        %1297 = vst.msk [vmem:[%s1204 + $0x94] sm:$0xf] %vm745, %v1103
        %v1298 = vld [vmem:[%s1204 + $0x98] sm:$0x1]
        %v1299 = vsel %vm1213, %v1104, %v1298
        %1300 = vst [vmem:[%s1204 + $0x98] sm:$0x1] %v1299
        %v1301 = vld [vmem:[%s1204 + $0x9c] sm:$0xf]
        %v1302 = vsel %vm1207, %v1111, %v1301
        %1303 = vst [vmem:[%s1204 + $0x9c] sm:$0xf] %v1302
        %1304 = vst.msk [vmem:[%s1204 + $0xa0] sm:$0xf] %vm745, %v1120
        %v1305 = vld [vmem:[%s1204 + $0xa4] sm:$0x1]
        %v1306 = vsel %vm1213, %v1121, %v1305
        %1307 = vst [vmem:[%s1204 + $0xa4] sm:$0x1] %v1306
        %v1308 = vld [vmem:[%s1204 + $0xa8] sm:$0xf]
        %v1309 = vsel %vm1207, %v1128, %v1308
        %1310 = vst [vmem:[%s1204 + $0xa8] sm:$0xf] %v1309
        %1311 = vst.msk [vmem:[%s1204 + $0xac] sm:$0xf] %vm745, %v1137
        %v1312 = vld [vmem:[%s1204 + $0xb0] sm:$0x1]
        %v1313 = vsel %vm1213, %v1138, %v1312
        %1314 = vst [vmem:[%s1204 + $0xb0] sm:$0x1] %v1313
        %v1315 = vld [vmem:[%s1204 + $0xb4] sm:$0xf]
        %v1316 = vsel %vm1207, %v1145, %v1315
        %1317 = vst [vmem:[%s1204 + $0xb4] sm:$0xf] %v1316
        %1318 = vst.msk [vmem:[%s1204 + $0xb8] sm:$0xf] %vm745, %v1154
        %v1319 = vld [vmem:[%s1204 + $0xbc] sm:$0x1]
        %v1320 = vsel %vm1213, %v1155, %v1319
        %1321 = vst [vmem:[%s1204 + $0xbc] sm:$0x1] %v1320
        %v1322 = vld [vmem:[#allocation2] sm:$0xf]
        %v1323 = vld [vmem:[#allocation2 + $0x4] sm:$0xf]
        %v1324 = vld [vmem:[#allocation2 + $0xc] sm:$0xf]
        %v1325 = vld [vmem:[#allocation2 + $0x10] sm:$0xf]
        %v1326 = vld [vmem:[#allocation2 + $0x18] sm:$0xf]
        %v1327 = vld [vmem:[#allocation2 + $0x1c] sm:$0xf]
        %v1328 = vld [vmem:[#allocation2 + $0x24] sm:$0xf]
        %v1329 = vld [vmem:[#allocation2 + $0x28] sm:$0xf]
        %v1330 = vld [vmem:[#allocation2 + $0x30] sm:$0xf]
        %v1331 = vld [vmem:[#allocation2 + $0x34] sm:$0xf]
        %v1332 = vld [vmem:[#allocation2 + $0x3c] sm:$0xf]
        %v1333 = vld [vmem:[#allocation2 + $0x40] sm:$0xf]
        %v1334 = vld [vmem:[#allocation2 + $0x48] sm:$0xf]
        %v1335 = vld [vmem:[#allocation2 + $0x4c] sm:$0xf]
        %v1336 = vld [vmem:[#allocation2 + $0x54] sm:$0xf]
        %v1337 = vld [vmem:[#allocation2 + $0x58] sm:$0xf]
        %v1338 = vld [vmem:[#allocation2 + $0x60] sm:$0xf]
        %v1339 = vld [vmem:[#allocation2 + $0x64] sm:$0xf]
        %v1340 = vld [vmem:[#allocation2 + $0x6c] sm:$0xf]
        %v1341 = vld [vmem:[#allocation2 + $0x70] sm:$0xf]
        %v1342 = vld [vmem:[#allocation2 + $0x78] sm:$0xf]
        %v1343 = vld [vmem:[#allocation2 + $0x7c] sm:$0xf]
        %v1344 = vld [vmem:[#allocation2 + $0x84] sm:$0xf]
        %v1345 = vld [vmem:[#allocation2 + $0x88] sm:$0xf]
        %v1346 = vld [vmem:[#allocation2 + $0x90] sm:$0xf]
        %v1347 = vld [vmem:[#allocation2 + $0x94] sm:$0xf]
        %v1348 = vld [vmem:[#allocation2 + $0x9c] sm:$0xf]
        %v1349 = vld [vmem:[#allocation2 + $0xa0] sm:$0xf]
        %v1350 = vld [vmem:[#allocation2 + $0xa8] sm:$0xf]
        %v1351 = vld [vmem:[#allocation2 + $0xac] sm:$0xf]
        %v1352 = vld [vmem:[#allocation2 + $0xb4] sm:$0xf]
        %v1353 = vld [vmem:[#allocation2 + $0xb8] sm:$0xf]
        %1354 = vst.msk [vmem:[#allocation3] sm:$0xf] %vm745, %v1322
        %1355 = vst.msk [vmem:[#allocation3 + $0xc] sm:$0xf] %vm745, %v1323
        %1356 = vst.msk [vmem:[#allocation3 + $0x18] sm:$0xf] %vm745, %v1324
        %1357 = vst.msk [vmem:[#allocation3 + $0x24] sm:$0xf] %vm745, %v1325
        %1358 = vst.msk [vmem:[#allocation3 + $0x30] sm:$0xf] %vm745, %v1326
        %1359 = vst.msk [vmem:[#allocation3 + $0x3c] sm:$0xf] %vm745, %v1327
        %1360 = vst.msk [vmem:[#allocation3 + $0x48] sm:$0xf] %vm745, %v1328
        %1361 = vst.msk [vmem:[#allocation3 + $0x54] sm:$0xf] %vm745, %v1329
        %1362 = vst.msk [vmem:[#allocation3 + $0x60] sm:$0xf] %vm745, %v1330
        %1363 = vst.msk [vmem:[#allocation3 + $0x6c] sm:$0xf] %vm745, %v1331
        %1364 = vst.msk [vmem:[#allocation3 + $0x78] sm:$0xf] %vm745, %v1332
        %1365 = vst.msk [vmem:[#allocation3 + $0x84] sm:$0xf] %vm745, %v1333
        %1366 = vst.msk [vmem:[#allocation3 + $0x90] sm:$0xf] %vm745, %v1334
        %1367 = vst.msk [vmem:[#allocation3 + $0x9c] sm:$0xf] %vm745, %v1335
        %1368 = vst.msk [vmem:[#allocation3 + $0xa8] sm:$0xf] %vm745, %v1336
        %1369 = vst.msk [vmem:[#allocation3 + $0xb4] sm:$0xf] %vm745, %v1337
        %1370 = vst.msk [vmem:[#allocation3 + $0xc0] sm:$0xf] %vm745, %v1338
        %1371 = vst.msk [vmem:[#allocation3 + $0xcc] sm:$0xf] %vm745, %v1339
        %1372 = vst.msk [vmem:[#allocation3 + $0xd8] sm:$0xf] %vm745, %v1340
        %1373 = vst.msk [vmem:[#allocation3 + $0xe4] sm:$0xf] %vm745, %v1341
        %1374 = vst.msk [vmem:[#allocation3 + $0xf0] sm:$0xf] %vm745, %v1342
        %1375 = vst.msk [vmem:[#allocation3 + $0xfc] sm:$0xf] %vm745, %v1343
        %1376 = vst.msk [vmem:[#allocation3 + $0x108] sm:$0xf] %vm745, %v1344
        %1377 = vst.msk [vmem:[#allocation3 + $0x114] sm:$0xf] %vm745, %v1345
        %1378 = vst.msk [vmem:[#allocation3 + $0x120] sm:$0xf] %vm745, %v1346
        %1379 = vst.msk [vmem:[#allocation3 + $0x12c] sm:$0xf] %vm745, %v1347
        %1380 = vst.msk [vmem:[#allocation3 + $0x138] sm:$0xf] %vm745, %v1348
        %1381 = vst.msk [vmem:[#allocation3 + $0x144] sm:$0xf] %vm745, %v1349
        %1382 = vst.msk [vmem:[#allocation3 + $0x150] sm:$0xf] %vm745, %v1350
        %1383 = vst.msk [vmem:[#allocation3 + $0x15c] sm:$0xf] %vm745, %v1351
        %1384 = vst.msk [vmem:[#allocation3 + $0x168] sm:$0xf] %vm745, %v1352
        %1385 = vst.msk [vmem:[#allocation3 + $0x174] sm:$0xf] %vm745, %v1353
        %v1386 = vld [vmem:[#allocation2] sm:$0xf]
        %v1387 = vld [vmem:[#allocation2 + $0x4] sm:$0xf]
        %v1388 = vld [vmem:[#allocation2 + $0x8] sm:$0x1]
        %v1389 = vld [vmem:[#allocation2 + $0xc] sm:$0xf]
        %v1390 = vld [vmem:[#allocation2 + $0x10] sm:$0xf]
        %v1391 = vld [vmem:[#allocation2 + $0x14] sm:$0x1]
        %v1392 = vld [vmem:[#allocation2 + $0x18] sm:$0xf]
        %v1393 = vld [vmem:[#allocation2 + $0x1c] sm:$0xf]
        %v1394 = vld [vmem:[#allocation2 + $0x20] sm:$0x1]
        %v1395 = vld [vmem:[#allocation2 + $0x24] sm:$0xf]
        %v1396 = vld [vmem:[#allocation2 + $0x28] sm:$0xf]
        %v1397 = vld [vmem:[#allocation2 + $0x2c] sm:$0x1]
        %v1398 = vld [vmem:[#allocation2 + $0x30] sm:$0xf]
        %v1399 = vld [vmem:[#allocation2 + $0x34] sm:$0xf]
        %v1400 = vld [vmem:[#allocation2 + $0x38] sm:$0x1]
        %v1401 = vld [vmem:[#allocation2 + $0x3c] sm:$0xf]
        %v1402 = vld [vmem:[#allocation2 + $0x40] sm:$0xf]
        %v1403 = vld [vmem:[#allocation2 + $0x44] sm:$0x1]
        %v1404 = vld [vmem:[#allocation2 + $0x48] sm:$0xf]
        %v1405 = vld [vmem:[#allocation2 + $0x4c] sm:$0xf]
        %v1406 = vld [vmem:[#allocation2 + $0x50] sm:$0x1]
        %v1407 = vld [vmem:[#allocation2 + $0x54] sm:$0xf]
        %v1408 = vld [vmem:[#allocation2 + $0x58] sm:$0xf]
        %v1409 = vld [vmem:[#allocation2 + $0x5c] sm:$0x1]
        %v1410 = vld [vmem:[#allocation2 + $0x60] sm:$0xf]
        %v1411 = vld [vmem:[#allocation2 + $0x64] sm:$0xf]
        %v1412 = vld [vmem:[#allocation2 + $0x68] sm:$0x1]
        %v1413 = vld [vmem:[#allocation2 + $0x6c] sm:$0xf]
        %v1414 = vld [vmem:[#allocation2 + $0x70] sm:$0xf]
        %v1415 = vld [vmem:[#allocation2 + $0x74] sm:$0x1]
        %v1416 = vld [vmem:[#allocation2 + $0x78] sm:$0xf]
        %v1417 = vld [vmem:[#allocation2 + $0x7c] sm:$0xf]
        %v1418 = vld [vmem:[#allocation2 + $0x80] sm:$0x1]
        %v1419 = vld [vmem:[#allocation2 + $0x84] sm:$0xf]
        %v1420 = vld [vmem:[#allocation2 + $0x88] sm:$0xf]
        %v1421 = vld [vmem:[#allocation2 + $0x8c] sm:$0x1]
        %v1422 = vld [vmem:[#allocation2 + $0x90] sm:$0xf]
        %v1423 = vld [vmem:[#allocation2 + $0x94] sm:$0xf]
        %v1424 = vld [vmem:[#allocation2 + $0x98] sm:$0x1]
        %v1425 = vld [vmem:[#allocation2 + $0x9c] sm:$0xf]
        %v1426 = vld [vmem:[#allocation2 + $0xa0] sm:$0xf]
        %v1427 = vld [vmem:[#allocation2 + $0xa4] sm:$0x1]
        %v1428 = vld [vmem:[#allocation2 + $0xa8] sm:$0xf]
        %v1429 = vld [vmem:[#allocation2 + $0xac] sm:$0xf]
        %v1430 = vld [vmem:[#allocation2 + $0xb0] sm:$0x1]
        %v1431 = vld [vmem:[#allocation2 + $0xb4] sm:$0xf]
        %v1432 = vld [vmem:[#allocation2 + $0xb8] sm:$0xf]
        %v1433 = vld [vmem:[#allocation2 + $0xbc] sm:$0x1]
        %vm1434 = vsmask.f32 3328
        %vm1435 = vsmask.f32 7440
        %vm1436 = vmor %vm1434, %vm1435
        %v1438 = vshrl.u32 %v1386, 16
        %v1440 = vrot.slane %v1438, 4
        %v1441 = vshll.u32 %v1386, 16
        %v1443 = vrot.slane %v1441, 5
        %v1444 = vor.u32 %v1440, %v1443
        %v1445 = vrot.slane %v1444, 4
        %v1447 = vshll.u32 %v1387, 16
        %v1449 = vrot.slane %v1447, 5
        %v1450 = vsel %vm1436, %v1445, %v1449
        %v1451 = vshrl.u32 %v1387, 16
        %v1453 = vrot.slane %v1451, 4
        %v1454 = vor.u32 %v1453, %v1449
        %v1455 = vrot.slane %v1454, 4
        %v1457 = vshll.u32 %v1388, 16
        %v1459 = vrot.slane %v1457, 5
        %v1460 = vsel %vm1436, %v1455, %v1459
        %v1462 = vshrl.u32 %v1389, 16
        %v1464 = vrot.slane %v1462, 4
        %v1465 = vshll.u32 %v1389, 16
        %v1467 = vrot.slane %v1465, 5
        %v1468 = vor.u32 %v1464, %v1467
        %v1469 = vrot.slane %v1468, 4
        %v1471 = vshll.u32 %v1390, 16
        %v1473 = vrot.slane %v1471, 5
        %v1474 = vsel %vm1436, %v1469, %v1473
        %v1475 = vshrl.u32 %v1390, 16
        %v1477 = vrot.slane %v1475, 4
        %v1478 = vor.u32 %v1477, %v1473
        %v1479 = vrot.slane %v1478, 4
        %v1481 = vshll.u32 %v1391, 16
        %v1483 = vrot.slane %v1481, 5
        %v1484 = vsel %vm1436, %v1479, %v1483
        %v1486 = vshrl.u32 %v1392, 16
        %v1488 = vrot.slane %v1486, 4
        %v1489 = vshll.u32 %v1392, 16
        %v1491 = vrot.slane %v1489, 5
        %v1492 = vor.u32 %v1488, %v1491
        %v1493 = vrot.slane %v1492, 4
        %v1495 = vshll.u32 %v1393, 16
        %v1497 = vrot.slane %v1495, 5
        %v1498 = vsel %vm1436, %v1493, %v1497
        %v1499 = vshrl.u32 %v1393, 16
        %v1501 = vrot.slane %v1499, 4
        %v1502 = vor.u32 %v1501, %v1497
        %v1503 = vrot.slane %v1502, 4
        %v1505 = vshll.u32 %v1394, 16
        %v1507 = vrot.slane %v1505, 5
        %v1508 = vsel %vm1436, %v1503, %v1507
        %v1510 = vshrl.u32 %v1395, 16
        %v1512 = vrot.slane %v1510, 4
        %v1513 = vshll.u32 %v1395, 16
        %v1515 = vrot.slane %v1513, 5
        %v1516 = vor.u32 %v1512, %v1515
        %v1517 = vrot.slane %v1516, 4
        %v1519 = vshll.u32 %v1396, 16
        %v1521 = vrot.slane %v1519, 5
        %v1522 = vsel %vm1436, %v1517, %v1521
        %v1523 = vshrl.u32 %v1396, 16
        %v1525 = vrot.slane %v1523, 4
        %v1526 = vor.u32 %v1525, %v1521
        %v1527 = vrot.slane %v1526, 4
        %v1529 = vshll.u32 %v1397, 16
        %v1531 = vrot.slane %v1529, 5
        %v1532 = vsel %vm1436, %v1527, %v1531
        %v1534 = vshrl.u32 %v1398, 16
        %v1536 = vrot.slane %v1534, 4
        %v1537 = vshll.u32 %v1398, 16
        %v1539 = vrot.slane %v1537, 5
        %v1540 = vor.u32 %v1536, %v1539
        %v1541 = vrot.slane %v1540, 4
        %v1543 = vshll.u32 %v1399, 16
        %v1545 = vrot.slane %v1543, 5
        %v1546 = vsel %vm1436, %v1541, %v1545
        %v1547 = vshrl.u32 %v1399, 16
        %v1549 = vrot.slane %v1547, 4
        %v1550 = vor.u32 %v1549, %v1545
        %v1551 = vrot.slane %v1550, 4
        %v1553 = vshll.u32 %v1400, 16
        %v1555 = vrot.slane %v1553, 5
        %v1556 = vsel %vm1436, %v1551, %v1555
        %v1558 = vshrl.u32 %v1401, 16
        %v1560 = vrot.slane %v1558, 4
        %v1561 = vshll.u32 %v1401, 16
        %v1563 = vrot.slane %v1561, 5
        %v1564 = vor.u32 %v1560, %v1563
        %v1565 = vrot.slane %v1564, 4
        %v1567 = vshll.u32 %v1402, 16
        %v1569 = vrot.slane %v1567, 5
        %v1570 = vsel %vm1436, %v1565, %v1569
        %v1571 = vshrl.u32 %v1402, 16
        %v1573 = vrot.slane %v1571, 4
        %v1574 = vor.u32 %v1573, %v1569
        %v1575 = vrot.slane %v1574, 4
        %v1577 = vshll.u32 %v1403, 16
        %v1579 = vrot.slane %v1577, 5
        %v1580 = vsel %vm1436, %v1575, %v1579
        %v1582 = vshrl.u32 %v1404, 16
        %v1584 = vrot.slane %v1582, 4
        %v1585 = vshll.u32 %v1404, 16
        %v1587 = vrot.slane %v1585, 5
        %v1588 = vor.u32 %v1584, %v1587
        %v1589 = vrot.slane %v1588, 4
        %v1591 = vshll.u32 %v1405, 16
        %v1593 = vrot.slane %v1591, 5
        %v1594 = vsel %vm1436, %v1589, %v1593
        %v1595 = vshrl.u32 %v1405, 16
        %v1597 = vrot.slane %v1595, 4
        %v1598 = vor.u32 %v1597, %v1593
        %v1599 = vrot.slane %v1598, 4
        %v1601 = vshll.u32 %v1406, 16
        %v1603 = vrot.slane %v1601, 5
        %v1604 = vsel %vm1436, %v1599, %v1603
        %v1606 = vshrl.u32 %v1407, 16
        %v1608 = vrot.slane %v1606, 4
        %v1609 = vshll.u32 %v1407, 16
        %v1611 = vrot.slane %v1609, 5
        %v1612 = vor.u32 %v1608, %v1611
        %v1613 = vrot.slane %v1612, 4
        %v1615 = vshll.u32 %v1408, 16
        %v1617 = vrot.slane %v1615, 5
        %v1618 = vsel %vm1436, %v1613, %v1617
        %v1619 = vshrl.u32 %v1408, 16
        %v1621 = vrot.slane %v1619, 4
        %v1622 = vor.u32 %v1621, %v1617
        %v1623 = vrot.slane %v1622, 4
        %v1625 = vshll.u32 %v1409, 16
        %v1627 = vrot.slane %v1625, 5
        %v1628 = vsel %vm1436, %v1623, %v1627
        %v1630 = vshrl.u32 %v1410, 16
        %v1632 = vrot.slane %v1630, 4
        %v1633 = vshll.u32 %v1410, 16
        %v1635 = vrot.slane %v1633, 5
        %v1636 = vor.u32 %v1632, %v1635
        %v1637 = vrot.slane %v1636, 4
        %v1639 = vshll.u32 %v1411, 16
        %v1641 = vrot.slane %v1639, 5
        %v1642 = vsel %vm1436, %v1637, %v1641
        %v1643 = vshrl.u32 %v1411, 16
        %v1645 = vrot.slane %v1643, 4
        %v1646 = vor.u32 %v1645, %v1641
        %v1647 = vrot.slane %v1646, 4
        %v1649 = vshll.u32 %v1412, 16
        %v1651 = vrot.slane %v1649, 5
        %v1652 = vsel %vm1436, %v1647, %v1651
        %v1654 = vshrl.u32 %v1413, 16
        %v1656 = vrot.slane %v1654, 4
        %v1657 = vshll.u32 %v1413, 16
        %v1659 = vrot.slane %v1657, 5
        %v1660 = vor.u32 %v1656, %v1659
        %v1661 = vrot.slane %v1660, 4
        %v1663 = vshll.u32 %v1414, 16
        %v1665 = vrot.slane %v1663, 5
        %v1666 = vsel %vm1436, %v1661, %v1665
        %v1667 = vshrl.u32 %v1414, 16
        %v1669 = vrot.slane %v1667, 4
        %v1670 = vor.u32 %v1669, %v1665
        %v1671 = vrot.slane %v1670, 4
        %v1673 = vshll.u32 %v1415, 16
        %v1675 = vrot.slane %v1673, 5
        %v1676 = vsel %vm1436, %v1671, %v1675
        %v1678 = vshrl.u32 %v1416, 16
        %v1680 = vrot.slane %v1678, 4
        %v1681 = vshll.u32 %v1416, 16
        %v1683 = vrot.slane %v1681, 5
        %v1684 = vor.u32 %v1680, %v1683
        %v1685 = vrot.slane %v1684, 4
        %v1687 = vshll.u32 %v1417, 16
        %v1689 = vrot.slane %v1687, 5
        %v1690 = vsel %vm1436, %v1685, %v1689
        %v1691 = vshrl.u32 %v1417, 16
        %v1693 = vrot.slane %v1691, 4
        %v1694 = vor.u32 %v1693, %v1689
        %v1695 = vrot.slane %v1694, 4
        %v1697 = vshll.u32 %v1418, 16
        %v1699 = vrot.slane %v1697, 5
        %v1700 = vsel %vm1436, %v1695, %v1699
        %v1702 = vshrl.u32 %v1419, 16
        %v1704 = vrot.slane %v1702, 4
        %v1705 = vshll.u32 %v1419, 16
        %v1707 = vrot.slane %v1705, 5
        %v1708 = vor.u32 %v1704, %v1707
        %v1709 = vrot.slane %v1708, 4
        %v1711 = vshll.u32 %v1420, 16
        %v1713 = vrot.slane %v1711, 5
        %v1714 = vsel %vm1436, %v1709, %v1713
        %v1715 = vshrl.u32 %v1420, 16
        %v1717 = vrot.slane %v1715, 4
        %v1718 = vor.u32 %v1717, %v1713
        %v1719 = vrot.slane %v1718, 4
        %v1721 = vshll.u32 %v1421, 16
        %v1723 = vrot.slane %v1721, 5
        %v1724 = vsel %vm1436, %v1719, %v1723
        %v1726 = vshrl.u32 %v1422, 16
        %v1728 = vrot.slane %v1726, 4
        %v1729 = vshll.u32 %v1422, 16
        %v1731 = vrot.slane %v1729, 5
        %v1732 = vor.u32 %v1728, %v1731
        %v1733 = vrot.slane %v1732, 4
        %v1735 = vshll.u32 %v1423, 16
        %v1737 = vrot.slane %v1735, 5
        %v1738 = vsel %vm1436, %v1733, %v1737
        %v1739 = vshrl.u32 %v1423, 16
        %v1741 = vrot.slane %v1739, 4
        %v1742 = vor.u32 %v1741, %v1737
        %v1743 = vrot.slane %v1742, 4
        %v1745 = vshll.u32 %v1424, 16
        %v1747 = vrot.slane %v1745, 5
        %v1748 = vsel %vm1436, %v1743, %v1747
        %v1750 = vshrl.u32 %v1425, 16
        %v1752 = vrot.slane %v1750, 4
        %v1753 = vshll.u32 %v1425, 16
        %v1755 = vrot.slane %v1753, 5
        %v1756 = vor.u32 %v1752, %v1755
        %v1757 = vrot.slane %v1756, 4
        %v1759 = vshll.u32 %v1426, 16
        %v1761 = vrot.slane %v1759, 5
        %v1762 = vsel %vm1436, %v1757, %v1761
        %v1763 = vshrl.u32 %v1426, 16
        %v1765 = vrot.slane %v1763, 4
        %v1766 = vor.u32 %v1765, %v1761
        %v1767 = vrot.slane %v1766, 4
        %v1769 = vshll.u32 %v1427, 16
        %v1771 = vrot.slane %v1769, 5
        %v1772 = vsel %vm1436, %v1767, %v1771
        %v1774 = vshrl.u32 %v1428, 16
        %v1776 = vrot.slane %v1774, 4
        %v1777 = vshll.u32 %v1428, 16
        %v1779 = vrot.slane %v1777, 5
        %v1780 = vor.u32 %v1776, %v1779
        %v1781 = vrot.slane %v1780, 4
        %v1783 = vshll.u32 %v1429, 16
        %v1785 = vrot.slane %v1783, 5
        %v1786 = vsel %vm1436, %v1781, %v1785
        %v1787 = vshrl.u32 %v1429, 16
        %v1789 = vrot.slane %v1787, 4
        %v1790 = vor.u32 %v1789, %v1785
        %v1791 = vrot.slane %v1790, 4
        %v1793 = vshll.u32 %v1430, 16
        %v1795 = vrot.slane %v1793, 5
        %v1796 = vsel %vm1436, %v1791, %v1795
        %v1798 = vshrl.u32 %v1431, 16
        %v1800 = vrot.slane %v1798, 4
        %v1801 = vshll.u32 %v1431, 16
        %v1803 = vrot.slane %v1801, 5
        %v1804 = vor.u32 %v1800, %v1803
        %v1805 = vrot.slane %v1804, 4
        %v1807 = vshll.u32 %v1432, 16
        %v1809 = vrot.slane %v1807, 5
        %v1810 = vsel %vm1436, %v1805, %v1809
        %v1811 = vshrl.u32 %v1432, 16
        %v1813 = vrot.slane %v1811, 4
        %v1814 = vor.u32 %v1813, %v1809
        %v1815 = vrot.slane %v1814, 4
        %v1817 = vshll.u32 %v1433, 16
        %v1819 = vrot.slane %v1817, 5
        %v1820 = vsel %vm1436, %v1815, %v1819
        %1821 = vrot.lane.b32.xlu0 %v1450, 32
        %v1822 = vpop.permute.xlu0 %1821
        %1823 = vrot.lane.b32.xlu0 %v1460, 32
        %v1824 = vpop.permute.xlu0 %1823
        %1825 = vrot.lane.b32.xlu0 %v1474, 32
        %v1826 = vpop.permute.xlu0 %1825
        %1827 = vrot.lane.b32.xlu0 %v1484, 32
        %v1828 = vpop.permute.xlu0 %1827
        %1829 = vrot.lane.b32.xlu0 %v1498, 32
        %v1830 = vpop.permute.xlu0 %1829
        %1831 = vrot.lane.b32.xlu0 %v1508, 32
        %v1832 = vpop.permute.xlu0 %1831
        %1833 = vrot.lane.b32.xlu0 %v1522, 32
        %v1834 = vpop.permute.xlu0 %1833
        %1835 = vrot.lane.b32.xlu0 %v1532, 32
        %v1836 = vpop.permute.xlu0 %1835
        %1837 = vrot.lane.b32.xlu0 %v1546, 32
        %v1838 = vpop.permute.xlu0 %1837
        %1839 = vrot.lane.b32.xlu0 %v1556, 32
        %v1840 = vpop.permute.xlu0 %1839
        %1841 = vrot.lane.b32.xlu0 %v1570, 32
        %v1842 = vpop.permute.xlu0 %1841
        %1843 = vrot.lane.b32.xlu0 %v1580, 32
        %v1844 = vpop.permute.xlu0 %1843
        %1845 = vrot.lane.b32.xlu0 %v1594, 32
        %v1846 = vpop.permute.xlu0 %1845
        %1847 = vrot.lane.b32.xlu0 %v1604, 32
        %v1848 = vpop.permute.xlu0 %1847
        %1849 = vrot.lane.b32.xlu0 %v1618, 32
        %v1850 = vpop.permute.xlu0 %1849
        %1851 = vrot.lane.b32.xlu0 %v1628, 32
        %v1852 = vpop.permute.xlu0 %1851
        %1853 = vrot.lane.b32.xlu0 %v1642, 32
        %v1854 = vpop.permute.xlu0 %1853
        %1855 = vrot.lane.b32.xlu0 %v1652, 32
        %v1856 = vpop.permute.xlu0 %1855
        %1857 = vrot.lane.b32.xlu0 %v1666, 32
        %v1858 = vpop.permute.xlu0 %1857
        %1859 = vrot.lane.b32.xlu0 %v1676, 32
        %v1860 = vpop.permute.xlu0 %1859
        %1861 = vrot.lane.b32.xlu0 %v1690, 32
        %v1862 = vpop.permute.xlu0 %1861
        %1863 = vrot.lane.b32.xlu0 %v1700, 32
        %v1864 = vpop.permute.xlu0 %1863
        %1865 = vrot.lane.b32.xlu0 %v1714, 32
        %v1866 = vpop.permute.xlu0 %1865
        %1867 = vrot.lane.b32.xlu0 %v1724, 32
        %v1868 = vpop.permute.xlu0 %1867
        %1869 = vrot.lane.b32.xlu0 %v1738, 32
        %v1870 = vpop.permute.xlu0 %1869
        %1871 = vrot.lane.b32.xlu0 %v1748, 32
        %v1872 = vpop.permute.xlu0 %1871
        %1873 = vrot.lane.b32.xlu0 %v1762, 32
        %v1874 = vpop.permute.xlu0 %1873
        %1875 = vrot.lane.b32.xlu0 %v1772, 32
        %v1876 = vpop.permute.xlu0 %1875
        %1877 = vrot.lane.b32.xlu0 %v1786, 32
        %v1878 = vpop.permute.xlu0 %1877
        %1879 = vrot.lane.b32.xlu0 %v1796, 32
        %v1880 = vpop.permute.xlu0 %1879
        %1881 = vrot.lane.b32.xlu0 %v1810, 32
        %v1882 = vpop.permute.xlu0 %1881
        %1883 = vrot.lane.b32.xlu0 %v1820, 32
        %v1884 = vpop.permute.xlu0 %1883
        %vm1917 = vcmask 519424
        %1918 = vst.msk [vmem:[#allocation3] sm:$0xf] %vm1917, %v1822
        %1919 = vst.msk [vmem:[#allocation3 + $0xc] sm:$0xf] %vm1917, %v1824
        %1920 = vst.msk [vmem:[#allocation3 + $0x18] sm:$0xf] %vm1917, %v1826
        %1921 = vst.msk [vmem:[#allocation3 + $0x24] sm:$0xf] %vm1917, %v1828
        %1922 = vst.msk [vmem:[#allocation3 + $0x30] sm:$0xf] %vm1917, %v1830
        %1923 = vst.msk [vmem:[#allocation3 + $0x3c] sm:$0xf] %vm1917, %v1832
        %1924 = vst.msk [vmem:[#allocation3 + $0x48] sm:$0xf] %vm1917, %v1834
        %1925 = vst.msk [vmem:[#allocation3 + $0x54] sm:$0xf] %vm1917, %v1836
        %1926 = vst.msk [vmem:[#allocation3 + $0x60] sm:$0xf] %vm1917, %v1838
        %1927 = vst.msk [vmem:[#allocation3 + $0x6c] sm:$0xf] %vm1917, %v1840
        %1928 = vst.msk [vmem:[#allocation3 + $0x78] sm:$0xf] %vm1917, %v1842
        %1929 = vst.msk [vmem:[#allocation3 + $0x84] sm:$0xf] %vm1917, %v1844
        %1930 = vst.msk [vmem:[#allocation3 + $0x90] sm:$0xf] %vm1917, %v1846
        %1931 = vst.msk [vmem:[#allocation3 + $0x9c] sm:$0xf] %vm1917, %v1848
        %1932 = vst.msk [vmem:[#allocation3 + $0xa8] sm:$0xf] %vm1917, %v1850
        %1933 = vst.msk [vmem:[#allocation3 + $0xb4] sm:$0xf] %vm1917, %v1852
        %1934 = vst.msk [vmem:[#allocation3 + $0xc0] sm:$0xf] %vm1917, %v1854
        %1935 = vst.msk [vmem:[#allocation3 + $0xcc] sm:$0xf] %vm1917, %v1856
        %1936 = vst.msk [vmem:[#allocation3 + $0xd8] sm:$0xf] %vm1917, %v1858
        %1937 = vst.msk [vmem:[#allocation3 + $0xe4] sm:$0xf] %vm1917, %v1860
        %1938 = vst.msk [vmem:[#allocation3 + $0xf0] sm:$0xf] %vm1917, %v1862
        %1939 = vst.msk [vmem:[#allocation3 + $0xfc] sm:$0xf] %vm1917, %v1864
        %1940 = vst.msk [vmem:[#allocation3 + $0x108] sm:$0xf] %vm1917, %v1866
        %1941 = vst.msk [vmem:[#allocation3 + $0x114] sm:$0xf] %vm1917, %v1868
        %1942 = vst.msk [vmem:[#allocation3 + $0x120] sm:$0xf] %vm1917, %v1870
        %1943 = vst.msk [vmem:[#allocation3 + $0x12c] sm:$0xf] %vm1917, %v1872
        %1944 = vst.msk [vmem:[#allocation3 + $0x138] sm:$0xf] %vm1917, %v1874
        %1945 = vst.msk [vmem:[#allocation3 + $0x144] sm:$0xf] %vm1917, %v1876
        %1946 = vst.msk [vmem:[#allocation3 + $0x150] sm:$0xf] %vm1917, %v1878
        %1947 = vst.msk [vmem:[#allocation3 + $0x15c] sm:$0xf] %vm1917, %v1880
        %1948 = vst.msk [vmem:[#allocation3 + $0x168] sm:$0xf] %vm1917, %v1882
        %1949 = vst.msk [vmem:[#allocation3 + $0x174] sm:$0xf] %vm1917, %v1884
        %v1950 = vld [vmem:[#allocation2] sm:$0xe]
        %v1951 = vld [vmem:[#allocation2 + $0x4] sm:$0xf]
        %v1952 = vld [vmem:[#allocation2 + $0x8] sm:$0x1]
        %v1953 = vld [vmem:[#allocation2 + $0xc] sm:$0xe]
        %v1954 = vld [vmem:[#allocation2 + $0x10] sm:$0xf]
        %v1955 = vld [vmem:[#allocation2 + $0x14] sm:$0x1]
        %v1956 = vld [vmem:[#allocation2 + $0x18] sm:$0xe]
        %v1957 = vld [vmem:[#allocation2 + $0x1c] sm:$0xf]
        %v1958 = vld [vmem:[#allocation2 + $0x20] sm:$0x1]
        %v1959 = vld [vmem:[#allocation2 + $0x24] sm:$0xe]
        %v1960 = vld [vmem:[#allocation2 + $0x28] sm:$0xf]
        %v1961 = vld [vmem:[#allocation2 + $0x2c] sm:$0x1]
        %v1962 = vld [vmem:[#allocation2 + $0x30] sm:$0xe]
        %v1963 = vld [vmem:[#allocation2 + $0x34] sm:$0xf]
        %v1964 = vld [vmem:[#allocation2 + $0x38] sm:$0x1]
        %v1965 = vld [vmem:[#allocation2 + $0x3c] sm:$0xe]
        %v1966 = vld [vmem:[#allocation2 + $0x40] sm:$0xf]
        %v1967 = vld [vmem:[#allocation2 + $0x44] sm:$0x1]
        %v1968 = vld [vmem:[#allocation2 + $0x48] sm:$0xe]
        %v1969 = vld [vmem:[#allocation2 + $0x4c] sm:$0xf]
        %v1970 = vld [vmem:[#allocation2 + $0x50] sm:$0x1]
        %v1971 = vld [vmem:[#allocation2 + $0x54] sm:$0xe]
        %v1972 = vld [vmem:[#allocation2 + $0x58] sm:$0xf]
        %v1973 = vld [vmem:[#allocation2 + $0x5c] sm:$0x1]
        %v1974 = vld [vmem:[#allocation2 + $0x60] sm:$0xe]
        %v1975 = vld [vmem:[#allocation2 + $0x64] sm:$0xf]
        %v1976 = vld [vmem:[#allocation2 + $0x68] sm:$0x1]
        %v1977 = vld [vmem:[#allocation2 + $0x6c] sm:$0xe]
        %v1978 = vld [vmem:[#allocation2 + $0x70] sm:$0xf]
        %v1979 = vld [vmem:[#allocation2 + $0x74] sm:$0x1]
        %v1980 = vld [vmem:[#allocation2 + $0x78] sm:$0xe]
        %v1981 = vld [vmem:[#allocation2 + $0x7c] sm:$0xf]
        %v1982 = vld [vmem:[#allocation2 + $0x80] sm:$0x1]
        %v1983 = vld [vmem:[#allocation2 + $0x84] sm:$0xe]
        %v1984 = vld [vmem:[#allocation2 + $0x88] sm:$0xf]
        %v1985 = vld [vmem:[#allocation2 + $0x8c] sm:$0x1]
        %v1986 = vld [vmem:[#allocation2 + $0x90] sm:$0xe]
        %v1987 = vld [vmem:[#allocation2 + $0x94] sm:$0xf]
        %v1988 = vld [vmem:[#allocation2 + $0x98] sm:$0x1]
        %v1989 = vld [vmem:[#allocation2 + $0x9c] sm:$0xe]
        %v1990 = vld [vmem:[#allocation2 + $0xa0] sm:$0xf]
        %v1991 = vld [vmem:[#allocation2 + $0xa4] sm:$0x1]
        %v1992 = vld [vmem:[#allocation2 + $0xa8] sm:$0xe]
        %v1993 = vld [vmem:[#allocation2 + $0xac] sm:$0xf]
        %v1994 = vld [vmem:[#allocation2 + $0xb0] sm:$0x1]
        %v1995 = vld [vmem:[#allocation2 + $0xb4] sm:$0xe]
        %v1996 = vld [vmem:[#allocation2 + $0xb8] sm:$0xf]
        %v1997 = vld [vmem:[#allocation2 + $0xbc] sm:$0x1]
        %vm2046 = vcmask 1042432
        %vm2047 = vcmask 1046532
        %vm2048 = vmor %vm2046, %vm2047
        %v2049 = vrot.slane %v1950, 5
        %v2050 = vrot.slane %v2049, 4
        %v2051 = vrot.slane %v1951, 5
        %v2052 = vsel %vm2048, %v2050, %v2051
        %v2053 = vrot.slane %v2051, 4
        %v2054 = vrot.slane %v1952, 5
        %v2055 = vsel %vm2048, %v2053, %v2054
        %v2056 = vrot.slane %v1953, 5
        %v2057 = vrot.slane %v2056, 4
        %v2058 = vrot.slane %v1954, 5
        %v2059 = vsel %vm2048, %v2057, %v2058
        %v2060 = vrot.slane %v2058, 4
        %v2061 = vrot.slane %v1955, 5
        %v2062 = vsel %vm2048, %v2060, %v2061
        %v2063 = vrot.slane %v1956, 5
        %v2064 = vrot.slane %v2063, 4
        %v2065 = vrot.slane %v1957, 5
        %v2066 = vsel %vm2048, %v2064, %v2065
        %v2067 = vrot.slane %v2065, 4
        %v2068 = vrot.slane %v1958, 5
        %v2069 = vsel %vm2048, %v2067, %v2068
        %v2070 = vrot.slane %v1959, 5
        %v2071 = vrot.slane %v2070, 4
        %v2072 = vrot.slane %v1960, 5
        %v2073 = vsel %vm2048, %v2071, %v2072
        %v2074 = vrot.slane %v2072, 4
        %v2075 = vrot.slane %v1961, 5
        %v2076 = vsel %vm2048, %v2074, %v2075
        %v2077 = vrot.slane %v1962, 5
        %v2078 = vrot.slane %v2077, 4
        %v2079 = vrot.slane %v1963, 5
        %v2080 = vsel %vm2048, %v2078, %v2079
        %v2081 = vrot.slane %v2079, 4
        %v2082 = vrot.slane %v1964, 5
        %v2083 = vsel %vm2048, %v2081, %v2082
        %v2084 = vrot.slane %v1965, 5
        %v2085 = vrot.slane %v2084, 4
        %v2086 = vrot.slane %v1966, 5
        %v2087 = vsel %vm2048, %v2085, %v2086
        %v2088 = vrot.slane %v2086, 4
        %v2089 = vrot.slane %v1967, 5
        %v2090 = vsel %vm2048, %v2088, %v2089
        %v2091 = vrot.slane %v1968, 5
        %v2092 = vrot.slane %v2091, 4
        %v2093 = vrot.slane %v1969, 5
        %v2094 = vsel %vm2048, %v2092, %v2093
        %v2095 = vrot.slane %v2093, 4
        %v2096 = vrot.slane %v1970, 5
        %v2097 = vsel %vm2048, %v2095, %v2096
        %v2098 = vrot.slane %v1971, 5
        %v2099 = vrot.slane %v2098, 4
        %v2100 = vrot.slane %v1972, 5
        %v2101 = vsel %vm2048, %v2099, %v2100
        %v2102 = vrot.slane %v2100, 4
        %v2103 = vrot.slane %v1973, 5
        %v2104 = vsel %vm2048, %v2102, %v2103
        %v2105 = vrot.slane %v1974, 5
        %v2106 = vrot.slane %v2105, 4
        %v2107 = vrot.slane %v1975, 5
        %v2108 = vsel %vm2048, %v2106, %v2107
        %v2109 = vrot.slane %v2107, 4
        %v2110 = vrot.slane %v1976, 5
        %v2111 = vsel %vm2048, %v2109, %v2110
        %v2112 = vrot.slane %v1977, 5
        %v2113 = vrot.slane %v2112, 4
        %v2114 = vrot.slane %v1978, 5
        %v2115 = vsel %vm2048, %v2113, %v2114
        %v2116 = vrot.slane %v2114, 4
        %v2117 = vrot.slane %v1979, 5
        %v2118 = vsel %vm2048, %v2116, %v2117
        %v2119 = vrot.slane %v1980, 5
        %v2120 = vrot.slane %v2119, 4
        %v2121 = vrot.slane %v1981, 5
        %v2122 = vsel %vm2048, %v2120, %v2121
        %v2123 = vrot.slane %v2121, 4
        %v2124 = vrot.slane %v1982, 5
        %v2125 = vsel %vm2048, %v2123, %v2124
        %v2126 = vrot.slane %v1983, 5
        %v2127 = vrot.slane %v2126, 4
        %v2128 = vrot.slane %v1984, 5
        %v2129 = vsel %vm2048, %v2127, %v2128
        %v2130 = vrot.slane %v2128, 4
        %v2131 = vrot.slane %v1985, 5
        %v2132 = vsel %vm2048, %v2130, %v2131
        %v2133 = vrot.slane %v1986, 5
        %v2134 = vrot.slane %v2133, 4
        %v2135 = vrot.slane %v1987, 5
        %v2136 = vsel %vm2048, %v2134, %v2135
        %v2137 = vrot.slane %v2135, 4
        %v2138 = vrot.slane %v1988, 5
        %v2139 = vsel %vm2048, %v2137, %v2138
        %v2140 = vrot.slane %v1989, 5
        %v2141 = vrot.slane %v2140, 4
        %v2142 = vrot.slane %v1990, 5
        %v2143 = vsel %vm2048, %v2141, %v2142
        %v2144 = vrot.slane %v2142, 4
        %v2145 = vrot.slane %v1991, 5
        %v2146 = vsel %vm2048, %v2144, %v2145
        %v2147 = vrot.slane %v1992, 5
        %v2148 = vrot.slane %v2147, 4
        %v2149 = vrot.slane %v1993, 5
        %v2150 = vsel %vm2048, %v2148, %v2149
        %v2151 = vrot.slane %v2149, 4
        %v2152 = vrot.slane %v1994, 5
        %v2153 = vsel %vm2048, %v2151, %v2152
        %v2154 = vrot.slane %v1995, 5
        %v2155 = vrot.slane %v2154, 4
        %v2156 = vrot.slane %v1996, 5
        %v2157 = vsel %vm2048, %v2155, %v2156
        %v2158 = vrot.slane %v2156, 4
        %v2159 = vrot.slane %v1997, 5
        %v2160 = vsel %vm2048, %v2158, %v2159
        %2161 = vrot.lane.b32.xlu0 %v2052, 64
        %v2162 = vpop.permute.xlu0 %2161
        %2163 = vrot.lane.b32.xlu0 %v2055, 64
        %v2164 = vpop.permute.xlu0 %2163
        %2165 = vrot.lane.b32.xlu0 %v2059, 64
        %v2166 = vpop.permute.xlu0 %2165
        %2167 = vrot.lane.b32.xlu0 %v2062, 64
        %v2168 = vpop.permute.xlu0 %2167
        %2169 = vrot.lane.b32.xlu0 %v2066, 64
        %v2170 = vpop.permute.xlu0 %2169
        %2171 = vrot.lane.b32.xlu0 %v2069, 64
        %v2172 = vpop.permute.xlu0 %2171
        %2173 = vrot.lane.b32.xlu0 %v2073, 64
        %v2174 = vpop.permute.xlu0 %2173
        %2175 = vrot.lane.b32.xlu0 %v2076, 64
        %v2176 = vpop.permute.xlu0 %2175
        %2177 = vrot.lane.b32.xlu0 %v2080, 64
        %v2178 = vpop.permute.xlu0 %2177
        %2179 = vrot.lane.b32.xlu0 %v2083, 64
        %v2180 = vpop.permute.xlu0 %2179
        %2181 = vrot.lane.b32.xlu0 %v2087, 64
        %v2182 = vpop.permute.xlu0 %2181
        %2183 = vrot.lane.b32.xlu0 %v2090, 64
        %v2184 = vpop.permute.xlu0 %2183
        %2185 = vrot.lane.b32.xlu0 %v2094, 64
        %v2186 = vpop.permute.xlu0 %2185
        %2187 = vrot.lane.b32.xlu0 %v2097, 64
        %v2188 = vpop.permute.xlu0 %2187
        %2189 = vrot.lane.b32.xlu0 %v2101, 64
        %v2190 = vpop.permute.xlu0 %2189
        %2191 = vrot.lane.b32.xlu0 %v2104, 64
        %v2192 = vpop.permute.xlu0 %2191
        %2193 = vrot.lane.b32.xlu0 %v2108, 64
        %v2194 = vpop.permute.xlu0 %2193
        %2195 = vrot.lane.b32.xlu0 %v2111, 64
        %v2196 = vpop.permute.xlu0 %2195
        %2197 = vrot.lane.b32.xlu0 %v2115, 64
        %v2198 = vpop.permute.xlu0 %2197
        %2199 = vrot.lane.b32.xlu0 %v2118, 64
        %v2200 = vpop.permute.xlu0 %2199
        %2201 = vrot.lane.b32.xlu0 %v2122, 64
        %v2202 = vpop.permute.xlu0 %2201
        %2203 = vrot.lane.b32.xlu0 %v2125, 64
        %v2204 = vpop.permute.xlu0 %2203
        %2205 = vrot.lane.b32.xlu0 %v2129, 64
        %v2206 = vpop.permute.xlu0 %2205
        %2207 = vrot.lane.b32.xlu0 %v2132, 64
        %v2208 = vpop.permute.xlu0 %2207
        %2209 = vrot.lane.b32.xlu0 %v2136, 64
        %v2210 = vpop.permute.xlu0 %2209
        %2211 = vrot.lane.b32.xlu0 %v2139, 64
        %v2212 = vpop.permute.xlu0 %2211
        %2213 = vrot.lane.b32.xlu0 %v2143, 64
        %v2214 = vpop.permute.xlu0 %2213
        %2215 = vrot.lane.b32.xlu0 %v2146, 64
        %v2216 = vpop.permute.xlu0 %2215
        %2217 = vrot.lane.b32.xlu0 %v2150, 64
        %v2218 = vpop.permute.xlu0 %2217
        %2219 = vrot.lane.b32.xlu0 %v2153, 64
        %v2220 = vpop.permute.xlu0 %2219
        %2221 = vrot.lane.b32.xlu0 %v2157, 64
        %v2222 = vpop.permute.xlu0 %2221
        %2223 = vrot.lane.b32.xlu0 %v2160, 64
        %v2224 = vpop.permute.xlu0 %2223
        %vm2257 = vcmask 781824
        %2258 = vst.msk [vmem:[#allocation3] sm:$0xf] %vm2257, %v2162
        %2259 = vst.msk [vmem:[#allocation3 + $0xc] sm:$0xf] %vm2257, %v2164
        %2260 = vst.msk [vmem:[#allocation3 + $0x18] sm:$0xf] %vm2257, %v2166
        %2261 = vst.msk [vmem:[#allocation3 + $0x24] sm:$0xf] %vm2257, %v2168
        %2262 = vst.msk [vmem:[#allocation3 + $0x30] sm:$0xf] %vm2257, %v2170
        %2263 = vst.msk [vmem:[#allocation3 + $0x3c] sm:$0xf] %vm2257, %v2172
        %2264 = vst.msk [vmem:[#allocation3 + $0x48] sm:$0xf] %vm2257, %v2174
        %2265 = vst.msk [vmem:[#allocation3 + $0x54] sm:$0xf] %vm2257, %v2176
        %2266 = vst.msk [vmem:[#allocation3 + $0x60] sm:$0xf] %vm2257, %v2178
        %2267 = vst.msk [vmem:[#allocation3 + $0x6c] sm:$0xf] %vm2257, %v2180
        %2268 = vst.msk [vmem:[#allocation3 + $0x78] sm:$0xf] %vm2257, %v2182
        %2269 = vst.msk [vmem:[#allocation3 + $0x84] sm:$0xf] %vm2257, %v2184
        %2270 = vst.msk [vmem:[#allocation3 + $0x90] sm:$0xf] %vm2257, %v2186
        %2271 = vst.msk [vmem:[#allocation3 + $0x9c] sm:$0xf] %vm2257, %v2188
        %2272 = vst.msk [vmem:[#allocation3 + $0xa8] sm:$0xf] %vm2257, %v2190
        %2273 = vst.msk [vmem:[#allocation3 + $0xb4] sm:$0xf] %vm2257, %v2192
        %2274 = vst.msk [vmem:[#allocation3 + $0xc0] sm:$0xf] %vm2257, %v2194
        %2275 = vst.msk [vmem:[#allocation3 + $0xcc] sm:$0xf] %vm2257, %v2196
        %2276 = vst.msk [vmem:[#allocation3 + $0xd8] sm:$0xf] %vm2257, %v2198
        %2277 = vst.msk [vmem:[#allocation3 + $0xe4] sm:$0xf] %vm2257, %v2200
        %2278 = vst.msk [vmem:[#allocation3 + $0xf0] sm:$0xf] %vm2257, %v2202
        %2279 = vst.msk [vmem:[#allocation3 + $0xfc] sm:$0xf] %vm2257, %v2204
        %2280 = vst.msk [vmem:[#allocation3 + $0x108] sm:$0xf] %vm2257, %v2206
        %2281 = vst.msk [vmem:[#allocation3 + $0x114] sm:$0xf] %vm2257, %v2208
        %2282 = vst.msk [vmem:[#allocation3 + $0x120] sm:$0xf] %vm2257, %v2210
        %2283 = vst.msk [vmem:[#allocation3 + $0x12c] sm:$0xf] %vm2257, %v2212
        %2284 = vst.msk [vmem:[#allocation3 + $0x138] sm:$0xf] %vm2257, %v2214
        %2285 = vst.msk [vmem:[#allocation3 + $0x144] sm:$0xf] %vm2257, %v2216
        %2286 = vst.msk [vmem:[#allocation3 + $0x150] sm:$0xf] %vm2257, %v2218
        %2287 = vst.msk [vmem:[#allocation3 + $0x15c] sm:$0xf] %vm2257, %v2220
        %2288 = vst.msk [vmem:[#allocation3 + $0x168] sm:$0xf] %vm2257, %v2222
        %2289 = vst.msk [vmem:[#allocation3 + $0x174] sm:$0xf] %vm2257, %v2224
        %v2290 = vld [vmem:[%s1204] sm:$0xf]
        %v2291 = vld [vmem:[%s1204 + $0x4] sm:$0xf]
        %v2292 = vld [vmem:[%s1204 + $0xc] sm:$0xf]
        %v2293 = vld [vmem:[%s1204 + $0x10] sm:$0xf]
        %v2294 = vld [vmem:[%s1204 + $0x18] sm:$0xf]
        %v2295 = vld [vmem:[%s1204 + $0x1c] sm:$0xf]
        %v2296 = vld [vmem:[%s1204 + $0x24] sm:$0xf]
        %v2297 = vld [vmem:[%s1204 + $0x28] sm:$0xf]
        %v2298 = vld [vmem:[%s1204 + $0x30] sm:$0xf]
        %v2299 = vld [vmem:[%s1204 + $0x34] sm:$0xf]
        %v2300 = vld [vmem:[%s1204 + $0x3c] sm:$0xf]
        %v2301 = vld [vmem:[%s1204 + $0x40] sm:$0xf]
        %v2302 = vld [vmem:[%s1204 + $0x48] sm:$0xf]
        %v2303 = vld [vmem:[%s1204 + $0x4c] sm:$0xf]
        %v2304 = vld [vmem:[%s1204 + $0x54] sm:$0xf]
        %v2305 = vld [vmem:[%s1204 + $0x58] sm:$0xf]
        %v2306 = vld [vmem:[%s1204 + $0x60] sm:$0xf]
        %v2307 = vld [vmem:[%s1204 + $0x64] sm:$0xf]
        %v2308 = vld [vmem:[%s1204 + $0x6c] sm:$0xf]
        %v2309 = vld [vmem:[%s1204 + $0x70] sm:$0xf]
        %v2310 = vld [vmem:[%s1204 + $0x78] sm:$0xf]
        %v2311 = vld [vmem:[%s1204 + $0x7c] sm:$0xf]
        %v2312 = vld [vmem:[%s1204 + $0x84] sm:$0xf]
        %v2313 = vld [vmem:[%s1204 + $0x88] sm:$0xf]
        %v2314 = vld [vmem:[%s1204 + $0x90] sm:$0xf]
        %v2315 = vld [vmem:[%s1204 + $0x94] sm:$0xf]
        %v2316 = vld [vmem:[%s1204 + $0x9c] sm:$0xf]
        %v2317 = vld [vmem:[%s1204 + $0xa0] sm:$0xf]
        %v2318 = vld [vmem:[%s1204 + $0xa8] sm:$0xf]
        %v2319 = vld [vmem:[%s1204 + $0xac] sm:$0xf]
        %v2320 = vld [vmem:[%s1204 + $0xb4] sm:$0xf]
        %v2321 = vld [vmem:[%s1204 + $0xb8] sm:$0xf]
        %2354 = vrot.lane.b32.xlu0 %v2290, 96
        %v2355 = vpop.permute.xlu0 %2354
        %2356 = vrot.lane.b32.xlu0 %v2291, 96
        %v2357 = vpop.permute.xlu0 %2356
        %2358 = vrot.lane.b32.xlu0 %v2292, 96
        %v2359 = vpop.permute.xlu0 %2358
        %2360 = vrot.lane.b32.xlu0 %v2293, 96
        %v2361 = vpop.permute.xlu0 %2360
        %2362 = vrot.lane.b32.xlu0 %v2294, 96
        %v2363 = vpop.permute.xlu0 %2362
        %2364 = vrot.lane.b32.xlu0 %v2295, 96
        %v2365 = vpop.permute.xlu0 %2364
        %2366 = vrot.lane.b32.xlu0 %v2296, 96
        %v2367 = vpop.permute.xlu0 %2366
        %2368 = vrot.lane.b32.xlu0 %v2297, 96
        %v2369 = vpop.permute.xlu0 %2368
        %2370 = vrot.lane.b32.xlu0 %v2298, 96
        %v2371 = vpop.permute.xlu0 %2370
        %2372 = vrot.lane.b32.xlu0 %v2299, 96
        %v2373 = vpop.permute.xlu0 %2372
        %2374 = vrot.lane.b32.xlu0 %v2300, 96
        %v2375 = vpop.permute.xlu0 %2374
        %2376 = vrot.lane.b32.xlu0 %v2301, 96
        %v2377 = vpop.permute.xlu0 %2376
        %2378 = vrot.lane.b32.xlu0 %v2302, 96
        %v2379 = vpop.permute.xlu0 %2378
        %2380 = vrot.lane.b32.xlu0 %v2303, 96
        %v2381 = vpop.permute.xlu0 %2380
        %2382 = vrot.lane.b32.xlu0 %v2304, 96
        %v2383 = vpop.permute.xlu0 %2382
        %2384 = vrot.lane.b32.xlu0 %v2305, 96
        %v2385 = vpop.permute.xlu0 %2384
        %2386 = vrot.lane.b32.xlu0 %v2306, 96
        %v2387 = vpop.permute.xlu0 %2386
        %2388 = vrot.lane.b32.xlu0 %v2307, 96
        %v2389 = vpop.permute.xlu0 %2388
        %2390 = vrot.lane.b32.xlu0 %v2308, 96
        %v2391 = vpop.permute.xlu0 %2390
        %2392 = vrot.lane.b32.xlu0 %v2309, 96
        %v2393 = vpop.permute.xlu0 %2392
        %2394 = vrot.lane.b32.xlu0 %v2310, 96
        %v2395 = vpop.permute.xlu0 %2394
        %2396 = vrot.lane.b32.xlu0 %v2311, 96
        %v2397 = vpop.permute.xlu0 %2396
        %2398 = vrot.lane.b32.xlu0 %v2312, 96
        %v2399 = vpop.permute.xlu0 %2398
        %2400 = vrot.lane.b32.xlu0 %v2313, 96
        %v2401 = vpop.permute.xlu0 %2400
        %2402 = vrot.lane.b32.xlu0 %v2314, 96
        %v2403 = vpop.permute.xlu0 %2402
        %2404 = vrot.lane.b32.xlu0 %v2315, 96
        %v2405 = vpop.permute.xlu0 %2404
        %2406 = vrot.lane.b32.xlu0 %v2316, 96
        %v2407 = vpop.permute.xlu0 %2406
        %2408 = vrot.lane.b32.xlu0 %v2317, 96
        %v2409 = vpop.permute.xlu0 %2408
        %2410 = vrot.lane.b32.xlu0 %v2318, 96
        %v2411 = vpop.permute.xlu0 %2410
        %2412 = vrot.lane.b32.xlu0 %v2319, 96
        %v2413 = vpop.permute.xlu0 %2412
        %2414 = vrot.lane.b32.xlu0 %v2320, 96
        %v2415 = vpop.permute.xlu0 %2414
        %2416 = vrot.lane.b32.xlu0 %v2321, 96
        %v2417 = vpop.permute.xlu0 %2416
        %vm2450 = vcmask 1044224
        %2451 = vst.msk [vmem:[#allocation3] sm:$0xf] %vm2450, %v2355
        %2452 = vst.msk [vmem:[#allocation3 + $0xc] sm:$0xf] %vm2450, %v2357
        %2453 = vst.msk [vmem:[#allocation3 + $0x18] sm:$0xf] %vm2450, %v2359
        %2454 = vst.msk [vmem:[#allocation3 + $0x24] sm:$0xf] %vm2450, %v2361
        %2455 = vst.msk [vmem:[#allocation3 + $0x30] sm:$0xf] %vm2450, %v2363
        %2456 = vst.msk [vmem:[#allocation3 + $0x3c] sm:$0xf] %vm2450, %v2365
        %2457 = vst.msk [vmem:[#allocation3 + $0x48] sm:$0xf] %vm2450, %v2367
        %2458 = vst.msk [vmem:[#allocation3 + $0x54] sm:$0xf] %vm2450, %v2369
        %2459 = vst.msk [vmem:[#allocation3 + $0x60] sm:$0xf] %vm2450, %v2371
        %2460 = vst.msk [vmem:[#allocation3 + $0x6c] sm:$0xf] %vm2450, %v2373
        %2461 = vst.msk [vmem:[#allocation3 + $0x78] sm:$0xf] %vm2450, %v2375
        %2462 = vst.msk [vmem:[#allocation3 + $0x84] sm:$0xf] %vm2450, %v2377
        %2463 = vst.msk [vmem:[#allocation3 + $0x90] sm:$0xf] %vm2450, %v2379
        %2464 = vst.msk [vmem:[#allocation3 + $0x9c] sm:$0xf] %vm2450, %v2381
        %2465 = vst.msk [vmem:[#allocation3 + $0xa8] sm:$0xf] %vm2450, %v2383
        %2466 = vst.msk [vmem:[#allocation3 + $0xb4] sm:$0xf] %vm2450, %v2385
        %2467 = vst.msk [vmem:[#allocation3 + $0xc0] sm:$0xf] %vm2450, %v2387
        %2468 = vst.msk [vmem:[#allocation3 + $0xcc] sm:$0xf] %vm2450, %v2389
        %2469 = vst.msk [vmem:[#allocation3 + $0xd8] sm:$0xf] %vm2450, %v2391
        %2470 = vst.msk [vmem:[#allocation3 + $0xe4] sm:$0xf] %vm2450, %v2393
        %2471 = vst.msk [vmem:[#allocation3 + $0xf0] sm:$0xf] %vm2450, %v2395
        %2472 = vst.msk [vmem:[#allocation3 + $0xfc] sm:$0xf] %vm2450, %v2397
        %2473 = vst.msk [vmem:[#allocation3 + $0x108] sm:$0xf] %vm2450, %v2399
        %2474 = vst.msk [vmem:[#allocation3 + $0x114] sm:$0xf] %vm2450, %v2401
        %2475 = vst.msk [vmem:[#allocation3 + $0x120] sm:$0xf] %vm2450, %v2403
        %2476 = vst.msk [vmem:[#allocation3 + $0x12c] sm:$0xf] %vm2450, %v2405
        %2477 = vst.msk [vmem:[#allocation3 + $0x138] sm:$0xf] %vm2450, %v2407
        %2478 = vst.msk [vmem:[#allocation3 + $0x144] sm:$0xf] %vm2450, %v2409
        %2479 = vst.msk [vmem:[#allocation3 + $0x150] sm:$0xf] %vm2450, %v2411
        %2480 = vst.msk [vmem:[#allocation3 + $0x15c] sm:$0xf] %vm2450, %v2413
        %2481 = vst.msk [vmem:[#allocation3 + $0x168] sm:$0xf] %vm2450, %v2415
        %2482 = vst.msk [vmem:[#allocation3 + $0x174] sm:$0xf] %vm2450, %v2417
        %v2483 = vld [vmem:[%s1204] sm:$0xf]
        %v2484 = vld [vmem:[%s1204 + $0x4] sm:$0xf]
        %v2485 = vld [vmem:[%s1204 + $0x8] sm:$0x1]
        %v2486 = vld [vmem:[%s1204 + $0xc] sm:$0xf]
        %v2487 = vld [vmem:[%s1204 + $0x10] sm:$0xf]
        %v2488 = vld [vmem:[%s1204 + $0x14] sm:$0x1]
        %v2489 = vld [vmem:[%s1204 + $0x18] sm:$0xf]
        %v2490 = vld [vmem:[%s1204 + $0x1c] sm:$0xf]
        %v2491 = vld [vmem:[%s1204 + $0x20] sm:$0x1]
        %v2492 = vld [vmem:[%s1204 + $0x24] sm:$0xf]
        %v2493 = vld [vmem:[%s1204 + $0x28] sm:$0xf]
        %v2494 = vld [vmem:[%s1204 + $0x2c] sm:$0x1]
        %v2495 = vld [vmem:[%s1204 + $0x30] sm:$0xf]
        %v2496 = vld [vmem:[%s1204 + $0x34] sm:$0xf]
        %v2497 = vld [vmem:[%s1204 + $0x38] sm:$0x1]
        %v2498 = vld [vmem:[%s1204 + $0x3c] sm:$0xf]
        %v2499 = vld [vmem:[%s1204 + $0x40] sm:$0xf]
        %v2500 = vld [vmem:[%s1204 + $0x44] sm:$0x1]
        %v2501 = vld [vmem:[%s1204 + $0x48] sm:$0xf]
        %v2502 = vld [vmem:[%s1204 + $0x4c] sm:$0xf]
        %v2503 = vld [vmem:[%s1204 + $0x50] sm:$0x1]
        %v2504 = vld [vmem:[%s1204 + $0x54] sm:$0xf]
        %v2505 = vld [vmem:[%s1204 + $0x58] sm:$0xf]
        %v2506 = vld [vmem:[%s1204 + $0x5c] sm:$0x1]
        %v2507 = vld [vmem:[%s1204 + $0x60] sm:$0xf]
        %v2508 = vld [vmem:[%s1204 + $0x64] sm:$0xf]
        %v2509 = vld [vmem:[%s1204 + $0x68] sm:$0x1]
        %v2510 = vld [vmem:[%s1204 + $0x6c] sm:$0xf]
        %v2511 = vld [vmem:[%s1204 + $0x70] sm:$0xf]
        %v2512 = vld [vmem:[%s1204 + $0x74] sm:$0x1]
        %v2513 = vld [vmem:[%s1204 + $0x78] sm:$0xf]
        %v2514 = vld [vmem:[%s1204 + $0x7c] sm:$0xf]
        %v2515 = vld [vmem:[%s1204 + $0x80] sm:$0x1]
        %v2516 = vld [vmem:[%s1204 + $0x84] sm:$0xf]
        %v2517 = vld [vmem:[%s1204 + $0x88] sm:$0xf]
        %v2518 = vld [vmem:[%s1204 + $0x8c] sm:$0x1]
        %v2519 = vld [vmem:[%s1204 + $0x90] sm:$0xf]
        %v2520 = vld [vmem:[%s1204 + $0x94] sm:$0xf]
        %v2521 = vld [vmem:[%s1204 + $0x98] sm:$0x1]
        %v2522 = vld [vmem:[%s1204 + $0x9c] sm:$0xf]
        %v2523 = vld [vmem:[%s1204 + $0xa0] sm:$0xf]
        %v2524 = vld [vmem:[%s1204 + $0xa4] sm:$0x1]
        %v2525 = vld [vmem:[%s1204 + $0xa8] sm:$0xf]
        %v2526 = vld [vmem:[%s1204 + $0xac] sm:$0xf]
        %v2527 = vld [vmem:[%s1204 + $0xb0] sm:$0x1]
        %v2528 = vld [vmem:[%s1204 + $0xb4] sm:$0xf]
        %v2529 = vld [vmem:[%s1204 + $0xb8] sm:$0xf]
        %v2530 = vld [vmem:[%s1204 + $0xbc] sm:$0x1]
        %v2532 = vshrl.u32 %v2483, 16
        %v2534 = vrot.slane %v2532, 4
        %v2535 = vshll.u32 %v2483, 16
        %v2537 = vrot.slane %v2535, 5
        %v2538 = vor.u32 %v2534, %v2537
        %v2539 = vrot.slane %v2538, 4
        %v2541 = vshll.u32 %v2484, 16
        %v2543 = vrot.slane %v2541, 5
        %v2544 = vsel %vm1436, %v2539, %v2543
        %v2545 = vshrl.u32 %v2484, 16
        %v2547 = vrot.slane %v2545, 4
        %v2548 = vor.u32 %v2547, %v2543
        %v2549 = vrot.slane %v2548, 4
        %v2551 = vshll.u32 %v2485, 16
        %v2553 = vrot.slane %v2551, 5
        %v2554 = vsel %vm1436, %v2549, %v2553
        %v2556 = vshrl.u32 %v2486, 16
        %v2558 = vrot.slane %v2556, 4
        %v2559 = vshll.u32 %v2486, 16
        %v2561 = vrot.slane %v2559, 5
        %v2562 = vor.u32 %v2558, %v2561
        %v2563 = vrot.slane %v2562, 4
        %v2565 = vshll.u32 %v2487, 16
        %v2567 = vrot.slane %v2565, 5
        %v2568 = vsel %vm1436, %v2563, %v2567
        %v2569 = vshrl.u32 %v2487, 16
        %v2571 = vrot.slane %v2569, 4
        %v2572 = vor.u32 %v2571, %v2567
        %v2573 = vrot.slane %v2572, 4
        %v2575 = vshll.u32 %v2488, 16
        %v2577 = vrot.slane %v2575, 5
        %v2578 = vsel %vm1436, %v2573, %v2577
        %v2580 = vshrl.u32 %v2489, 16
        %v2582 = vrot.slane %v2580, 4
        %v2583 = vshll.u32 %v2489, 16
        %v2585 = vrot.slane %v2583, 5
        %v2586 = vor.u32 %v2582, %v2585
        %v2587 = vrot.slane %v2586, 4
        %v2589 = vshll.u32 %v2490, 16
        %v2591 = vrot.slane %v2589, 5
        %v2592 = vsel %vm1436, %v2587, %v2591
        %v2593 = vshrl.u32 %v2490, 16
        %v2595 = vrot.slane %v2593, 4
        %v2596 = vor.u32 %v2595, %v2591
        %v2597 = vrot.slane %v2596, 4
        %v2599 = vshll.u32 %v2491, 16
        %v2601 = vrot.slane %v2599, 5
        %v2602 = vsel %vm1436, %v2597, %v2601
        %v2604 = vshrl.u32 %v2492, 16
        %v2606 = vrot.slane %v2604, 4
        %v2607 = vshll.u32 %v2492, 16
        %v2609 = vrot.slane %v2607, 5
        %v2610 = vor.u32 %v2606, %v2609
        %v2611 = vrot.slane %v2610, 4
        %v2613 = vshll.u32 %v2493, 16
        %v2615 = vrot.slane %v2613, 5
        %v2616 = vsel %vm1436, %v2611, %v2615
        %v2617 = vshrl.u32 %v2493, 16
        %v2619 = vrot.slane %v2617, 4
        %v2620 = vor.u32 %v2619, %v2615
        %v2621 = vrot.slane %v2620, 4
        %v2623 = vshll.u32 %v2494, 16
        %v2625 = vrot.slane %v2623, 5
        %v2626 = vsel %vm1436, %v2621, %v2625
        %v2628 = vshrl.u32 %v2495, 16
        %v2630 = vrot.slane %v2628, 4
        %v2631 = vshll.u32 %v2495, 16
        %v2633 = vrot.slane %v2631, 5
        %v2634 = vor.u32 %v2630, %v2633
        %v2635 = vrot.slane %v2634, 4
        %v2637 = vshll.u32 %v2496, 16
        %v2639 = vrot.slane %v2637, 5
        %v2640 = vsel %vm1436, %v2635, %v2639
        %v2641 = vshrl.u32 %v2496, 16
        %v2643 = vrot.slane %v2641, 4
        %v2644 = vor.u32 %v2643, %v2639
        %v2645 = vrot.slane %v2644, 4
        %v2647 = vshll.u32 %v2497, 16
        %v2649 = vrot.slane %v2647, 5
        %v2650 = vsel %vm1436, %v2645, %v2649
        %v2652 = vshrl.u32 %v2498, 16
        %v2654 = vrot.slane %v2652, 4
        %v2655 = vshll.u32 %v2498, 16
        %v2657 = vrot.slane %v2655, 5
        %v2658 = vor.u32 %v2654, %v2657
        %v2659 = vrot.slane %v2658, 4
        %v2661 = vshll.u32 %v2499, 16
        %v2663 = vrot.slane %v2661, 5
        %v2664 = vsel %vm1436, %v2659, %v2663
        %v2665 = vshrl.u32 %v2499, 16
        %v2667 = vrot.slane %v2665, 4
        %v2668 = vor.u32 %v2667, %v2663
        %v2669 = vrot.slane %v2668, 4
        %v2671 = vshll.u32 %v2500, 16
        %v2673 = vrot.slane %v2671, 5
        %v2674 = vsel %vm1436, %v2669, %v2673
        %v2676 = vshrl.u32 %v2501, 16
        %v2678 = vrot.slane %v2676, 4
        %v2679 = vshll.u32 %v2501, 16
        %v2681 = vrot.slane %v2679, 5
        %v2682 = vor.u32 %v2678, %v2681
        %v2683 = vrot.slane %v2682, 4
        %v2685 = vshll.u32 %v2502, 16
        %v2687 = vrot.slane %v2685, 5
        %v2688 = vsel %vm1436, %v2683, %v2687
        %v2689 = vshrl.u32 %v2502, 16
        %v2691 = vrot.slane %v2689, 4
        %v2692 = vor.u32 %v2691, %v2687
        %v2693 = vrot.slane %v2692, 4
        %v2695 = vshll.u32 %v2503, 16
        %v2697 = vrot.slane %v2695, 5
        %v2698 = vsel %vm1436, %v2693, %v2697
        %v2700 = vshrl.u32 %v2504, 16
        %v2702 = vrot.slane %v2700, 4
        %v2703 = vshll.u32 %v2504, 16
        %v2705 = vrot.slane %v2703, 5
        %v2706 = vor.u32 %v2702, %v2705
        %v2707 = vrot.slane %v2706, 4
        %v2709 = vshll.u32 %v2505, 16
        %v2711 = vrot.slane %v2709, 5
        %v2712 = vsel %vm1436, %v2707, %v2711
        %v2713 = vshrl.u32 %v2505, 16
        %v2715 = vrot.slane %v2713, 4
        %v2716 = vor.u32 %v2715, %v2711
        %v2717 = vrot.slane %v2716, 4
        %v2719 = vshll.u32 %v2506, 16
        %v2721 = vrot.slane %v2719, 5
        %v2722 = vsel %vm1436, %v2717, %v2721
        %v2724 = vshrl.u32 %v2507, 16
        %v2726 = vrot.slane %v2724, 4
        %v2727 = vshll.u32 %v2507, 16
        %v2729 = vrot.slane %v2727, 5
        %v2730 = vor.u32 %v2726, %v2729
        %v2731 = vrot.slane %v2730, 4
        %v2733 = vshll.u32 %v2508, 16
        %v2735 = vrot.slane %v2733, 5
        %v2736 = vsel %vm1436, %v2731, %v2735
        %v2737 = vshrl.u32 %v2508, 16
        %v2739 = vrot.slane %v2737, 4
        %v2740 = vor.u32 %v2739, %v2735
        %v2741 = vrot.slane %v2740, 4
        %v2743 = vshll.u32 %v2509, 16
        %v2745 = vrot.slane %v2743, 5
        %v2746 = vsel %vm1436, %v2741, %v2745
        %v2748 = vshrl.u32 %v2510, 16
        %v2750 = vrot.slane %v2748, 4
        %v2751 = vshll.u32 %v2510, 16
        %v2753 = vrot.slane %v2751, 5
        %v2754 = vor.u32 %v2750, %v2753
        %v2755 = vrot.slane %v2754, 4
        %v2757 = vshll.u32 %v2511, 16
        %v2759 = vrot.slane %v2757, 5
        %v2760 = vsel %vm1436, %v2755, %v2759
        %v2761 = vshrl.u32 %v2511, 16
        %v2763 = vrot.slane %v2761, 4
        %v2764 = vor.u32 %v2763, %v2759
        %v2765 = vrot.slane %v2764, 4
        %v2767 = vshll.u32 %v2512, 16
        %v2769 = vrot.slane %v2767, 5
        %v2770 = vsel %vm1436, %v2765, %v2769
        %v2772 = vshrl.u32 %v2513, 16
        %v2774 = vrot.slane %v2772, 4
        %v2775 = vshll.u32 %v2513, 16
        %v2777 = vrot.slane %v2775, 5
        %v2778 = vor.u32 %v2774, %v2777
        %v2779 = vrot.slane %v2778, 4
        %v2781 = vshll.u32 %v2514, 16
        %v2783 = vrot.slane %v2781, 5
        %v2784 = vsel %vm1436, %v2779, %v2783
        %v2785 = vshrl.u32 %v2514, 16
        %v2787 = vrot.slane %v2785, 4
        %v2788 = vor.u32 %v2787, %v2783
        %v2789 = vrot.slane %v2788, 4
        %v2791 = vshll.u32 %v2515, 16
        %v2793 = vrot.slane %v2791, 5
        %v2794 = vsel %vm1436, %v2789, %v2793
        %v2796 = vshrl.u32 %v2516, 16
        %v2798 = vrot.slane %v2796, 4
        %v2799 = vshll.u32 %v2516, 16
        %v2801 = vrot.slane %v2799, 5
        %v2802 = vor.u32 %v2798, %v2801
        %v2803 = vrot.slane %v2802, 4
        %v2805 = vshll.u32 %v2517, 16
        %v2807 = vrot.slane %v2805, 5
        %v2808 = vsel %vm1436, %v2803, %v2807
        %v2809 = vshrl.u32 %v2517, 16
        %v2811 = vrot.slane %v2809, 4
        %v2812 = vor.u32 %v2811, %v2807
        %v2813 = vrot.slane %v2812, 4
        %v2815 = vshll.u32 %v2518, 16
        %v2817 = vrot.slane %v2815, 5
        %v2818 = vsel %vm1436, %v2813, %v2817
        %v2820 = vshrl.u32 %v2519, 16
        %v2822 = vrot.slane %v2820, 4
        %v2823 = vshll.u32 %v2519, 16
        %v2825 = vrot.slane %v2823, 5
        %v2826 = vor.u32 %v2822, %v2825
        %v2827 = vrot.slane %v2826, 4
        %v2829 = vshll.u32 %v2520, 16
        %v2831 = vrot.slane %v2829, 5
        %v2832 = vsel %vm1436, %v2827, %v2831
        %v2833 = vshrl.u32 %v2520, 16
        %v2835 = vrot.slane %v2833, 4
        %v2836 = vor.u32 %v2835, %v2831
        %v2837 = vrot.slane %v2836, 4
        %v2839 = vshll.u32 %v2521, 16
        %v2841 = vrot.slane %v2839, 5
        %v2842 = vsel %vm1436, %v2837, %v2841
        %v2844 = vshrl.u32 %v2522, 16
        %v2846 = vrot.slane %v2844, 4
        %v2847 = vshll.u32 %v2522, 16
        %v2849 = vrot.slane %v2847, 5
        %v2850 = vor.u32 %v2846, %v2849
        %v2851 = vrot.slane %v2850, 4
        %v2853 = vshll.u32 %v2523, 16
        %v2855 = vrot.slane %v2853, 5
        %v2856 = vsel %vm1436, %v2851, %v2855
        %v2857 = vshrl.u32 %v2523, 16
        %v2859 = vrot.slane %v2857, 4
        %v2860 = vor.u32 %v2859, %v2855
        %v2861 = vrot.slane %v2860, 4
        %v2863 = vshll.u32 %v2524, 16
        %v2865 = vrot.slane %v2863, 5
        %v2866 = vsel %vm1436, %v2861, %v2865
        %v2868 = vshrl.u32 %v2525, 16
        %v2870 = vrot.slane %v2868, 4
        %v2871 = vshll.u32 %v2525, 16
        %v2873 = vrot.slane %v2871, 5
        %v2874 = vor.u32 %v2870, %v2873
        %v2875 = vrot.slane %v2874, 4
        %v2877 = vshll.u32 %v2526, 16
        %v2879 = vrot.slane %v2877, 5
        %v2880 = vsel %vm1436, %v2875, %v2879
        %v2881 = vshrl.u32 %v2526, 16
        %v2883 = vrot.slane %v2881, 4
        %v2884 = vor.u32 %v2883, %v2879
        %v2885 = vrot.slane %v2884, 4
        %v2887 = vshll.u32 %v2527, 16
        %v2889 = vrot.slane %v2887, 5
        %v2890 = vsel %vm1436, %v2885, %v2889
        %v2892 = vshrl.u32 %v2528, 16
        %v2894 = vrot.slane %v2892, 4
        %v2895 = vshll.u32 %v2528, 16
        %v2897 = vrot.slane %v2895, 5
        %v2898 = vor.u32 %v2894, %v2897
        %v2899 = vrot.slane %v2898, 4
        %v2901 = vshll.u32 %v2529, 16
        %v2903 = vrot.slane %v2901, 5
        %v2904 = vsel %vm1436, %v2899, %v2903
        %v2905 = vshrl.u32 %v2529, 16
        %v2907 = vrot.slane %v2905, 4
        %v2908 = vor.u32 %v2907, %v2903
        %v2909 = vrot.slane %v2908, 4
        %v2911 = vshll.u32 %v2530, 16
        %v2913 = vrot.slane %v2911, 5
        %v2914 = vsel %vm1436, %v2909, %v2913
        %2947 = vst.msk [vmem:[#allocation3 + $0x4] sm:$0xf] %vm745, %v2544
        %2948 = vst.msk [vmem:[#allocation3 + $0x10] sm:$0xf] %vm745, %v2554
        %2949 = vst.msk [vmem:[#allocation3 + $0x1c] sm:$0xf] %vm745, %v2568
        %2950 = vst.msk [vmem:[#allocation3 + $0x28] sm:$0xf] %vm745, %v2578
        %2951 = vst.msk [vmem:[#allocation3 + $0x34] sm:$0xf] %vm745, %v2592
        %2952 = vst.msk [vmem:[#allocation3 + $0x40] sm:$0xf] %vm745, %v2602
        %2953 = vst.msk [vmem:[#allocation3 + $0x4c] sm:$0xf] %vm745, %v2616
        %2954 = vst.msk [vmem:[#allocation3 + $0x58] sm:$0xf] %vm745, %v2626
        %2955 = vst.msk [vmem:[#allocation3 + $0x64] sm:$0xf] %vm745, %v2640
        %2956 = vst.msk [vmem:[#allocation3 + $0x70] sm:$0xf] %vm745, %v2650
        %2957 = vst.msk [vmem:[#allocation3 + $0x7c] sm:$0xf] %vm745, %v2664
        %2958 = vst.msk [vmem:[#allocation3 + $0x88] sm:$0xf] %vm745, %v2674
        %2959 = vst.msk [vmem:[#allocation3 + $0x94] sm:$0xf] %vm745, %v2688
        %2960 = vst.msk [vmem:[#allocation3 + $0xa0] sm:$0xf] %vm745, %v2698
        %2961 = vst.msk [vmem:[#allocation3 + $0xac] sm:$0xf] %vm745, %v2712
        %2962 = vst.msk [vmem:[#allocation3 + $0xb8] sm:$0xf] %vm745, %v2722
        %2963 = vst.msk [vmem:[#allocation3 + $0xc4] sm:$0xf] %vm745, %v2736
        %2964 = vst.msk [vmem:[#allocation3 + $0xd0] sm:$0xf] %vm745, %v2746
        %2965 = vst.msk [vmem:[#allocation3 + $0xdc] sm:$0xf] %vm745, %v2760
        %2966 = vst.msk [vmem:[#allocation3 + $0xe8] sm:$0xf] %vm745, %v2770
        %2967 = vst.msk [vmem:[#allocation3 + $0xf4] sm:$0xf] %vm745, %v2784
        %2968 = vst.msk [vmem:[#allocation3 + $0x100] sm:$0xf] %vm745, %v2794
        %2969 = vst.msk [vmem:[#allocation3 + $0x10c] sm:$0xf] %vm745, %v2808
        %2970 = vst.msk [vmem:[#allocation3 + $0x118] sm:$0xf] %vm745, %v2818
        %2971 = vst.msk [vmem:[#allocation3 + $0x124] sm:$0xf] %vm745, %v2832
        %2972 = vst.msk [vmem:[#allocation3 + $0x130] sm:$0xf] %vm745, %v2842
        %2973 = vst.msk [vmem:[#allocation3 + $0x13c] sm:$0xf] %vm745, %v2856
        %2974 = vst.msk [vmem:[#allocation3 + $0x148] sm:$0xf] %vm745, %v2866
        %2975 = vst.msk [vmem:[#allocation3 + $0x154] sm:$0xf] %vm745, %v2880
        %2976 = vst.msk [vmem:[#allocation3 + $0x160] sm:$0xf] %vm745, %v2890
        %2977 = vst.msk [vmem:[#allocation3 + $0x16c] sm:$0xf] %vm745, %v2904
        %2978 = vst.msk [vmem:[#allocation3 + $0x178] sm:$0xf] %vm745, %v2914
        %v2979 = vld [vmem:[%s1204] sm:$0xe]
        %v2980 = vld [vmem:[%s1204 + $0x4] sm:$0xf]
        %v2981 = vld [vmem:[%s1204 + $0x8] sm:$0x1]
        %v2982 = vld [vmem:[%s1204 + $0xc] sm:$0xe]
        %v2983 = vld [vmem:[%s1204 + $0x10] sm:$0xf]
        %v2984 = vld [vmem:[%s1204 + $0x14] sm:$0x1]
        %v2985 = vld [vmem:[%s1204 + $0x18] sm:$0xe]
        %v2986 = vld [vmem:[%s1204 + $0x1c] sm:$0xf]
        %v2987 = vld [vmem:[%s1204 + $0x20] sm:$0x1]
        %v2988 = vld [vmem:[%s1204 + $0x24] sm:$0xe]
        %v2989 = vld [vmem:[%s1204 + $0x28] sm:$0xf]
        %v2990 = vld [vmem:[%s1204 + $0x2c] sm:$0x1]
        %v2991 = vld [vmem:[%s1204 + $0x30] sm:$0xe]
        %v2992 = vld [vmem:[%s1204 + $0x34] sm:$0xf]
        %v2993 = vld [vmem:[%s1204 + $0x38] sm:$0x1]
        %v2994 = vld [vmem:[%s1204 + $0x3c] sm:$0xe]
        %v2995 = vld [vmem:[%s1204 + $0x40] sm:$0xf]
        %v2996 = vld [vmem:[%s1204 + $0x44] sm:$0x1]
        %v2997 = vld [vmem:[%s1204 + $0x48] sm:$0xe]
        %v2998 = vld [vmem:[%s1204 + $0x4c] sm:$0xf]
        %v2999 = vld [vmem:[%s1204 + $0x50] sm:$0x1]
        %v3000 = vld [vmem:[%s1204 + $0x54] sm:$0xe]
        %v3001 = vld [vmem:[%s1204 + $0x58] sm:$0xf]
        %v3002 = vld [vmem:[%s1204 + $0x5c] sm:$0x1]
        %v3003 = vld [vmem:[%s1204 + $0x60] sm:$0xe]
        %v3004 = vld [vmem:[%s1204 + $0x64] sm:$0xf]
        %v3005 = vld [vmem:[%s1204 + $0x68] sm:$0x1]
        %v3006 = vld [vmem:[%s1204 + $0x6c] sm:$0xe]
        %v3007 = vld [vmem:[%s1204 + $0x70] sm:$0xf]
        %v3008 = vld [vmem:[%s1204 + $0x74] sm:$0x1]
        %v3009 = vld [vmem:[%s1204 + $0x78] sm:$0xe]
        %v3010 = vld [vmem:[%s1204 + $0x7c] sm:$0xf]
        %v3011 = vld [vmem:[%s1204 + $0x80] sm:$0x1]
        %v3012 = vld [vmem:[%s1204 + $0x84] sm:$0xe]
        %v3013 = vld [vmem:[%s1204 + $0x88] sm:$0xf]
        %v3014 = vld [vmem:[%s1204 + $0x8c] sm:$0x1]
        %v3015 = vld [vmem:[%s1204 + $0x90] sm:$0xe]
        %v3016 = vld [vmem:[%s1204 + $0x94] sm:$0xf]
        %v3017 = vld [vmem:[%s1204 + $0x98] sm:$0x1]
        %v3018 = vld [vmem:[%s1204 + $0x9c] sm:$0xe]
        %v3019 = vld [vmem:[%s1204 + $0xa0] sm:$0xf]
        %v3020 = vld [vmem:[%s1204 + $0xa4] sm:$0x1]
        %v3021 = vld [vmem:[%s1204 + $0xa8] sm:$0xe]
        %v3022 = vld [vmem:[%s1204 + $0xac] sm:$0xf]
        %v3023 = vld [vmem:[%s1204 + $0xb0] sm:$0x1]
        %v3024 = vld [vmem:[%s1204 + $0xb4] sm:$0xe]
        %v3025 = vld [vmem:[%s1204 + $0xb8] sm:$0xf]
        %v3026 = vld [vmem:[%s1204 + $0xbc] sm:$0x1]
        %v3075 = vrot.slane %v2979, 5
        %v3076 = vrot.slane %v3075, 4
        %v3077 = vrot.slane %v2980, 5
        %v3078 = vsel %vm2048, %v3076, %v3077
        %v3079 = vrot.slane %v3077, 4
        %v3080 = vrot.slane %v2981, 5
        %v3081 = vsel %vm2048, %v3079, %v3080
        %v3082 = vrot.slane %v2982, 5
        %v3083 = vrot.slane %v3082, 4
        %v3084 = vrot.slane %v2983, 5
        %v3085 = vsel %vm2048, %v3083, %v3084
        %v3086 = vrot.slane %v3084, 4
        %v3087 = vrot.slane %v2984, 5
        %v3088 = vsel %vm2048, %v3086, %v3087
        %v3089 = vrot.slane %v2985, 5
        %v3090 = vrot.slane %v3089, 4
        %v3091 = vrot.slane %v2986, 5
        %v3092 = vsel %vm2048, %v3090, %v3091
        %v3093 = vrot.slane %v3091, 4
        %v3094 = vrot.slane %v2987, 5
        %v3095 = vsel %vm2048, %v3093, %v3094
        %v3096 = vrot.slane %v2988, 5
        %v3097 = vrot.slane %v3096, 4
        %v3098 = vrot.slane %v2989, 5
        %v3099 = vsel %vm2048, %v3097, %v3098
        %v3100 = vrot.slane %v3098, 4
        %v3101 = vrot.slane %v2990, 5
        %v3102 = vsel %vm2048, %v3100, %v3101
        %v3103 = vrot.slane %v2991, 5
        %v3104 = vrot.slane %v3103, 4
        %v3105 = vrot.slane %v2992, 5
        %v3106 = vsel %vm2048, %v3104, %v3105
        %v3107 = vrot.slane %v3105, 4
        %v3108 = vrot.slane %v2993, 5
        %v3109 = vsel %vm2048, %v3107, %v3108
        %v3110 = vrot.slane %v2994, 5
        %v3111 = vrot.slane %v3110, 4
        %v3112 = vrot.slane %v2995, 5
        %v3113 = vsel %vm2048, %v3111, %v3112
        %v3114 = vrot.slane %v3112, 4
        %v3115 = vrot.slane %v2996, 5
        %v3116 = vsel %vm2048, %v3114, %v3115
        %v3117 = vrot.slane %v2997, 5
        %v3118 = vrot.slane %v3117, 4
        %v3119 = vrot.slane %v2998, 5
        %v3120 = vsel %vm2048, %v3118, %v3119
        %v3121 = vrot.slane %v3119, 4
        %v3122 = vrot.slane %v2999, 5
        %v3123 = vsel %vm2048, %v3121, %v3122
        %v3124 = vrot.slane %v3000, 5
        %v3125 = vrot.slane %v3124, 4
        %v3126 = vrot.slane %v3001, 5
        %v3127 = vsel %vm2048, %v3125, %v3126
        %v3128 = vrot.slane %v3126, 4
        %v3129 = vrot.slane %v3002, 5
        %v3130 = vsel %vm2048, %v3128, %v3129
        %v3131 = vrot.slane %v3003, 5
        %v3132 = vrot.slane %v3131, 4
        %v3133 = vrot.slane %v3004, 5
        %v3134 = vsel %vm2048, %v3132, %v3133
        %v3135 = vrot.slane %v3133, 4
        %v3136 = vrot.slane %v3005, 5
        %v3137 = vsel %vm2048, %v3135, %v3136
        %v3138 = vrot.slane %v3006, 5
        %v3139 = vrot.slane %v3138, 4
        %v3140 = vrot.slane %v3007, 5
        %v3141 = vsel %vm2048, %v3139, %v3140
        %v3142 = vrot.slane %v3140, 4
        %v3143 = vrot.slane %v3008, 5
        %v3144 = vsel %vm2048, %v3142, %v3143
        %v3145 = vrot.slane %v3009, 5
        %v3146 = vrot.slane %v3145, 4
        %v3147 = vrot.slane %v3010, 5
        %v3148 = vsel %vm2048, %v3146, %v3147
        %v3149 = vrot.slane %v3147, 4
        %v3150 = vrot.slane %v3011, 5
        %v3151 = vsel %vm2048, %v3149, %v3150
        %v3152 = vrot.slane %v3012, 5
        %v3153 = vrot.slane %v3152, 4
        %v3154 = vrot.slane %v3013, 5
        %v3155 = vsel %vm2048, %v3153, %v3154
        %v3156 = vrot.slane %v3154, 4
        %v3157 = vrot.slane %v3014, 5
        %v3158 = vsel %vm2048, %v3156, %v3157
        %v3159 = vrot.slane %v3015, 5
        %v3160 = vrot.slane %v3159, 4
        %v3161 = vrot.slane %v3016, 5
        %v3162 = vsel %vm2048, %v3160, %v3161
        %v3163 = vrot.slane %v3161, 4
        %v3164 = vrot.slane %v3017, 5
        %v3165 = vsel %vm2048, %v3163, %v3164
        %v3166 = vrot.slane %v3018, 5
        %v3167 = vrot.slane %v3166, 4
        %v3168 = vrot.slane %v3019, 5
        %v3169 = vsel %vm2048, %v3167, %v3168
        %v3170 = vrot.slane %v3168, 4
        %v3171 = vrot.slane %v3020, 5
        %v3172 = vsel %vm2048, %v3170, %v3171
        %v3173 = vrot.slane %v3021, 5
        %v3174 = vrot.slane %v3173, 4
        %v3175 = vrot.slane %v3022, 5
        %v3176 = vsel %vm2048, %v3174, %v3175
        %v3177 = vrot.slane %v3175, 4
        %v3178 = vrot.slane %v3023, 5
        %v3179 = vsel %vm2048, %v3177, %v3178
        %v3180 = vrot.slane %v3024, 5
        %v3181 = vrot.slane %v3180, 4
        %v3182 = vrot.slane %v3025, 5
        %v3183 = vsel %vm2048, %v3181, %v3182
        %v3184 = vrot.slane %v3182, 4
        %v3185 = vrot.slane %v3026, 5
        %v3186 = vsel %vm2048, %v3184, %v3185
        %3187 = vrot.lane.b32.xlu0 %v3078, 32
        %v3188 = vpop.permute.xlu0 %3187
        %3189 = vrot.lane.b32.xlu0 %v3081, 32
        %v3190 = vpop.permute.xlu0 %3189
        %3191 = vrot.lane.b32.xlu0 %v3085, 32
        %v3192 = vpop.permute.xlu0 %3191
        %3193 = vrot.lane.b32.xlu0 %v3088, 32
        %v3194 = vpop.permute.xlu0 %3193
        %3195 = vrot.lane.b32.xlu0 %v3092, 32
        %v3196 = vpop.permute.xlu0 %3195
        %3197 = vrot.lane.b32.xlu0 %v3095, 32
        %v3198 = vpop.permute.xlu0 %3197
        %3199 = vrot.lane.b32.xlu0 %v3099, 32
        %v3200 = vpop.permute.xlu0 %3199
        %3201 = vrot.lane.b32.xlu0 %v3102, 32
        %v3202 = vpop.permute.xlu0 %3201
        %3203 = vrot.lane.b32.xlu0 %v3106, 32
        %v3204 = vpop.permute.xlu0 %3203
        %3205 = vrot.lane.b32.xlu0 %v3109, 32
        %v3206 = vpop.permute.xlu0 %3205
        %3207 = vrot.lane.b32.xlu0 %v3113, 32
        %v3208 = vpop.permute.xlu0 %3207
        %3209 = vrot.lane.b32.xlu0 %v3116, 32
        %v3210 = vpop.permute.xlu0 %3209
        %3211 = vrot.lane.b32.xlu0 %v3120, 32
        %v3212 = vpop.permute.xlu0 %3211
        %3213 = vrot.lane.b32.xlu0 %v3123, 32
        %v3214 = vpop.permute.xlu0 %3213
        %3215 = vrot.lane.b32.xlu0 %v3127, 32
        %v3216 = vpop.permute.xlu0 %3215
        %3217 = vrot.lane.b32.xlu0 %v3130, 32
        %v3218 = vpop.permute.xlu0 %3217
        %3219 = vrot.lane.b32.xlu0 %v3134, 32
        %v3220 = vpop.permute.xlu0 %3219
        %3221 = vrot.lane.b32.xlu0 %v3137, 32
        %v3222 = vpop.permute.xlu0 %3221
        %3223 = vrot.lane.b32.xlu0 %v3141, 32
        %v3224 = vpop.permute.xlu0 %3223
        %3225 = vrot.lane.b32.xlu0 %v3144, 32
        %v3226 = vpop.permute.xlu0 %3225
        %3227 = vrot.lane.b32.xlu0 %v3148, 32
        %v3228 = vpop.permute.xlu0 %3227
        %3229 = vrot.lane.b32.xlu0 %v3151, 32
        %v3230 = vpop.permute.xlu0 %3229
        %3231 = vrot.lane.b32.xlu0 %v3155, 32
        %v3232 = vpop.permute.xlu0 %3231
        %3233 = vrot.lane.b32.xlu0 %v3158, 32
        %v3234 = vpop.permute.xlu0 %3233
        %3235 = vrot.lane.b32.xlu0 %v3162, 32
        %v3236 = vpop.permute.xlu0 %3235
        %3237 = vrot.lane.b32.xlu0 %v3165, 32
        %v3238 = vpop.permute.xlu0 %3237
        %3239 = vrot.lane.b32.xlu0 %v3169, 32
        %v3240 = vpop.permute.xlu0 %3239
        %3241 = vrot.lane.b32.xlu0 %v3172, 32
        %v3242 = vpop.permute.xlu0 %3241
        %3243 = vrot.lane.b32.xlu0 %v3176, 32
        %v3244 = vpop.permute.xlu0 %3243
        %3245 = vrot.lane.b32.xlu0 %v3179, 32
        %v3246 = vpop.permute.xlu0 %3245
        %3247 = vrot.lane.b32.xlu0 %v3183, 32
        %v3248 = vpop.permute.xlu0 %3247
        %3249 = vrot.lane.b32.xlu0 %v3186, 32
        %v3250 = vpop.permute.xlu0 %3249
        %3283 = vst.msk [vmem:[#allocation3 + $0x4] sm:$0xf] %vm1917, %v3188
        %3284 = vst.msk [vmem:[#allocation3 + $0x10] sm:$0xf] %vm1917, %v3190
        %3285 = vst.msk [vmem:[#allocation3 + $0x1c] sm:$0xf] %vm1917, %v3192
        %3286 = vst.msk [vmem:[#allocation3 + $0x28] sm:$0xf] %vm1917, %v3194
        %3287 = vst.msk [vmem:[#allocation3 + $0x34] sm:$0xf] %vm1917, %v3196
        %3288 = vst.msk [vmem:[#allocation3 + $0x40] sm:$0xf] %vm1917, %v3198
        %3289 = vst.msk [vmem:[#allocation3 + $0x4c] sm:$0xf] %vm1917, %v3200
        %3290 = vst.msk [vmem:[#allocation3 + $0x58] sm:$0xf] %vm1917, %v3202
        %3291 = vst.msk [vmem:[#allocation3 + $0x64] sm:$0xf] %vm1917, %v3204
        %3292 = vst.msk [vmem:[#allocation3 + $0x70] sm:$0xf] %vm1917, %v3206
        %3293 = vst.msk [vmem:[#allocation3 + $0x7c] sm:$0xf] %vm1917, %v3208
        %3294 = vst.msk [vmem:[#allocation3 + $0x88] sm:$0xf] %vm1917, %v3210
        %3295 = vst.msk [vmem:[#allocation3 + $0x94] sm:$0xf] %vm1917, %v3212
        %3296 = vst.msk [vmem:[#allocation3 + $0xa0] sm:$0xf] %vm1917, %v3214
        %3297 = vst.msk [vmem:[#allocation3 + $0xac] sm:$0xf] %vm1917, %v3216
        %3298 = vst.msk [vmem:[#allocation3 + $0xb8] sm:$0xf] %vm1917, %v3218
        %3299 = vst.msk [vmem:[#allocation3 + $0xc4] sm:$0xf] %vm1917, %v3220
        %3300 = vst.msk [vmem:[#allocation3 + $0xd0] sm:$0xf] %vm1917, %v3222
        %3301 = vst.msk [vmem:[#allocation3 + $0xdc] sm:$0xf] %vm1917, %v3224
        %3302 = vst.msk [vmem:[#allocation3 + $0xe8] sm:$0xf] %vm1917, %v3226
        %3303 = vst.msk [vmem:[#allocation3 + $0xf4] sm:$0xf] %vm1917, %v3228
        %3304 = vst.msk [vmem:[#allocation3 + $0x100] sm:$0xf] %vm1917, %v3230
        %3305 = vst.msk [vmem:[#allocation3 + $0x10c] sm:$0xf] %vm1917, %v3232
        %3306 = vst.msk [vmem:[#allocation3 + $0x118] sm:$0xf] %vm1917, %v3234
        %3307 = vst.msk [vmem:[#allocation3 + $0x124] sm:$0xf] %vm1917, %v3236
        %3308 = vst.msk [vmem:[#allocation3 + $0x130] sm:$0xf] %vm1917, %v3238
        %3309 = vst.msk [vmem:[#allocation3 + $0x13c] sm:$0xf] %vm1917, %v3240
        %3310 = vst.msk [vmem:[#allocation3 + $0x148] sm:$0xf] %vm1917, %v3242
        %3311 = vst.msk [vmem:[#allocation3 + $0x154] sm:$0xf] %vm1917, %v3244
        %3312 = vst.msk [vmem:[#allocation3 + $0x160] sm:$0xf] %vm1917, %v3246
        %3313 = vst.msk [vmem:[#allocation3 + $0x16c] sm:$0xf] %vm1917, %v3248
        %3314 = vst.msk [vmem:[#allocation3 + $0x178] sm:$0xf] %vm1917, %v3250
        %s3315 = scalar_lea.vmem [#allocation2], 24
        %v3316 = vld [vmem:[%s3315] sm:$0xf]
        %v3317 = vld [vmem:[%s3315 + $0x4] sm:$0xf]
        %v3318 = vld [vmem:[%s3315 + $0xc] sm:$0xf]
        %v3319 = vld [vmem:[%s3315 + $0x10] sm:$0xf]
        %v3320 = vld [vmem:[%s3315 + $0x18] sm:$0xf]
        %v3321 = vld [vmem:[%s3315 + $0x1c] sm:$0xf]
        %v3322 = vld [vmem:[%s3315 + $0x24] sm:$0xf]
        %v3323 = vld [vmem:[%s3315 + $0x28] sm:$0xf]
        %v3324 = vld [vmem:[%s3315 + $0x30] sm:$0xf]
        %v3325 = vld [vmem:[%s3315 + $0x34] sm:$0xf]
        %v3326 = vld [vmem:[%s3315 + $0x3c] sm:$0xf]
        %v3327 = vld [vmem:[%s3315 + $0x40] sm:$0xf]
        %v3328 = vld [vmem:[%s3315 + $0x48] sm:$0xf]
        %v3329 = vld [vmem:[%s3315 + $0x4c] sm:$0xf]
        %v3330 = vld [vmem:[%s3315 + $0x54] sm:$0xf]
        %v3331 = vld [vmem:[%s3315 + $0x58] sm:$0xf]
        %v3332 = vld [vmem:[%s3315 + $0x60] sm:$0xf]
        %v3333 = vld [vmem:[%s3315 + $0x64] sm:$0xf]
        %v3334 = vld [vmem:[%s3315 + $0x6c] sm:$0xf]
        %v3335 = vld [vmem:[%s3315 + $0x70] sm:$0xf]
        %v3336 = vld [vmem:[%s3315 + $0x78] sm:$0xf]
        %v3337 = vld [vmem:[%s3315 + $0x7c] sm:$0xf]
        %v3338 = vld [vmem:[%s3315 + $0x84] sm:$0xf]
        %v3339 = vld [vmem:[%s3315 + $0x88] sm:$0xf]
        %v3340 = vld [vmem:[%s3315 + $0x90] sm:$0xf]
        %v3341 = vld [vmem:[%s3315 + $0x94] sm:$0xf]
        %v3342 = vld [vmem:[%s3315 + $0x9c] sm:$0xf]
        %v3343 = vld [vmem:[%s3315 + $0xa0] sm:$0xf]
        %v3344 = vld [vmem:[%s3315 + $0xa8] sm:$0xf]
        %v3345 = vld [vmem:[%s3315 + $0xac] sm:$0xf]
        %v3346 = vld [vmem:[%s3315 + $0xb4] sm:$0xf]
        %v3347 = vld [vmem:[%s3315 + $0xb8] sm:$0xf]
        %3380 = vrot.lane.b32.xlu0 %v3316, 64
        %v3381 = vpop.permute.xlu0 %3380
        %3382 = vrot.lane.b32.xlu0 %v3317, 64
        %v3383 = vpop.permute.xlu0 %3382
        %3384 = vrot.lane.b32.xlu0 %v3318, 64
        %v3385 = vpop.permute.xlu0 %3384
        %3386 = vrot.lane.b32.xlu0 %v3319, 64
        %v3387 = vpop.permute.xlu0 %3386
        %3388 = vrot.lane.b32.xlu0 %v3320, 64
        %v3389 = vpop.permute.xlu0 %3388
        %3390 = vrot.lane.b32.xlu0 %v3321, 64
        %v3391 = vpop.permute.xlu0 %3390
        %3392 = vrot.lane.b32.xlu0 %v3322, 64
        %v3393 = vpop.permute.xlu0 %3392
        %3394 = vrot.lane.b32.xlu0 %v3323, 64
        %v3395 = vpop.permute.xlu0 %3394
        %3396 = vrot.lane.b32.xlu0 %v3324, 64
        %v3397 = vpop.permute.xlu0 %3396
        %3398 = vrot.lane.b32.xlu0 %v3325, 64
        %v3399 = vpop.permute.xlu0 %3398
        %3400 = vrot.lane.b32.xlu0 %v3326, 64
        %v3401 = vpop.permute.xlu0 %3400
        %3402 = vrot.lane.b32.xlu0 %v3327, 64
        %v3403 = vpop.permute.xlu0 %3402
        %3404 = vrot.lane.b32.xlu0 %v3328, 64
        %v3405 = vpop.permute.xlu0 %3404
        %3406 = vrot.lane.b32.xlu0 %v3329, 64
        %v3407 = vpop.permute.xlu0 %3406
        %3408 = vrot.lane.b32.xlu0 %v3330, 64
        %v3409 = vpop.permute.xlu0 %3408
        %3410 = vrot.lane.b32.xlu0 %v3331, 64
        %v3411 = vpop.permute.xlu0 %3410
        %3412 = vrot.lane.b32.xlu0 %v3332, 64
        %v3413 = vpop.permute.xlu0 %3412
        %3414 = vrot.lane.b32.xlu0 %v3333, 64
        %v3415 = vpop.permute.xlu0 %3414
        %3416 = vrot.lane.b32.xlu0 %v3334, 64
        %v3417 = vpop.permute.xlu0 %3416
        %3418 = vrot.lane.b32.xlu0 %v3335, 64
        %v3419 = vpop.permute.xlu0 %3418
        %3420 = vrot.lane.b32.xlu0 %v3336, 64
        %v3421 = vpop.permute.xlu0 %3420
        %3422 = vrot.lane.b32.xlu0 %v3337, 64
        %v3423 = vpop.permute.xlu0 %3422
        %3424 = vrot.lane.b32.xlu0 %v3338, 64
        %v3425 = vpop.permute.xlu0 %3424
        %3426 = vrot.lane.b32.xlu0 %v3339, 64
        %v3427 = vpop.permute.xlu0 %3426
        %3428 = vrot.lane.b32.xlu0 %v3340, 64
        %v3429 = vpop.permute.xlu0 %3428
        %3430 = vrot.lane.b32.xlu0 %v3341, 64
        %v3431 = vpop.permute.xlu0 %3430
        %3432 = vrot.lane.b32.xlu0 %v3342, 64
        %v3433 = vpop.permute.xlu0 %3432
        %3434 = vrot.lane.b32.xlu0 %v3343, 64
        %v3435 = vpop.permute.xlu0 %3434
        %3436 = vrot.lane.b32.xlu0 %v3344, 64
        %v3437 = vpop.permute.xlu0 %3436
        %3438 = vrot.lane.b32.xlu0 %v3345, 64
        %v3439 = vpop.permute.xlu0 %3438
        %3440 = vrot.lane.b32.xlu0 %v3346, 64
        %v3441 = vpop.permute.xlu0 %3440
        %3442 = vrot.lane.b32.xlu0 %v3347, 64
        %v3443 = vpop.permute.xlu0 %3442
        %3476 = vst.msk [vmem:[#allocation3 + $0x4] sm:$0xf] %vm2257, %v3381
        %3477 = vst.msk [vmem:[#allocation3 + $0x10] sm:$0xf] %vm2257, %v3383
        %3478 = vst.msk [vmem:[#allocation3 + $0x1c] sm:$0xf] %vm2257, %v3385
        %3479 = vst.msk [vmem:[#allocation3 + $0x28] sm:$0xf] %vm2257, %v3387
        %3480 = vst.msk [vmem:[#allocation3 + $0x34] sm:$0xf] %vm2257, %v3389
        %3481 = vst.msk [vmem:[#allocation3 + $0x40] sm:$0xf] %vm2257, %v3391
        %3482 = vst.msk [vmem:[#allocation3 + $0x4c] sm:$0xf] %vm2257, %v3393
        %3483 = vst.msk [vmem:[#allocation3 + $0x58] sm:$0xf] %vm2257, %v3395
        %3484 = vst.msk [vmem:[#allocation3 + $0x64] sm:$0xf] %vm2257, %v3397
        %3485 = vst.msk [vmem:[#allocation3 + $0x70] sm:$0xf] %vm2257, %v3399
        %3486 = vst.msk [vmem:[#allocation3 + $0x7c] sm:$0xf] %vm2257, %v3401
        %3487 = vst.msk [vmem:[#allocation3 + $0x88] sm:$0xf] %vm2257, %v3403
        %3488 = vst.msk [vmem:[#allocation3 + $0x94] sm:$0xf] %vm2257, %v3405
        %3489 = vst.msk [vmem:[#allocation3 + $0xa0] sm:$0xf] %vm2257, %v3407
        %3490 = vst.msk [vmem:[#allocation3 + $0xac] sm:$0xf] %vm2257, %v3409
        %3491 = vst.msk [vmem:[#allocation3 + $0xb8] sm:$0xf] %vm2257, %v3411
        %3492 = vst.msk [vmem:[#allocation3 + $0xc4] sm:$0xf] %vm2257, %v3413
        %3493 = vst.msk [vmem:[#allocation3 + $0xd0] sm:$0xf] %vm2257, %v3415
        %3494 = vst.msk [vmem:[#allocation3 + $0xdc] sm:$0xf] %vm2257, %v3417
        %3495 = vst.msk [vmem:[#allocation3 + $0xe8] sm:$0xf] %vm2257, %v3419
        %3496 = vst.msk [vmem:[#allocation3 + $0xf4] sm:$0xf] %vm2257, %v3421
        %3497 = vst.msk [vmem:[#allocation3 + $0x100] sm:$0xf] %vm2257, %v3423
        %3498 = vst.msk [vmem:[#allocation3 + $0x10c] sm:$0xf] %vm2257, %v3425
        %3499 = vst.msk [vmem:[#allocation3 + $0x118] sm:$0xf] %vm2257, %v3427
        %3500 = vst.msk [vmem:[#allocation3 + $0x124] sm:$0xf] %vm2257, %v3429
        %3501 = vst.msk [vmem:[#allocation3 + $0x130] sm:$0xf] %vm2257, %v3431
        %3502 = vst.msk [vmem:[#allocation3 + $0x13c] sm:$0xf] %vm2257, %v3433
        %3503 = vst.msk [vmem:[#allocation3 + $0x148] sm:$0xf] %vm2257, %v3435
        %3504 = vst.msk [vmem:[#allocation3 + $0x154] sm:$0xf] %vm2257, %v3437
        %3505 = vst.msk [vmem:[#allocation3 + $0x160] sm:$0xf] %vm2257, %v3439
        %3506 = vst.msk [vmem:[#allocation3 + $0x16c] sm:$0xf] %vm2257, %v3441
        %3507 = vst.msk [vmem:[#allocation3 + $0x178] sm:$0xf] %vm2257, %v3443
        %v3508 = vld [vmem:[%s3315] sm:$0xf]
        %v3509 = vld [vmem:[%s3315 + $0x4] sm:$0xf]
        %v3510 = vld [vmem:[%s3315 + $0x8] sm:$0x1]
        %v3511 = vld [vmem:[%s3315 + $0xc] sm:$0xf]
        %v3512 = vld [vmem:[%s3315 + $0x10] sm:$0xf]
        %v3513 = vld [vmem:[%s3315 + $0x14] sm:$0x1]
        %v3514 = vld [vmem:[%s3315 + $0x18] sm:$0xf]
        %v3515 = vld [vmem:[%s3315 + $0x1c] sm:$0xf]
        %v3516 = vld [vmem:[%s3315 + $0x20] sm:$0x1]
        %v3517 = vld [vmem:[%s3315 + $0x24] sm:$0xf]
        %v3518 = vld [vmem:[%s3315 + $0x28] sm:$0xf]
        %v3519 = vld [vmem:[%s3315 + $0x2c] sm:$0x1]
        %v3520 = vld [vmem:[%s3315 + $0x30] sm:$0xf]
        %v3521 = vld [vmem:[%s3315 + $0x34] sm:$0xf]
        %v3522 = vld [vmem:[%s3315 + $0x38] sm:$0x1]
        %v3523 = vld [vmem:[%s3315 + $0x3c] sm:$0xf]
        %v3524 = vld [vmem:[%s3315 + $0x40] sm:$0xf]
        %v3525 = vld [vmem:[%s3315 + $0x44] sm:$0x1]
        %v3526 = vld [vmem:[%s3315 + $0x48] sm:$0xf]
        %v3527 = vld [vmem:[%s3315 + $0x4c] sm:$0xf]
        %v3528 = vld [vmem:[%s3315 + $0x50] sm:$0x1]
        %v3529 = vld [vmem:[%s3315 + $0x54] sm:$0xf]
        %v3530 = vld [vmem:[%s3315 + $0x58] sm:$0xf]
        %v3531 = vld [vmem:[%s3315 + $0x5c] sm:$0x1]
        %v3532 = vld [vmem:[%s3315 + $0x60] sm:$0xf]
        %v3533 = vld [vmem:[%s3315 + $0x64] sm:$0xf]
        %v3534 = vld [vmem:[%s3315 + $0x68] sm:$0x1]
        %v3535 = vld [vmem:[%s3315 + $0x6c] sm:$0xf]
        %v3536 = vld [vmem:[%s3315 + $0x70] sm:$0xf]
        %v3537 = vld [vmem:[%s3315 + $0x74] sm:$0x1]
        %v3538 = vld [vmem:[%s3315 + $0x78] sm:$0xf]
        %v3539 = vld [vmem:[%s3315 + $0x7c] sm:$0xf]
        %v3540 = vld [vmem:[%s3315 + $0x80] sm:$0x1]
        %v3541 = vld [vmem:[%s3315 + $0x84] sm:$0xf]
        %v3542 = vld [vmem:[%s3315 + $0x88] sm:$0xf]
        %v3543 = vld [vmem:[%s3315 + $0x8c] sm:$0x1]
        %v3544 = vld [vmem:[%s3315 + $0x90] sm:$0xf]
        %v3545 = vld [vmem:[%s3315 + $0x94] sm:$0xf]
        %v3546 = vld [vmem:[%s3315 + $0x98] sm:$0x1]
        %v3547 = vld [vmem:[%s3315 + $0x9c] sm:$0xf]
        %v3548 = vld [vmem:[%s3315 + $0xa0] sm:$0xf]
        %v3549 = vld [vmem:[%s3315 + $0xa4] sm:$0x1]
        %v3550 = vld [vmem:[%s3315 + $0xa8] sm:$0xf]
        %v3551 = vld [vmem:[%s3315 + $0xac] sm:$0xf]
        %v3552 = vld [vmem:[%s3315 + $0xb0] sm:$0x1]
        %v3553 = vld [vmem:[%s3315 + $0xb4] sm:$0xf]
        %v3554 = vld [vmem:[%s3315 + $0xb8] sm:$0xf]
        %v3555 = vld [vmem:[%s3315 + $0xbc] sm:$0x1]
        %v3557 = vshrl.u32 %v3508, 16
        %v3559 = vrot.slane %v3557, 4
        %v3560 = vshll.u32 %v3508, 16
        %v3562 = vrot.slane %v3560, 5
        %v3563 = vor.u32 %v3559, %v3562
        %v3564 = vrot.slane %v3563, 4
        %v3566 = vshll.u32 %v3509, 16
        %v3568 = vrot.slane %v3566, 5
        %v3569 = vsel %vm1436, %v3564, %v3568
        %v3570 = vshrl.u32 %v3509, 16
        %v3572 = vrot.slane %v3570, 4
        %v3573 = vor.u32 %v3572, %v3568
        %v3574 = vrot.slane %v3573, 4
        %v3576 = vshll.u32 %v3510, 16
        %v3578 = vrot.slane %v3576, 5
        %v3579 = vsel %vm1436, %v3574, %v3578
        %v3581 = vshrl.u32 %v3511, 16
        %v3583 = vrot.slane %v3581, 4
        %v3584 = vshll.u32 %v3511, 16
        %v3586 = vrot.slane %v3584, 5
        %v3587 = vor.u32 %v3583, %v3586
        %v3588 = vrot.slane %v3587, 4
        %v3590 = vshll.u32 %v3512, 16
        %v3592 = vrot.slane %v3590, 5
        %v3593 = vsel %vm1436, %v3588, %v3592
        %v3594 = vshrl.u32 %v3512, 16
        %v3596 = vrot.slane %v3594, 4
        %v3597 = vor.u32 %v3596, %v3592
        %v3598 = vrot.slane %v3597, 4
        %v3600 = vshll.u32 %v3513, 16
        %v3602 = vrot.slane %v3600, 5
        %v3603 = vsel %vm1436, %v3598, %v3602
        %v3605 = vshrl.u32 %v3514, 16
        %v3607 = vrot.slane %v3605, 4
        %v3608 = vshll.u32 %v3514, 16
        %v3610 = vrot.slane %v3608, 5
        %v3611 = vor.u32 %v3607, %v3610
        %v3612 = vrot.slane %v3611, 4
        %v3614 = vshll.u32 %v3515, 16
        %v3616 = vrot.slane %v3614, 5
        %v3617 = vsel %vm1436, %v3612, %v3616
        %v3618 = vshrl.u32 %v3515, 16
        %v3620 = vrot.slane %v3618, 4
        %v3621 = vor.u32 %v3620, %v3616
        %v3622 = vrot.slane %v3621, 4
        %v3624 = vshll.u32 %v3516, 16
        %v3626 = vrot.slane %v3624, 5
        %v3627 = vsel %vm1436, %v3622, %v3626
        %v3629 = vshrl.u32 %v3517, 16
        %v3631 = vrot.slane %v3629, 4
        %v3632 = vshll.u32 %v3517, 16
        %v3634 = vrot.slane %v3632, 5
        %v3635 = vor.u32 %v3631, %v3634
        %v3636 = vrot.slane %v3635, 4
        %v3638 = vshll.u32 %v3518, 16
        %v3640 = vrot.slane %v3638, 5
        %v3641 = vsel %vm1436, %v3636, %v3640
        %v3642 = vshrl.u32 %v3518, 16
        %v3644 = vrot.slane %v3642, 4
        %v3645 = vor.u32 %v3644, %v3640
        %v3646 = vrot.slane %v3645, 4
        %v3648 = vshll.u32 %v3519, 16
        %v3650 = vrot.slane %v3648, 5
        %v3651 = vsel %vm1436, %v3646, %v3650
        %v3653 = vshrl.u32 %v3520, 16
        %v3655 = vrot.slane %v3653, 4
        %v3656 = vshll.u32 %v3520, 16
        %v3658 = vrot.slane %v3656, 5
        %v3659 = vor.u32 %v3655, %v3658
        %v3660 = vrot.slane %v3659, 4
        %v3662 = vshll.u32 %v3521, 16
        %v3664 = vrot.slane %v3662, 5
        %v3665 = vsel %vm1436, %v3660, %v3664
        %v3666 = vshrl.u32 %v3521, 16
        %v3668 = vrot.slane %v3666, 4
        %v3669 = vor.u32 %v3668, %v3664
        %v3670 = vrot.slane %v3669, 4
        %v3672 = vshll.u32 %v3522, 16
        %v3674 = vrot.slane %v3672, 5
        %v3675 = vsel %vm1436, %v3670, %v3674
        %v3677 = vshrl.u32 %v3523, 16
        %v3679 = vrot.slane %v3677, 4
        %v3680 = vshll.u32 %v3523, 16
        %v3682 = vrot.slane %v3680, 5
        %v3683 = vor.u32 %v3679, %v3682
        %v3684 = vrot.slane %v3683, 4
        %v3686 = vshll.u32 %v3524, 16
        %v3688 = vrot.slane %v3686, 5
        %v3689 = vsel %vm1436, %v3684, %v3688
        %v3690 = vshrl.u32 %v3524, 16
        %v3692 = vrot.slane %v3690, 4
        %v3693 = vor.u32 %v3692, %v3688
        %v3694 = vrot.slane %v3693, 4
        %v3696 = vshll.u32 %v3525, 16
        %v3698 = vrot.slane %v3696, 5
        %v3699 = vsel %vm1436, %v3694, %v3698
        %v3701 = vshrl.u32 %v3526, 16
        %v3703 = vrot.slane %v3701, 4
        %v3704 = vshll.u32 %v3526, 16
        %v3706 = vrot.slane %v3704, 5
        %v3707 = vor.u32 %v3703, %v3706
        %v3708 = vrot.slane %v3707, 4
        %v3710 = vshll.u32 %v3527, 16
        %v3712 = vrot.slane %v3710, 5
        %v3713 = vsel %vm1436, %v3708, %v3712
        %v3714 = vshrl.u32 %v3527, 16
        %v3716 = vrot.slane %v3714, 4
        %v3717 = vor.u32 %v3716, %v3712
        %v3718 = vrot.slane %v3717, 4
        %v3720 = vshll.u32 %v3528, 16
        %v3722 = vrot.slane %v3720, 5
        %v3723 = vsel %vm1436, %v3718, %v3722
        %v3725 = vshrl.u32 %v3529, 16
        %v3727 = vrot.slane %v3725, 4
        %v3728 = vshll.u32 %v3529, 16
        %v3730 = vrot.slane %v3728, 5
        %v3731 = vor.u32 %v3727, %v3730
        %v3732 = vrot.slane %v3731, 4
        %v3734 = vshll.u32 %v3530, 16
        %v3736 = vrot.slane %v3734, 5
        %v3737 = vsel %vm1436, %v3732, %v3736
        %v3738 = vshrl.u32 %v3530, 16
        %v3740 = vrot.slane %v3738, 4
        %v3741 = vor.u32 %v3740, %v3736
        %v3742 = vrot.slane %v3741, 4
        %v3744 = vshll.u32 %v3531, 16
        %v3746 = vrot.slane %v3744, 5
        %v3747 = vsel %vm1436, %v3742, %v3746
        %v3749 = vshrl.u32 %v3532, 16
        %v3751 = vrot.slane %v3749, 4
        %v3752 = vshll.u32 %v3532, 16
        %v3754 = vrot.slane %v3752, 5
        %v3755 = vor.u32 %v3751, %v3754
        %v3756 = vrot.slane %v3755, 4
        %v3758 = vshll.u32 %v3533, 16
        %v3760 = vrot.slane %v3758, 5
        %v3761 = vsel %vm1436, %v3756, %v3760
        %v3762 = vshrl.u32 %v3533, 16
        %v3764 = vrot.slane %v3762, 4
        %v3765 = vor.u32 %v3764, %v3760
        %v3766 = vrot.slane %v3765, 4
        %v3768 = vshll.u32 %v3534, 16
        %v3770 = vrot.slane %v3768, 5
        %v3771 = vsel %vm1436, %v3766, %v3770
        %v3773 = vshrl.u32 %v3535, 16
        %v3775 = vrot.slane %v3773, 4
        %v3776 = vshll.u32 %v3535, 16
        %v3778 = vrot.slane %v3776, 5
        %v3779 = vor.u32 %v3775, %v3778
        %v3780 = vrot.slane %v3779, 4
        %v3782 = vshll.u32 %v3536, 16
        %v3784 = vrot.slane %v3782, 5
        %v3785 = vsel %vm1436, %v3780, %v3784
        %v3786 = vshrl.u32 %v3536, 16
        %v3788 = vrot.slane %v3786, 4
        %v3789 = vor.u32 %v3788, %v3784
        %v3790 = vrot.slane %v3789, 4
        %v3792 = vshll.u32 %v3537, 16
        %v3794 = vrot.slane %v3792, 5
        %v3795 = vsel %vm1436, %v3790, %v3794
        %v3797 = vshrl.u32 %v3538, 16
        %v3799 = vrot.slane %v3797, 4
        %v3800 = vshll.u32 %v3538, 16
        %v3802 = vrot.slane %v3800, 5
        %v3803 = vor.u32 %v3799, %v3802
        %v3804 = vrot.slane %v3803, 4
        %v3806 = vshll.u32 %v3539, 16
        %v3808 = vrot.slane %v3806, 5
        %v3809 = vsel %vm1436, %v3804, %v3808
        %v3810 = vshrl.u32 %v3539, 16
        %v3812 = vrot.slane %v3810, 4
        %v3813 = vor.u32 %v3812, %v3808
        %v3814 = vrot.slane %v3813, 4
        %v3816 = vshll.u32 %v3540, 16
        %v3818 = vrot.slane %v3816, 5
        %v3819 = vsel %vm1436, %v3814, %v3818
        %v3821 = vshrl.u32 %v3541, 16
        %v3823 = vrot.slane %v3821, 4
        %v3824 = vshll.u32 %v3541, 16
        %v3826 = vrot.slane %v3824, 5
        %v3827 = vor.u32 %v3823, %v3826
        %v3828 = vrot.slane %v3827, 4
        %v3830 = vshll.u32 %v3542, 16
        %v3832 = vrot.slane %v3830, 5
        %v3833 = vsel %vm1436, %v3828, %v3832
        %v3834 = vshrl.u32 %v3542, 16
        %v3836 = vrot.slane %v3834, 4
        %v3837 = vor.u32 %v3836, %v3832
        %v3838 = vrot.slane %v3837, 4
        %v3840 = vshll.u32 %v3543, 16
        %v3842 = vrot.slane %v3840, 5
        %v3843 = vsel %vm1436, %v3838, %v3842
        %v3845 = vshrl.u32 %v3544, 16
        %v3847 = vrot.slane %v3845, 4
        %v3848 = vshll.u32 %v3544, 16
        %v3850 = vrot.slane %v3848, 5
        %v3851 = vor.u32 %v3847, %v3850
        %v3852 = vrot.slane %v3851, 4
        %v3854 = vshll.u32 %v3545, 16
        %v3856 = vrot.slane %v3854, 5
        %v3857 = vsel %vm1436, %v3852, %v3856
        %v3858 = vshrl.u32 %v3545, 16
        %v3860 = vrot.slane %v3858, 4
        %v3861 = vor.u32 %v3860, %v3856
        %v3862 = vrot.slane %v3861, 4
        %v3864 = vshll.u32 %v3546, 16
        %v3866 = vrot.slane %v3864, 5
        %v3867 = vsel %vm1436, %v3862, %v3866
        %v3869 = vshrl.u32 %v3547, 16
        %v3871 = vrot.slane %v3869, 4
        %v3872 = vshll.u32 %v3547, 16
        %v3874 = vrot.slane %v3872, 5
        %v3875 = vor.u32 %v3871, %v3874
        %v3876 = vrot.slane %v3875, 4
        %v3878 = vshll.u32 %v3548, 16
        %v3880 = vrot.slane %v3878, 5
        %v3881 = vsel %vm1436, %v3876, %v3880
        %v3882 = vshrl.u32 %v3548, 16
        %v3884 = vrot.slane %v3882, 4
        %v3885 = vor.u32 %v3884, %v3880
        %v3886 = vrot.slane %v3885, 4
        %v3888 = vshll.u32 %v3549, 16
        %v3890 = vrot.slane %v3888, 5
        %v3891 = vsel %vm1436, %v3886, %v3890
        %v3893 = vshrl.u32 %v3550, 16
        %v3895 = vrot.slane %v3893, 4
        %v3896 = vshll.u32 %v3550, 16
        %v3898 = vrot.slane %v3896, 5
        %v3899 = vor.u32 %v3895, %v3898
        %v3900 = vrot.slane %v3899, 4
        %v3902 = vshll.u32 %v3551, 16
        %v3904 = vrot.slane %v3902, 5
        %v3905 = vsel %vm1436, %v3900, %v3904
        %v3906 = vshrl.u32 %v3551, 16
        %v3908 = vrot.slane %v3906, 4
        %v3909 = vor.u32 %v3908, %v3904
        %v3910 = vrot.slane %v3909, 4
        %v3912 = vshll.u32 %v3552, 16
        %v3914 = vrot.slane %v3912, 5
        %v3915 = vsel %vm1436, %v3910, %v3914
        %v3917 = vshrl.u32 %v3553, 16
        %v3919 = vrot.slane %v3917, 4
        %v3920 = vshll.u32 %v3553, 16
        %v3922 = vrot.slane %v3920, 5
        %v3923 = vor.u32 %v3919, %v3922
        %v3924 = vrot.slane %v3923, 4
        %v3926 = vshll.u32 %v3554, 16
        %v3928 = vrot.slane %v3926, 5
        %v3929 = vsel %vm1436, %v3924, %v3928
        %v3930 = vshrl.u32 %v3554, 16
        %v3932 = vrot.slane %v3930, 4
        %v3933 = vor.u32 %v3932, %v3928
        %v3934 = vrot.slane %v3933, 4
        %v3936 = vshll.u32 %v3555, 16
        %v3938 = vrot.slane %v3936, 5
        %v3939 = vsel %vm1436, %v3934, %v3938
        %3940 = vrot.lane.b32.xlu0 %v3569, 96
        %v3941 = vpop.permute.xlu0 %3940
        %3942 = vrot.lane.b32.xlu0 %v3579, 96
        %v3943 = vpop.permute.xlu0 %3942
        %3944 = vrot.lane.b32.xlu0 %v3593, 96
        %v3945 = vpop.permute.xlu0 %3944
        %3946 = vrot.lane.b32.xlu0 %v3603, 96
        %v3947 = vpop.permute.xlu0 %3946
        %3948 = vrot.lane.b32.xlu0 %v3617, 96
        %v3949 = vpop.permute.xlu0 %3948
        %3950 = vrot.lane.b32.xlu0 %v3627, 96
        %v3951 = vpop.permute.xlu0 %3950
        %3952 = vrot.lane.b32.xlu0 %v3641, 96
        %v3953 = vpop.permute.xlu0 %3952
        %3954 = vrot.lane.b32.xlu0 %v3651, 96
        %v3955 = vpop.permute.xlu0 %3954
        %3956 = vrot.lane.b32.xlu0 %v3665, 96
        %v3957 = vpop.permute.xlu0 %3956
        %3958 = vrot.lane.b32.xlu0 %v3675, 96
        %v3959 = vpop.permute.xlu0 %3958
        %3960 = vrot.lane.b32.xlu0 %v3689, 96
        %v3961 = vpop.permute.xlu0 %3960
        %3962 = vrot.lane.b32.xlu0 %v3699, 96
        %v3963 = vpop.permute.xlu0 %3962
        %3964 = vrot.lane.b32.xlu0 %v3713, 96
        %v3965 = vpop.permute.xlu0 %3964
        %3966 = vrot.lane.b32.xlu0 %v3723, 96
        %v3967 = vpop.permute.xlu0 %3966
        %3968 = vrot.lane.b32.xlu0 %v3737, 96
        %v3969 = vpop.permute.xlu0 %3968
        %3970 = vrot.lane.b32.xlu0 %v3747, 96
        %v3971 = vpop.permute.xlu0 %3970
        %3972 = vrot.lane.b32.xlu0 %v3761, 96
        %v3973 = vpop.permute.xlu0 %3972
        %3974 = vrot.lane.b32.xlu0 %v3771, 96
        %v3975 = vpop.permute.xlu0 %3974
        %3976 = vrot.lane.b32.xlu0 %v3785, 96
        %v3977 = vpop.permute.xlu0 %3976
        %3978 = vrot.lane.b32.xlu0 %v3795, 96
        %v3979 = vpop.permute.xlu0 %3978
        %3980 = vrot.lane.b32.xlu0 %v3809, 96
        %v3981 = vpop.permute.xlu0 %3980
        %3982 = vrot.lane.b32.xlu0 %v3819, 96
        %v3983 = vpop.permute.xlu0 %3982
        %3984 = vrot.lane.b32.xlu0 %v3833, 96
        %v3985 = vpop.permute.xlu0 %3984
        %3986 = vrot.lane.b32.xlu0 %v3843, 96
        %v3987 = vpop.permute.xlu0 %3986
        %3988 = vrot.lane.b32.xlu0 %v3857, 96
        %v3989 = vpop.permute.xlu0 %3988
        %3990 = vrot.lane.b32.xlu0 %v3867, 96
        %v3991 = vpop.permute.xlu0 %3990
        %3992 = vrot.lane.b32.xlu0 %v3881, 96
        %v3993 = vpop.permute.xlu0 %3992
        %3994 = vrot.lane.b32.xlu0 %v3891, 96
        %v3995 = vpop.permute.xlu0 %3994
        %3996 = vrot.lane.b32.xlu0 %v3905, 96
        %v3997 = vpop.permute.xlu0 %3996
        %3998 = vrot.lane.b32.xlu0 %v3915, 96
        %v3999 = vpop.permute.xlu0 %3998
        %4000 = vrot.lane.b32.xlu0 %v3929, 96
        %v4001 = vpop.permute.xlu0 %4000
        %4002 = vrot.lane.b32.xlu0 %v3939, 96
        %v4003 = vpop.permute.xlu0 %4002
        %4036 = vst.msk [vmem:[#allocation3 + $0x4] sm:$0xf] %vm2450, %v3941
        %4037 = vst.msk [vmem:[#allocation3 + $0x10] sm:$0xf] %vm2450, %v3943
        %4038 = vst.msk [vmem:[#allocation3 + $0x1c] sm:$0xf] %vm2450, %v3945
        %4039 = vst.msk [vmem:[#allocation3 + $0x28] sm:$0xf] %vm2450, %v3947
        %4040 = vst.msk [vmem:[#allocation3 + $0x34] sm:$0xf] %vm2450, %v3949
        %4041 = vst.msk [vmem:[#allocation3 + $0x40] sm:$0xf] %vm2450, %v3951
        %4042 = vst.msk [vmem:[#allocation3 + $0x4c] sm:$0xf] %vm2450, %v3953
        %4043 = vst.msk [vmem:[#allocation3 + $0x58] sm:$0xf] %vm2450, %v3955
        %4044 = vst.msk [vmem:[#allocation3 + $0x64] sm:$0xf] %vm2450, %v3957
        %4045 = vst.msk [vmem:[#allocation3 + $0x70] sm:$0xf] %vm2450, %v3959
        %4046 = vst.msk [vmem:[#allocation3 + $0x7c] sm:$0xf] %vm2450, %v3961
        %4047 = vst.msk [vmem:[#allocation3 + $0x88] sm:$0xf] %vm2450, %v3963
        %4048 = vst.msk [vmem:[#allocation3 + $0x94] sm:$0xf] %vm2450, %v3965
        %4049 = vst.msk [vmem:[#allocation3 + $0xa0] sm:$0xf] %vm2450, %v3967
        %4050 = vst.msk [vmem:[#allocation3 + $0xac] sm:$0xf] %vm2450, %v3969
        %4051 = vst.msk [vmem:[#allocation3 + $0xb8] sm:$0xf] %vm2450, %v3971
        %4052 = vst.msk [vmem:[#allocation3 + $0xc4] sm:$0xf] %vm2450, %v3973
        %4053 = vst.msk [vmem:[#allocation3 + $0xd0] sm:$0xf] %vm2450, %v3975
        %4054 = vst.msk [vmem:[#allocation3 + $0xdc] sm:$0xf] %vm2450, %v3977
        %4055 = vst.msk [vmem:[#allocation3 + $0xe8] sm:$0xf] %vm2450, %v3979
        %4056 = vst.msk [vmem:[#allocation3 + $0xf4] sm:$0xf] %vm2450, %v3981
        %4057 = vst.msk [vmem:[#allocation3 + $0x100] sm:$0xf] %vm2450, %v3983
        %4058 = vst.msk [vmem:[#allocation3 + $0x10c] sm:$0xf] %vm2450, %v3985
        %4059 = vst.msk [vmem:[#allocation3 + $0x118] sm:$0xf] %vm2450, %v3987
        %4060 = vst.msk [vmem:[#allocation3 + $0x124] sm:$0xf] %vm2450, %v3989
        %4061 = vst.msk [vmem:[#allocation3 + $0x130] sm:$0xf] %vm2450, %v3991
        %4062 = vst.msk [vmem:[#allocation3 + $0x13c] sm:$0xf] %vm2450, %v3993
        %4063 = vst.msk [vmem:[#allocation3 + $0x148] sm:$0xf] %vm2450, %v3995
        %4064 = vst.msk [vmem:[#allocation3 + $0x154] sm:$0xf] %vm2450, %v3997
        %4065 = vst.msk [vmem:[#allocation3 + $0x160] sm:$0xf] %vm2450, %v3999
        %4066 = vst.msk [vmem:[#allocation3 + $0x16c] sm:$0xf] %vm2450, %v4001
        %4067 = vst.msk [vmem:[#allocation3 + $0x178] sm:$0xf] %vm2450, %v4003
        %v4068 = vld [vmem:[%s3315] sm:$0xe]
        %v4069 = vld [vmem:[%s3315 + $0x4] sm:$0xf]
        %v4070 = vld [vmem:[%s3315 + $0x8] sm:$0x1]
        %v4071 = vld [vmem:[%s3315 + $0xc] sm:$0xe]
        %v4072 = vld [vmem:[%s3315 + $0x10] sm:$0xf]
        %v4073 = vld [vmem:[%s3315 + $0x14] sm:$0x1]
        %v4074 = vld [vmem:[%s3315 + $0x18] sm:$0xe]
        %v4075 = vld [vmem:[%s3315 + $0x1c] sm:$0xf]
        %v4076 = vld [vmem:[%s3315 + $0x20] sm:$0x1]
        %v4077 = vld [vmem:[%s3315 + $0x24] sm:$0xe]
        %v4078 = vld [vmem:[%s3315 + $0x28] sm:$0xf]
        %v4079 = vld [vmem:[%s3315 + $0x2c] sm:$0x1]
        %v4080 = vld [vmem:[%s3315 + $0x30] sm:$0xe]
        %v4081 = vld [vmem:[%s3315 + $0x34] sm:$0xf]
        %v4082 = vld [vmem:[%s3315 + $0x38] sm:$0x1]
        %v4083 = vld [vmem:[%s3315 + $0x3c] sm:$0xe]
        %v4084 = vld [vmem:[%s3315 + $0x40] sm:$0xf]
        %v4085 = vld [vmem:[%s3315 + $0x44] sm:$0x1]
        %v4086 = vld [vmem:[%s3315 + $0x48] sm:$0xe]
        %v4087 = vld [vmem:[%s3315 + $0x4c] sm:$0xf]
        %v4088 = vld [vmem:[%s3315 + $0x50] sm:$0x1]
        %v4089 = vld [vmem:[%s3315 + $0x54] sm:$0xe]
        %v4090 = vld [vmem:[%s3315 + $0x58] sm:$0xf]
        %v4091 = vld [vmem:[%s3315 + $0x5c] sm:$0x1]
        %v4092 = vld [vmem:[%s3315 + $0x60] sm:$0xe]
        %v4093 = vld [vmem:[%s3315 + $0x64] sm:$0xf]
        %v4094 = vld [vmem:[%s3315 + $0x68] sm:$0x1]
        %v4095 = vld [vmem:[%s3315 + $0x6c] sm:$0xe]
        %v4096 = vld [vmem:[%s3315 + $0x70] sm:$0xf]
        %v4097 = vld [vmem:[%s3315 + $0x74] sm:$0x1]
        %v4098 = vld [vmem:[%s3315 + $0x78] sm:$0xe]
        %v4099 = vld [vmem:[%s3315 + $0x7c] sm:$0xf]
        %v4100 = vld [vmem:[%s3315 + $0x80] sm:$0x1]
        %v4101 = vld [vmem:[%s3315 + $0x84] sm:$0xe]
        %v4102 = vld [vmem:[%s3315 + $0x88] sm:$0xf]
        %v4103 = vld [vmem:[%s3315 + $0x8c] sm:$0x1]
        %v4104 = vld [vmem:[%s3315 + $0x90] sm:$0xe]
        %v4105 = vld [vmem:[%s3315 + $0x94] sm:$0xf]
        %v4106 = vld [vmem:[%s3315 + $0x98] sm:$0x1]
        %v4107 = vld [vmem:[%s3315 + $0x9c] sm:$0xe]
        %v4108 = vld [vmem:[%s3315 + $0xa0] sm:$0xf]
        %v4109 = vld [vmem:[%s3315 + $0xa4] sm:$0x1]
        %v4110 = vld [vmem:[%s3315 + $0xa8] sm:$0xe]
        %v4111 = vld [vmem:[%s3315 + $0xac] sm:$0xf]
        %v4112 = vld [vmem:[%s3315 + $0xb0] sm:$0x1]
        %v4113 = vld [vmem:[%s3315 + $0xb4] sm:$0xe]
        %v4114 = vld [vmem:[%s3315 + $0xb8] sm:$0xf]
        %v4115 = vld [vmem:[%s3315 + $0xbc] sm:$0x1]
        %v4164 = vrot.slane %v4068, 5
        %v4165 = vrot.slane %v4164, 4
        %v4166 = vrot.slane %v4069, 5
        %v4167 = vsel %vm2048, %v4165, %v4166
        %v4168 = vrot.slane %v4166, 4
        %v4169 = vrot.slane %v4070, 5
        %v4170 = vsel %vm2048, %v4168, %v4169
        %v4171 = vrot.slane %v4071, 5
        %v4172 = vrot.slane %v4171, 4
        %v4173 = vrot.slane %v4072, 5
        %v4174 = vsel %vm2048, %v4172, %v4173
        %v4175 = vrot.slane %v4173, 4
        %v4176 = vrot.slane %v4073, 5
        %v4177 = vsel %vm2048, %v4175, %v4176
        %v4178 = vrot.slane %v4074, 5
        %v4179 = vrot.slane %v4178, 4
        %v4180 = vrot.slane %v4075, 5
        %v4181 = vsel %vm2048, %v4179, %v4180
        %v4182 = vrot.slane %v4180, 4
        %v4183 = vrot.slane %v4076, 5
        %v4184 = vsel %vm2048, %v4182, %v4183
        %v4185 = vrot.slane %v4077, 5
        %v4186 = vrot.slane %v4185, 4
        %v4187 = vrot.slane %v4078, 5
        %v4188 = vsel %vm2048, %v4186, %v4187
        %v4189 = vrot.slane %v4187, 4
        %v4190 = vrot.slane %v4079, 5
        %v4191 = vsel %vm2048, %v4189, %v4190
        %v4192 = vrot.slane %v4080, 5
        %v4193 = vrot.slane %v4192, 4
        %v4194 = vrot.slane %v4081, 5
        %v4195 = vsel %vm2048, %v4193, %v4194
        %v4196 = vrot.slane %v4194, 4
        %v4197 = vrot.slane %v4082, 5
        %v4198 = vsel %vm2048, %v4196, %v4197
        %v4199 = vrot.slane %v4083, 5
        %v4200 = vrot.slane %v4199, 4
        %v4201 = vrot.slane %v4084, 5
        %v4202 = vsel %vm2048, %v4200, %v4201
        %v4203 = vrot.slane %v4201, 4
        %v4204 = vrot.slane %v4085, 5
        %v4205 = vsel %vm2048, %v4203, %v4204
        %v4206 = vrot.slane %v4086, 5
        %v4207 = vrot.slane %v4206, 4
        %v4208 = vrot.slane %v4087, 5
        %v4209 = vsel %vm2048, %v4207, %v4208
        %v4210 = vrot.slane %v4208, 4
        %v4211 = vrot.slane %v4088, 5
        %v4212 = vsel %vm2048, %v4210, %v4211
        %v4213 = vrot.slane %v4089, 5
        %v4214 = vrot.slane %v4213, 4
        %v4215 = vrot.slane %v4090, 5
        %v4216 = vsel %vm2048, %v4214, %v4215
        %v4217 = vrot.slane %v4215, 4
        %v4218 = vrot.slane %v4091, 5
        %v4219 = vsel %vm2048, %v4217, %v4218
        %v4220 = vrot.slane %v4092, 5
        %v4221 = vrot.slane %v4220, 4
        %v4222 = vrot.slane %v4093, 5
        %v4223 = vsel %vm2048, %v4221, %v4222
        %v4224 = vrot.slane %v4222, 4
        %v4225 = vrot.slane %v4094, 5
        %v4226 = vsel %vm2048, %v4224, %v4225
        %v4227 = vrot.slane %v4095, 5
        %v4228 = vrot.slane %v4227, 4
        %v4229 = vrot.slane %v4096, 5
        %v4230 = vsel %vm2048, %v4228, %v4229
        %v4231 = vrot.slane %v4229, 4
        %v4232 = vrot.slane %v4097, 5
        %v4233 = vsel %vm2048, %v4231, %v4232
        %v4234 = vrot.slane %v4098, 5
        %v4235 = vrot.slane %v4234, 4
        %v4236 = vrot.slane %v4099, 5
        %v4237 = vsel %vm2048, %v4235, %v4236
        %v4238 = vrot.slane %v4236, 4
        %v4239 = vrot.slane %v4100, 5
        %v4240 = vsel %vm2048, %v4238, %v4239
        %v4241 = vrot.slane %v4101, 5
        %v4242 = vrot.slane %v4241, 4
        %v4243 = vrot.slane %v4102, 5
        %v4244 = vsel %vm2048, %v4242, %v4243
        %v4245 = vrot.slane %v4243, 4
        %v4246 = vrot.slane %v4103, 5
        %v4247 = vsel %vm2048, %v4245, %v4246
        %v4248 = vrot.slane %v4104, 5
        %v4249 = vrot.slane %v4248, 4
        %v4250 = vrot.slane %v4105, 5
        %v4251 = vsel %vm2048, %v4249, %v4250
        %v4252 = vrot.slane %v4250, 4
        %v4253 = vrot.slane %v4106, 5
        %v4254 = vsel %vm2048, %v4252, %v4253
        %v4255 = vrot.slane %v4107, 5
        %v4256 = vrot.slane %v4255, 4
        %v4257 = vrot.slane %v4108, 5
        %v4258 = vsel %vm2048, %v4256, %v4257
        %v4259 = vrot.slane %v4257, 4
        %v4260 = vrot.slane %v4109, 5
        %v4261 = vsel %vm2048, %v4259, %v4260
        %v4262 = vrot.slane %v4110, 5
        %v4263 = vrot.slane %v4262, 4
        %v4264 = vrot.slane %v4111, 5
        %v4265 = vsel %vm2048, %v4263, %v4264
        %v4266 = vrot.slane %v4264, 4
        %v4267 = vrot.slane %v4112, 5
        %v4268 = vsel %vm2048, %v4266, %v4267
        %v4269 = vrot.slane %v4113, 5
        %v4270 = vrot.slane %v4269, 4
        %v4271 = vrot.slane %v4114, 5
        %v4272 = vsel %vm2048, %v4270, %v4271
        %v4273 = vrot.slane %v4271, 4
        %v4274 = vrot.slane %v4115, 5
        %v4275 = vsel %vm2048, %v4273, %v4274
        %4308 = vst.msk [vmem:[#allocation3 + $0x8] sm:$0xf] %vm745, %v4167
        %4309 = vst.msk [vmem:[#allocation3 + $0x14] sm:$0xf] %vm745, %v4170
        %4310 = vst.msk [vmem:[#allocation3 + $0x20] sm:$0xf] %vm745, %v4174
        %4311 = vst.msk [vmem:[#allocation3 + $0x2c] sm:$0xf] %vm745, %v4177
        %4312 = vst.msk [vmem:[#allocation3 + $0x38] sm:$0xf] %vm745, %v4181
        %4313 = vst.msk [vmem:[#allocation3 + $0x44] sm:$0xf] %vm745, %v4184
        %4314 = vst.msk [vmem:[#allocation3 + $0x50] sm:$0xf] %vm745, %v4188
        %4315 = vst.msk [vmem:[#allocation3 + $0x5c] sm:$0xf] %vm745, %v4191
        %4316 = vst.msk [vmem:[#allocation3 + $0x68] sm:$0xf] %vm745, %v4195
        %4317 = vst.msk [vmem:[#allocation3 + $0x74] sm:$0xf] %vm745, %v4198
        %4318 = vst.msk [vmem:[#allocation3 + $0x80] sm:$0xf] %vm745, %v4202
        %4319 = vst.msk [vmem:[#allocation3 + $0x8c] sm:$0xf] %vm745, %v4205
        %4320 = vst.msk [vmem:[#allocation3 + $0x98] sm:$0xf] %vm745, %v4209
        %4321 = vst.msk [vmem:[#allocation3 + $0xa4] sm:$0xf] %vm745, %v4212
        %4322 = vst.msk [vmem:[#allocation3 + $0xb0] sm:$0xf] %vm745, %v4216
        %4323 = vst.msk [vmem:[#allocation3 + $0xbc] sm:$0xf] %vm745, %v4219
        %4324 = vst.msk [vmem:[#allocation3 + $0xc8] sm:$0xf] %vm745, %v4223
        %4325 = vst.msk [vmem:[#allocation3 + $0xd4] sm:$0xf] %vm745, %v4226
        %4326 = vst.msk [vmem:[#allocation3 + $0xe0] sm:$0xf] %vm745, %v4230
        %4327 = vst.msk [vmem:[#allocation3 + $0xec] sm:$0xf] %vm745, %v4233
        %4328 = vst.msk [vmem:[#allocation3 + $0xf8] sm:$0xf] %vm745, %v4237
        %4329 = vst.msk [vmem:[#allocation3 + $0x104] sm:$0xf] %vm745, %v4240
        %4330 = vst.msk [vmem:[#allocation3 + $0x110] sm:$0xf] %vm745, %v4244
        %4331 = vst.msk [vmem:[#allocation3 + $0x11c] sm:$0xf] %vm745, %v4247
        %4332 = vst.msk [vmem:[#allocation3 + $0x128] sm:$0xf] %vm745, %v4251
        %4333 = vst.msk [vmem:[#allocation3 + $0x134] sm:$0xf] %vm745, %v4254
        %4334 = vst.msk [vmem:[#allocation3 + $0x140] sm:$0xf] %vm745, %v4258
        %4335 = vst.msk [vmem:[#allocation3 + $0x14c] sm:$0xf] %vm745, %v4261
        %4336 = vst.msk [vmem:[#allocation3 + $0x158] sm:$0xf] %vm745, %v4265
        %4337 = vst.msk [vmem:[#allocation3 + $0x164] sm:$0xf] %vm745, %v4268
        %4338 = vst.msk [vmem:[#allocation3 + $0x170] sm:$0xf] %vm745, %v4272
        %4339 = vst.msk [vmem:[#allocation3 + $0x17c] sm:$0xf] %vm745, %v4275
        %v4340 = vld [vmem:[#allocation3] sm:$0xff]
        %v4341 = vld [vmem:[#allocation3 + $0x8] sm:$0xf]
        %v4342 = vld [vmem:[#allocation3 + $0xc] sm:$0xff]
        %v4343 = vld [vmem:[#allocation3 + $0x14] sm:$0xf]
        %v4344 = vld [vmem:[#allocation3 + $0x18] sm:$0xff]
        %v4345 = vld [vmem:[#allocation3 + $0x20] sm:$0xf]
        %v4346 = vld [vmem:[#allocation3 + $0x24] sm:$0xff]
        %v4347 = vld [vmem:[#allocation3 + $0x2c] sm:$0xf]
        %v4348 = vld [vmem:[#allocation3 + $0x30] sm:$0xff]
        %v4349 = vld [vmem:[#allocation3 + $0x38] sm:$0xf]
        %v4350 = vld [vmem:[#allocation3 + $0x3c] sm:$0xff]
        %v4351 = vld [vmem:[#allocation3 + $0x44] sm:$0xf]
        %v4352 = vld [vmem:[#allocation3 + $0x48] sm:$0xff]
        %v4353 = vld [vmem:[#allocation3 + $0x50] sm:$0xf]
        %v4354 = vld [vmem:[#allocation3 + $0x54] sm:$0xff]
        %v4355 = vld [vmem:[#allocation3 + $0x5c] sm:$0xf]
        %v4356 = vld [vmem:[#allocation3 + $0x60] sm:$0xff]
        %v4357 = vld [vmem:[#allocation3 + $0x68] sm:$0xf]
        %v4358 = vld [vmem:[#allocation3 + $0x6c] sm:$0xff]
        %v4359 = vld [vmem:[#allocation3 + $0x74] sm:$0xf]
        %v4360 = vld [vmem:[#allocation3 + $0x78] sm:$0xff]
        %v4361 = vld [vmem:[#allocation3 + $0x80] sm:$0xf]
        %v4362 = vld [vmem:[#allocation3 + $0x84] sm:$0xff]
        %v4363 = vld [vmem:[#allocation3 + $0x8c] sm:$0xf]
        %v4364 = vld [vmem:[#allocation3 + $0x90] sm:$0xff]
        %v4365 = vld [vmem:[#allocation3 + $0x98] sm:$0xf]
        %v4366 = vld [vmem:[#allocation3 + $0x9c] sm:$0xff]
        %v4367 = vld [vmem:[#allocation3 + $0xa4] sm:$0xf]
        %v4368 = vld [vmem:[#allocation3 + $0xa8] sm:$0xff]
        %v4369 = vld [vmem:[#allocation3 + $0xb0] sm:$0xf]
        %v4370 = vld [vmem:[#allocation3 + $0xb4] sm:$0xff]
        %v4371 = vld [vmem:[#allocation3 + $0xbc] sm:$0xf]
        %v4372 = vld [vmem:[#allocation3 + $0xc0] sm:$0xff]
        %v4373 = vld [vmem:[#allocation3 + $0xc8] sm:$0xf]
        %v4374 = vld [vmem:[#allocation3 + $0xcc] sm:$0xff]
        %v4375 = vld [vmem:[#allocation3 + $0xd4] sm:$0xf]
        %v4376 = vld [vmem:[#allocation3 + $0xd8] sm:$0xff]
        %v4377 = vld [vmem:[#allocation3 + $0xe0] sm:$0xf]
        %v4378 = vld [vmem:[#allocation3 + $0xe4] sm:$0xff]
        %v4379 = vld [vmem:[#allocation3 + $0xec] sm:$0xf]
        %v4380 = vld [vmem:[#allocation3 + $0xf0] sm:$0xff]
        %v4381 = vld [vmem:[#allocation3 + $0xf8] sm:$0xf]
        %v4382 = vld [vmem:[#allocation3 + $0xfc] sm:$0xff]
        %v4383 = vld [vmem:[#allocation3 + $0x104] sm:$0xf]
        %v4384 = vld [vmem:[#allocation3 + $0x108] sm:$0xff]
        %v4385 = vld [vmem:[#allocation3 + $0x110] sm:$0xf]
        %v4386 = vld [vmem:[#allocation3 + $0x114] sm:$0xff]
        %v4387 = vld [vmem:[#allocation3 + $0x11c] sm:$0xf]
        %v4388 = vld [vmem:[#allocation3 + $0x120] sm:$0xff]
        %v4389 = vld [vmem:[#allocation3 + $0x128] sm:$0xf]
        %v4390 = vld [vmem:[#allocation3 + $0x12c] sm:$0xff]
        %v4391 = vld [vmem:[#allocation3 + $0x134] sm:$0xf]
        %v4392 = vld [vmem:[#allocation3 + $0x138] sm:$0xff]
        %v4393 = vld [vmem:[#allocation3 + $0x140] sm:$0xf]
        %v4394 = vld [vmem:[#allocation3 + $0x144] sm:$0xff]
        %v4395 = vld [vmem:[#allocation3 + $0x14c] sm:$0xf]
        %v4396 = vld [vmem:[#allocation3 + $0x150] sm:$0xff]
        %v4397 = vld [vmem:[#allocation3 + $0x158] sm:$0xf]
        %v4398 = vld [vmem:[#allocation3 + $0x15c] sm:$0xff]
        %v4399 = vld [vmem:[#allocation3 + $0x164] sm:$0xf]
        %v4400 = vld [vmem:[#allocation3 + $0x168] sm:$0xff]
        %v4401 = vld [vmem:[#allocation3 + $0x170] sm:$0xf]
        %v4402 = vld [vmem:[#allocation3 + $0x174] sm:$0xff]
        %v4403 = vld [vmem:[#allocation3 + $0x17c] sm:$0xf]
        %v4404 = vld [vmem:[%s3] sm:$0xf]
        %v4405 = vld [vmem:[%s3 + $0x4] sm:$0xf]
        %v4406 = vld [vmem:[%s3 + $0x8] sm:$0xf]
        %v4407 = vld [vmem:[%s3 + $0xc] sm:$0xf]
        %v4408 = vld [vmem:[%s3 + $0x10] sm:$0xf]
        %v4409 = vld [vmem:[%s3 + $0x14] sm:$0xf]
        %v4410 = vld [vmem:[%s3 + $0x18] sm:$0xf]
        %v4411 = vld [vmem:[%s3 + $0x1c] sm:$0xf]
        %v4412 = vld [vmem:[%s3 + $0x20] sm:$0xf]
        %v4413 = vld [vmem:[%s3 + $0x24] sm:$0xf]
        %v4414 = vld [vmem:[%s3 + $0x28] sm:$0xf]
        %v4415 = vld [vmem:[%s3 + $0x2c] sm:$0xf]
        %v4416 = vld [vmem:[%s3 + $0x30] sm:$0xf]
        %v4417 = vld [vmem:[%s3 + $0x34] sm:$0xf]
        %v4418 = vld [vmem:[%s3 + $0x38] sm:$0xf]
        %v4419 = vld [vmem:[%s3 + $0x3c] sm:$0xf]
        %v4420 = vld [vmem:[%s3 + $0x40] sm:$0xf]
        %v4421 = vld [vmem:[%s3 + $0x44] sm:$0xf]
        %v4422 = vld [vmem:[%s3 + $0x48] sm:$0xf]
        %v4423 = vld [vmem:[%s3 + $0x4c] sm:$0xf]
        %v4424 = vld [vmem:[%s3 + $0x50] sm:$0xf]
        %v4425 = vld [vmem:[%s3 + $0x54] sm:$0xf]
        %v4426 = vld [vmem:[%s3 + $0x58] sm:$0xf]
        %v4427 = vld [vmem:[%s3 + $0x5c] sm:$0xf]
        %v4428 = vld [vmem:[%s3 + $0x60] sm:$0xf]
        %v4429 = vld [vmem:[%s3 + $0x64] sm:$0xf]
        %v4430 = vld [vmem:[%s3 + $0x68] sm:$0xf]
        %v4431 = vld [vmem:[%s3 + $0x6c] sm:$0xf]
        %v4432 = vld [vmem:[%s3 + $0x70] sm:$0xf]
        %v4433 = vld [vmem:[%s3 + $0x74] sm:$0xf]
        %v4434 = vld [vmem:[%s3 + $0x78] sm:$0xf]
        %v4435 = vld [vmem:[%s3 + $0x7c] sm:$0xf]
        %v4436 = vld [vmem:[%s3 + $0x80] sm:$0xf]
        %v4437 = vld [vmem:[%s3 + $0x84] sm:$0xf]
        %v4438 = vld [vmem:[%s3 + $0x88] sm:$0xf]
        %v4439 = vld [vmem:[%s3 + $0x8c] sm:$0xf]
        %v4440 = vld [vmem:[%s4] sm:$0x1]
        %v4442 = vlaneseq
        %v4443 = vshrl.u32 %v4442, 7
        %v4444 = vsub.s32 0, %v4443
        %v4445 = vrot.slane %v4440, %v4444
        %v4511 = vunpack.c.l.b16 %v4340
        %v4512 = vunpack.c.h.b16 %v4340
        %v4513 = vunpack.c.l.b16 %v4341
        %v4514 = vunpack.c.l.b16 %v4342
        %v4515 = vunpack.c.h.b16 %v4342
        %v4516 = vunpack.c.l.b16 %v4343
        %v4517 = vunpack.c.l.b16 %v4344
        %v4518 = vunpack.c.h.b16 %v4344
        %v4519 = vunpack.c.l.b16 %v4345
        %v4520 = vunpack.c.l.b16 %v4346
        %v4521 = vunpack.c.h.b16 %v4346
        %v4522 = vunpack.c.l.b16 %v4347
        %v4523 = vunpack.c.l.b16 %v4348
        %v4524 = vunpack.c.h.b16 %v4348
        %v4525 = vunpack.c.l.b16 %v4349
        %v4526 = vunpack.c.l.b16 %v4350
        %v4527 = vunpack.c.h.b16 %v4350
        %v4528 = vunpack.c.l.b16 %v4351
        %v4529 = vunpack.c.l.b16 %v4352
        %v4530 = vunpack.c.h.b16 %v4352
        %v4531 = vunpack.c.l.b16 %v4353
        %v4532 = vunpack.c.l.b16 %v4354
        %v4533 = vunpack.c.h.b16 %v4354
        %v4534 = vunpack.c.l.b16 %v4355
        %v4535 = vunpack.c.l.b16 %v4356
        %v4536 = vunpack.c.h.b16 %v4356
        %v4537 = vunpack.c.l.b16 %v4357
        %v4538 = vunpack.c.l.b16 %v4358
        %v4539 = vunpack.c.h.b16 %v4358
        %v4540 = vunpack.c.l.b16 %v4359
        %v4541 = vunpack.c.l.b16 %v4360
        %v4542 = vunpack.c.h.b16 %v4360
        %v4543 = vunpack.c.l.b16 %v4361
        %v4544 = vunpack.c.l.b16 %v4362
        %v4545 = vunpack.c.h.b16 %v4362
        %v4546 = vunpack.c.l.b16 %v4363
        %v4547 = vunpack.c.l.b16 %v4364
        %v4548 = vunpack.c.h.b16 %v4364
        %v4549 = vunpack.c.l.b16 %v4365
        %v4550 = vunpack.c.l.b16 %v4366
        %v4551 = vunpack.c.h.b16 %v4366
        %v4552 = vunpack.c.l.b16 %v4367
        %v4553 = vunpack.c.l.b16 %v4368
        %v4554 = vunpack.c.h.b16 %v4368
        %v4555 = vunpack.c.l.b16 %v4369
        %v4556 = vunpack.c.l.b16 %v4370
        %v4557 = vunpack.c.h.b16 %v4370
        %v4558 = vunpack.c.l.b16 %v4371
        %v4559 = vunpack.c.l.b16 %v4372
        %v4560 = vunpack.c.h.b16 %v4372
        %v4561 = vunpack.c.l.b16 %v4373
        %v4562 = vunpack.c.l.b16 %v4374
        %v4563 = vunpack.c.h.b16 %v4374
        %v4564 = vunpack.c.l.b16 %v4375
        %v4565 = vunpack.c.l.b16 %v4376
        %v4566 = vunpack.c.h.b16 %v4376
        %v4567 = vunpack.c.l.b16 %v4377
        %v4568 = vunpack.c.l.b16 %v4378
        %v4569 = vunpack.c.h.b16 %v4378
        %v4570 = vunpack.c.l.b16 %v4379
        %v4571 = vunpack.c.l.b16 %v4380
        %v4572 = vunpack.c.h.b16 %v4380
        %v4573 = vunpack.c.l.b16 %v4381
        %v4574 = vunpack.c.l.b16 %v4382
        %v4575 = vunpack.c.h.b16 %v4382
        %v4576 = vunpack.c.l.b16 %v4383
        %v4577 = vunpack.c.l.b16 %v4384
        %v4578 = vunpack.c.h.b16 %v4384
        %v4579 = vunpack.c.l.b16 %v4385
        %v4580 = vunpack.c.l.b16 %v4386
        %v4581 = vunpack.c.h.b16 %v4386
        %v4582 = vunpack.c.l.b16 %v4387
        %v4583 = vunpack.c.l.b16 %v4388
        %v4584 = vunpack.c.h.b16 %v4388
        %v4585 = vunpack.c.l.b16 %v4389
        %v4586 = vunpack.c.l.b16 %v4390
        %v4587 = vunpack.c.h.b16 %v4390
        %v4588 = vunpack.c.l.b16 %v4391
        %v4589 = vunpack.c.l.b16 %v4392
        %v4590 = vunpack.c.h.b16 %v4392
        %v4591 = vunpack.c.l.b16 %v4393
        %v4592 = vunpack.c.l.b16 %v4394
        %v4593 = vunpack.c.h.b16 %v4394
        %v4594 = vunpack.c.l.b16 %v4395
        %v4595 = vunpack.c.l.b16 %v4396
        %v4596 = vunpack.c.h.b16 %v4396
        %v4597 = vunpack.c.l.b16 %v4397
        %v4598 = vunpack.c.l.b16 %v4398
        %v4599 = vunpack.c.h.b16 %v4398
        %v4600 = vunpack.c.l.b16 %v4399
        %v4601 = vunpack.c.l.b16 %v4400
        %v4602 = vunpack.c.h.b16 %v4400
        %v4603 = vunpack.c.l.b16 %v4401
        %v4604 = vunpack.c.l.b16 %v4402
        %v4605 = vunpack.c.h.b16 %v4402
        %v4606 = vunpack.c.l.b16 %v4403
        %v4607 = vpack.c.b16 %v4514, %v4511
        %v4608 = vpack.c.b16 %v4515, %v4512
        %v4609 = vpack.c.b16 %v4516, %v4513
        %v4610 = vpack.c.b16 %v4520, %v4517
        %v4611 = vpack.c.b16 %v4521, %v4518
        %v4612 = vpack.c.b16 %v4522, %v4519
        %v4613 = vpack.c.b16 %v4526, %v4523
        %v4614 = vpack.c.b16 %v4527, %v4524
        %v4615 = vpack.c.b16 %v4528, %v4525
        %v4616 = vpack.c.b16 %v4532, %v4529
        %v4617 = vpack.c.b16 %v4533, %v4530
        %v4618 = vpack.c.b16 %v4534, %v4531
        %v4619 = vpack.c.b16 %v4538, %v4535
        %v4620 = vpack.c.b16 %v4539, %v4536
        %v4621 = vpack.c.b16 %v4540, %v4537
        %v4622 = vpack.c.b16 %v4544, %v4541
        %v4623 = vpack.c.b16 %v4545, %v4542
        %v4624 = vpack.c.b16 %v4546, %v4543
        %v4625 = vpack.c.b16 %v4550, %v4547
        %v4626 = vpack.c.b16 %v4551, %v4548
        %v4627 = vpack.c.b16 %v4552, %v4549
        %v4628 = vpack.c.b16 %v4556, %v4553
        %v4629 = vpack.c.b16 %v4557, %v4554
        %v4630 = vpack.c.b16 %v4558, %v4555
        %v4631 = vpack.c.b16 %v4562, %v4559
        %v4632 = vpack.c.b16 %v4563, %v4560
        %v4633 = vpack.c.b16 %v4564, %v4561
        %v4634 = vpack.c.b16 %v4568, %v4565
        %v4635 = vpack.c.b16 %v4569, %v4566
        %v4636 = vpack.c.b16 %v4570, %v4567
        %v4637 = vpack.c.b16 %v4574, %v4571
        %v4638 = vpack.c.b16 %v4575, %v4572
        %v4639 = vpack.c.b16 %v4576, %v4573
        %v4640 = vpack.c.b16 %v4580, %v4577
        %v4641 = vpack.c.b16 %v4581, %v4578
        %v4642 = vpack.c.b16 %v4582, %v4579
        %v4643 = vpack.c.b16 %v4586, %v4583
        %v4644 = vpack.c.b16 %v4587, %v4584
        %v4645 = vpack.c.b16 %v4588, %v4585
        %v4646 = vpack.c.b16 %v4592, %v4589
        %v4647 = vpack.c.b16 %v4593, %v4590
        %v4648 = vpack.c.b16 %v4594, %v4591
        %v4649 = vpack.c.b16 %v4598, %v4595
        %v4650 = vpack.c.b16 %v4599, %v4596
        %v4651 = vpack.c.b16 %v4600, %v4597
        %v4652 = vpack.c.b16 %v4604, %v4601
        %v4653 = vpack.c.b16 %v4605, %v4602
        %v4654 = vpack.c.b16 %v4606, %v4603
        %v4723 = vunpack.c.l.b16 %v4404
        %v4724 = vunpack.c.l.b16 %v4405
        %v4725 = vunpack.c.l.b16 %v4406
        %v4726 = vunpack.c.l.b16 %v4407
        %v4727 = vunpack.c.l.b16 %v4408
        %v4728 = vunpack.c.l.b16 %v4409
        %v4729 = vunpack.c.l.b16 %v4410
        %v4730 = vunpack.c.l.b16 %v4411
        %v4731 = vunpack.c.l.b16 %v4412
        %v4732 = vunpack.c.l.b16 %v4413
        %v4733 = vunpack.c.l.b16 %v4414
        %v4734 = vunpack.c.l.b16 %v4415
        %v4735 = vunpack.c.l.b16 %v4416
        %v4736 = vunpack.c.l.b16 %v4417
        %v4737 = vunpack.c.l.b16 %v4418
        %v4738 = vunpack.c.l.b16 %v4419
        %v4739 = vunpack.c.l.b16 %v4420
        %v4740 = vunpack.c.l.b16 %v4421
        %v4741 = vunpack.c.l.b16 %v4422
        %v4742 = vunpack.c.l.b16 %v4423
        %v4743 = vunpack.c.l.b16 %v4424
        %v4744 = vunpack.c.l.b16 %v4425
        %v4745 = vunpack.c.l.b16 %v4426
        %v4746 = vunpack.c.l.b16 %v4427
        %v4747 = vunpack.c.l.b16 %v4428
        %v4748 = vunpack.c.l.b16 %v4429
        %v4749 = vunpack.c.l.b16 %v4430
        %v4750 = vunpack.c.l.b16 %v4431
        %v4751 = vunpack.c.l.b16 %v4432
        %v4752 = vunpack.c.l.b16 %v4433
        %v4753 = vunpack.c.l.b16 %v4434
        %v4754 = vunpack.c.l.b16 %v4435
        %v4755 = vunpack.c.l.b16 %v4436
        %v4756 = vunpack.c.l.b16 %v4437
        %v4757 = vunpack.c.l.b16 %v4438
        %v4758 = vunpack.c.l.b16 %v4439
        %v4759 = vpack.c.b16 %v4724, %v4723
        %v4760 = vpack.c.b16 %v4726, %v4725
        %v4761 = vpack.c.b16 %v4728, %v4727
        %v4762 = vpack.c.b16 %v4730, %v4729
        %v4763 = vpack.c.b16 %v4732, %v4731
        %v4764 = vpack.c.b16 %v4734, %v4733
        %v4765 = vpack.c.b16 %v4736, %v4735
        %v4766 = vpack.c.b16 %v4738, %v4737
        %v4767 = vpack.c.b16 %v4740, %v4739
        %v4768 = vpack.c.b16 %v4742, %v4741
        %v4769 = vpack.c.b16 %v4744, %v4743
        %v4770 = vpack.c.b16 %v4746, %v4745
        %v4771 = vpack.c.b16 %v4748, %v4747
        %v4772 = vpack.c.b16 %v4750, %v4749
        %v4773 = vpack.c.b16 %v4752, %v4751
        %v4774 = vpack.c.b16 %v4754, %v4753
        %v4775 = vpack.c.b16 %v4756, %v4755
        %v4776 = vpack.c.b16 %v4758, %v4757
        %v4796 = vsel %vm487, %v4609, 0
        %v4799 = vsel %vm487, %v4612, 0
        %v4802 = vsel %vm487, %v4615, 0
        %v4805 = vsel %vm487, %v4618, 0
        %v4808 = vsel %vm487, %v4621, 0
        %v4811 = vsel %vm487, %v4624, 0
        %v4814 = vsel %vm487, %v4627, 0
        %v4817 = vsel %vm487, %v4630, 0
        %v4820 = vsel %vm487, %v4633, 0
        %v4823 = vsel %vm487, %v4636, 0
        %v4826 = vsel %vm487, %v4639, 0
        %v4829 = vsel %vm487, %v4642, 0
        %v4832 = vsel %vm487, %v4645, 0
        %v4835 = vsel %vm487, %v4648, 0
        %v4838 = vsel %vm487, %v4651, 0
        %v4841 = vsel %vm487, %v4654, 0
        %4843 = vmatprep.subr.bf16.mxu0 0
        %4844 = vmatpush1.bf16.msra.mxu0 %v4766
        %4845 = vmatprep.subr.bf16.mxu0 0
        %4846 = vmatpush1.bf16.msra.mxu0 %v4765
        %4847 = vmatprep.subr.bf16.mxu0 0
        %4848 = vmatpush1.bf16.msra.mxu0 %v4764
        %4849 = vmatprep.subr.bf16.mxu0 0
        %4850 = vmatpush1.bf16.msra.mxu0 %v4763
        %4851 = vmatprep.subr.bf16.mxu0 0
        %4852 = vmatpush1.bf16.msra.mxu0 %v4762
        %4853 = vmatprep.subr.bf16.mxu0 0
        %4854 = vmatpush1.bf16.msra.mxu0 %v4761
        %4855 = vmatprep.subr.bf16.mxu0 0
        %4856 = vmatpush1.bf16.msra.mxu0 %v4760
        %4857 = vmatprep.subr.bf16.mxu0 0
        %4858 = vmatpush1.bf16.msra.mxu0 %v4759
        %4859 = vmatprep.subr.bf16.mxu0 0
        %4860 = vmatpush2.bf16.msra.mxu0 %v4774
        %4861 = vmatprep.subr.bf16.mxu0 0
        %4862 = vmatpush2.bf16.msra.mxu0 %v4773
        %4863 = vmatprep.subr.bf16.mxu0 0
        %4864 = vmatpush2.bf16.msra.mxu0 %v4772
        %4865 = vmatprep.subr.bf16.mxu0 0
        %4866 = vmatpush2.bf16.msra.mxu0 %v4771
        %4867 = vmatprep.subr.bf16.mxu0 0
        %4868 = vmatpush2.bf16.msra.mxu0 %v4770
        %4869 = vmatprep.subr.bf16.mxu0 0
        %4870 = vmatpush2.bf16.msra.mxu0 %v4769
        %4871 = vmatprep.subr.bf16.mxu0 0
        %4872 = vmatpush2.bf16.msra.mxu0 %v4768
        %4873 = vmatprep.subr.bf16.mxu0 0
        %4874 = vmatpush2.bf16.msra.mxu0 %v4767
        %4875 = vmatprep.mubr.bf16.mxu0 %v4608
        %4876 = vmatmul.mubr.bf16.gmra.mxu0 %v4607
        %v4877 = vpop.f32.mrf.mxu0
        %v4878 = vadd.f32 %v4445, %v4877
        %v4879 = vpop.f32.mrf.mxu0
        %v4880 = vpop.f32.mrf.mxu0
        %v4881 = vadd.f32 %v4445, %v4880
        %v4882 = vpop.f32.mrf.mxu0
        %4883 = vmatprep.mubr.bf16.mxu0 %v4611
        %4884 = vmatmul.mubr.bf16.gmra.mxu0 %v4610
        %v4885 = vpop.f32.mrf.mxu0
        %v4886 = vadd.f32 %v4445, %v4885
        %v4887 = vpop.f32.mrf.mxu0
        %v4888 = vpop.f32.mrf.mxu0
        %v4889 = vadd.f32 %v4445, %v4888
        %v4890 = vpop.f32.mrf.mxu0
        %4891 = vmatprep.mubr.bf16.mxu0 %v4614
        %4892 = vmatmul.mubr.bf16.gmra.mxu0 %v4613
        %v4893 = vpop.f32.mrf.mxu0
        %v4894 = vadd.f32 %v4445, %v4893
        %v4895 = vpop.f32.mrf.mxu0
        %v4896 = vpop.f32.mrf.mxu0
        %v4897 = vadd.f32 %v4445, %v4896
        %v4898 = vpop.f32.mrf.mxu0
        %4899 = vmatprep.mubr.bf16.mxu0 %v4617
        %4900 = vmatmul.mubr.bf16.gmra.mxu0 %v4616
        %v4901 = vpop.f32.mrf.mxu0
        %v4902 = vadd.f32 %v4445, %v4901
        %v4903 = vpop.f32.mrf.mxu0
        %v4904 = vpop.f32.mrf.mxu0
        %v4905 = vadd.f32 %v4445, %v4904
        %v4906 = vpop.f32.mrf.mxu0
        %4907 = vmatprep.mubr.bf16.mxu0 %v4620
        %4908 = vmatmul.mubr.bf16.gmra.mxu0 %v4619
        %v4909 = vpop.f32.mrf.mxu0
        %v4910 = vadd.f32 %v4445, %v4909
        %v4911 = vpop.f32.mrf.mxu0
        %v4912 = vpop.f32.mrf.mxu0
        %v4913 = vadd.f32 %v4445, %v4912
        %v4914 = vpop.f32.mrf.mxu0
        %4915 = vmatprep.mubr.bf16.mxu0 %v4623
        %4916 = vmatmul.mubr.bf16.gmra.mxu0 %v4622
        %v4917 = vpop.f32.mrf.mxu0
        %v4918 = vadd.f32 %v4445, %v4917
        %v4919 = vpop.f32.mrf.mxu0
        %v4920 = vpop.f32.mrf.mxu0
        %v4921 = vadd.f32 %v4445, %v4920
        %v4922 = vpop.f32.mrf.mxu0
        %4923 = vmatprep.mubr.bf16.mxu0 %v4626
        %4924 = vmatmul.mubr.bf16.gmra.mxu0 %v4625
        %v4925 = vpop.f32.mrf.mxu0
        %v4926 = vadd.f32 %v4445, %v4925
        %v4927 = vpop.f32.mrf.mxu0
        %v4928 = vpop.f32.mrf.mxu0
        %v4929 = vadd.f32 %v4445, %v4928
        %v4930 = vpop.f32.mrf.mxu0
        %4931 = vmatprep.mubr.bf16.mxu0 %v4629
        %4932 = vmatmul.mubr.bf16.gmra.mxu0 %v4628
        %v4933 = vpop.f32.mrf.mxu0
        %v4934 = vadd.f32 %v4445, %v4933
        %v4935 = vpop.f32.mrf.mxu0
        %v4936 = vpop.f32.mrf.mxu0
        %v4937 = vadd.f32 %v4445, %v4936
        %v4938 = vpop.f32.mrf.mxu0
        %4939 = vmatprep.mubr.bf16.mxu0 %v4632
        %4940 = vmatmul.mubr.bf16.gmra.mxu0 %v4631
        %v4941 = vpop.f32.mrf.mxu0
        %v4942 = vadd.f32 %v4445, %v4941
        %v4943 = vpop.f32.mrf.mxu0
        %v4944 = vpop.f32.mrf.mxu0
        %v4945 = vadd.f32 %v4445, %v4944
        %v4946 = vpop.f32.mrf.mxu0
        %4947 = vmatprep.mubr.bf16.mxu0 %v4635
        %4948 = vmatmul.mubr.bf16.gmra.mxu0 %v4634
        %v4949 = vpop.f32.mrf.mxu0
        %v4950 = vadd.f32 %v4445, %v4949
        %v4951 = vpop.f32.mrf.mxu0
        %v4952 = vpop.f32.mrf.mxu0
        %v4953 = vadd.f32 %v4445, %v4952
        %v4954 = vpop.f32.mrf.mxu0
        %4955 = vmatprep.mubr.bf16.mxu0 %v4638
        %4956 = vmatmul.mubr.bf16.gmra.mxu0 %v4637
        %v4957 = vpop.f32.mrf.mxu0
        %v4958 = vadd.f32 %v4445, %v4957
        %v4959 = vpop.f32.mrf.mxu0
        %v4960 = vpop.f32.mrf.mxu0
        %v4961 = vadd.f32 %v4445, %v4960
        %v4962 = vpop.f32.mrf.mxu0
        %4963 = vmatprep.mubr.bf16.mxu0 %v4641
        %4964 = vmatmul.mubr.bf16.gmra.mxu0 %v4640
        %v4965 = vpop.f32.mrf.mxu0
        %v4966 = vadd.f32 %v4445, %v4965
        %v4967 = vpop.f32.mrf.mxu0
        %v4968 = vpop.f32.mrf.mxu0
        %v4969 = vadd.f32 %v4445, %v4968
        %v4970 = vpop.f32.mrf.mxu0
        %4971 = vmatprep.mubr.bf16.mxu0 %v4644
        %4972 = vmatmul.mubr.bf16.gmra.mxu0 %v4643
        %v4973 = vpop.f32.mrf.mxu0
        %v4974 = vadd.f32 %v4445, %v4973
        %v4975 = vpop.f32.mrf.mxu0
        %v4976 = vpop.f32.mrf.mxu0
        %v4977 = vadd.f32 %v4445, %v4976
        %v4978 = vpop.f32.mrf.mxu0
        %4979 = vmatprep.mubr.bf16.mxu0 %v4647
        %4980 = vmatmul.mubr.bf16.gmra.mxu0 %v4646
        %v4981 = vpop.f32.mrf.mxu0
        %v4982 = vadd.f32 %v4445, %v4981
        %v4983 = vpop.f32.mrf.mxu0
        %v4984 = vpop.f32.mrf.mxu0
        %v4985 = vadd.f32 %v4445, %v4984
        %v4986 = vpop.f32.mrf.mxu0
        %4987 = vmatprep.mubr.bf16.mxu0 %v4650
        %4988 = vmatmul.mubr.bf16.gmra.mxu0 %v4649
        %v4989 = vpop.f32.mrf.mxu0
        %v4990 = vadd.f32 %v4445, %v4989
        %v4991 = vpop.f32.mrf.mxu0
        %v4992 = vpop.f32.mrf.mxu0
        %v4993 = vadd.f32 %v4445, %v4992
        %v4994 = vpop.f32.mrf.mxu0
        %4995 = vmatprep.mubr.bf16.mxu0 %v4653
        %4996 = vmatmul.mubr.bf16.gmra.mxu0 %v4652
        %v4997 = vpop.f32.mrf.mxu0
        %v4998 = vadd.f32 %v4445, %v4997
        %v4999 = vpop.f32.mrf.mxu0
        %v5000 = vpop.f32.mrf.mxu0
        %v5001 = vadd.f32 %v4445, %v5000
        %v5002 = vpop.f32.mrf.mxu0
        %5003 = vdwg.mxu0
        %5004 = vmatprep.subr.bf16.mxu0 0
        %5005 = vmatpush1.bf16.msra.mxu0 0
        %5006 = vmatprep.subr.bf16.mxu0 0
        %5007 = vmatpush1.bf16.msra.mxu0 0
        %5008 = vmatprep.subr.bf16.mxu0 0
        %5009 = vmatpush1.bf16.msra.mxu0 0
        %5010 = vmatprep.subr.bf16.mxu0 0
        %5011 = vmatpush1.bf16.msra.mxu0 0
        %5012 = vmatprep.subr.bf16.mxu0 0
        %5013 = vmatpush1.bf16.msra.mxu0 0
        %5014 = vmatprep.subr.bf16.mxu0 0
        %5015 = vmatpush1.bf16.msra.mxu0 0
        %5016 = vmatprep.subr.bf16.mxu0 0
        %5017 = vmatpush1.bf16.msra.mxu0 %v4776
        %5018 = vmatprep.subr.bf16.mxu0 0
        %5019 = vmatpush1.bf16.msra.mxu0 %v4775
        %5020 = vmatprep.subr.bf16.mxu0 0
        %5021 = vmatpush2.bf16.msra.mxu0 0
        %5022 = vmatprep.subr.bf16.mxu0 0
        %5023 = vmatpush2.bf16.msra.mxu0 0
        %5024 = vmatprep.subr.bf16.mxu0 0
        %5025 = vmatpush2.bf16.msra.mxu0 0
        %5026 = vmatprep.subr.bf16.mxu0 0
        %5027 = vmatpush2.bf16.msra.mxu0 0
        %5028 = vmatprep.subr.bf16.mxu0 0
        %5029 = vmatpush2.bf16.msra.mxu0 0
        %5030 = vmatprep.subr.bf16.mxu0 0
        %5031 = vmatpush2.bf16.msra.mxu0 0
        %5032 = vmatprep.subr.bf16.mxu0 0
        %5033 = vmatpush2.bf16.msra.mxu0 0
        %5034 = vmatprep.subr.bf16.mxu0 0
        %5035 = vmatpush2.bf16.msra.mxu0 0
        %5036 = vmatprep.mubr.bf16.mxu0 0
        %5037 = vmatmul.mubr.bf16.gmra.mxu0 %v4796
        %v5038 = vpop.f32.mrf.mxu0
        %v5039 = vadd.f32 %v4878, %v5038
        %v5040 = vpop.f32.mrf.mxu0
        %v5041 = vpop.f32.mrf.mxu0
        %v5042 = vadd.f32 %v4881, %v5041
        %v5043 = vpop.f32.mrf.mxu0
        %5044 = vmatprep.mubr.bf16.mxu0 0
        %5045 = vmatmul.mubr.bf16.gmra.mxu0 %v4799
        %v5046 = vpop.f32.mrf.mxu0
        %v5047 = vadd.f32 %v4886, %v5046
        %v5048 = vpop.f32.mrf.mxu0
        %v5049 = vpop.f32.mrf.mxu0
        %v5050 = vadd.f32 %v4889, %v5049
        %v5051 = vpop.f32.mrf.mxu0
        %5052 = vmatprep.mubr.bf16.mxu0 0
        %5053 = vmatmul.mubr.bf16.gmra.mxu0 %v4802
        %v5054 = vpop.f32.mrf.mxu0
        %v5055 = vadd.f32 %v4894, %v5054
        %v5056 = vpop.f32.mrf.mxu0
        %v5057 = vpop.f32.mrf.mxu0
        %v5058 = vadd.f32 %v4897, %v5057
        %v5059 = vpop.f32.mrf.mxu0
        %5060 = vmatprep.mubr.bf16.mxu0 0
        %5061 = vmatmul.mubr.bf16.gmra.mxu0 %v4805
        %v5062 = vpop.f32.mrf.mxu0
        %v5063 = vadd.f32 %v4902, %v5062
        %v5064 = vpop.f32.mrf.mxu0
        %v5065 = vpop.f32.mrf.mxu0
        %v5066 = vadd.f32 %v4905, %v5065
        %v5067 = vpop.f32.mrf.mxu0
        %5068 = vmatprep.mubr.bf16.mxu0 0
        %5069 = vmatmul.mubr.bf16.gmra.mxu0 %v4808
        %v5070 = vpop.f32.mrf.mxu0
        %v5071 = vadd.f32 %v4910, %v5070
        %v5072 = vpop.f32.mrf.mxu0
        %v5073 = vpop.f32.mrf.mxu0
        %v5074 = vadd.f32 %v4913, %v5073
        %v5075 = vpop.f32.mrf.mxu0
        %5076 = vmatprep.mubr.bf16.mxu0 0
        %5077 = vmatmul.mubr.bf16.gmra.mxu0 %v4811
        %v5078 = vpop.f32.mrf.mxu0
        %v5079 = vadd.f32 %v4918, %v5078
        %v5080 = vpop.f32.mrf.mxu0
        %v5081 = vpop.f32.mrf.mxu0
        %v5082 = vadd.f32 %v4921, %v5081
        %v5083 = vpop.f32.mrf.mxu0
        %5084 = vmatprep.mubr.bf16.mxu0 0
        %5085 = vmatmul.mubr.bf16.gmra.mxu0 %v4814
        %v5086 = vpop.f32.mrf.mxu0
        %v5087 = vadd.f32 %v4926, %v5086
        %v5088 = vpop.f32.mrf.mxu0
        %v5089 = vpop.f32.mrf.mxu0
        %v5090 = vadd.f32 %v4929, %v5089
        %v5091 = vpop.f32.mrf.mxu0
        %5092 = vmatprep.mubr.bf16.mxu0 0
        %5093 = vmatmul.mubr.bf16.gmra.mxu0 %v4817
        %v5094 = vpop.f32.mrf.mxu0
        %v5095 = vadd.f32 %v4934, %v5094
        %v5096 = vpop.f32.mrf.mxu0
        %v5097 = vpop.f32.mrf.mxu0
        %v5098 = vadd.f32 %v4937, %v5097
        %v5099 = vpop.f32.mrf.mxu0
        %5100 = vmatprep.mubr.bf16.mxu0 0
        %5101 = vmatmul.mubr.bf16.gmra.mxu0 %v4820
        %v5102 = vpop.f32.mrf.mxu0
        %v5103 = vadd.f32 %v4942, %v5102
        %v5104 = vpop.f32.mrf.mxu0
        %v5105 = vpop.f32.mrf.mxu0
        %v5106 = vadd.f32 %v4945, %v5105
        %v5107 = vpop.f32.mrf.mxu0
        %5108 = vmatprep.mubr.bf16.mxu0 0
        %5109 = vmatmul.mubr.bf16.gmra.mxu0 %v4823
        %v5110 = vpop.f32.mrf.mxu0
        %v5111 = vadd.f32 %v4950, %v5110
        %v5112 = vpop.f32.mrf.mxu0
        %v5113 = vpop.f32.mrf.mxu0
        %v5114 = vadd.f32 %v4953, %v5113
        %v5115 = vpop.f32.mrf.mxu0
        %5116 = vmatprep.mubr.bf16.mxu0 0
        %5117 = vmatmul.mubr.bf16.gmra.mxu0 %v4826
        %v5118 = vpop.f32.mrf.mxu0
        %v5119 = vadd.f32 %v4958, %v5118
        %v5120 = vpop.f32.mrf.mxu0
        %v5121 = vpop.f32.mrf.mxu0
        %v5122 = vadd.f32 %v4961, %v5121
        %v5123 = vpop.f32.mrf.mxu0
        %5124 = vmatprep.mubr.bf16.mxu0 0
        %5125 = vmatmul.mubr.bf16.gmra.mxu0 %v4829
        %v5126 = vpop.f32.mrf.mxu0
        %v5127 = vadd.f32 %v4966, %v5126
        %v5128 = vpop.f32.mrf.mxu0
        %v5129 = vpop.f32.mrf.mxu0
        %v5130 = vadd.f32 %v4969, %v5129
        %v5131 = vpop.f32.mrf.mxu0
        %5132 = vmatprep.mubr.bf16.mxu0 0
        %5133 = vmatmul.mubr.bf16.gmra.mxu0 %v4832
        %v5134 = vpop.f32.mrf.mxu0
        %v5135 = vadd.f32 %v4974, %v5134
        %v5136 = vpop.f32.mrf.mxu0
        %v5137 = vpop.f32.mrf.mxu0
        %v5138 = vadd.f32 %v4977, %v5137
        %v5139 = vpop.f32.mrf.mxu0
        %5140 = vmatprep.mubr.bf16.mxu0 0
        %5141 = vmatmul.mubr.bf16.gmra.mxu0 %v4835
        %v5142 = vpop.f32.mrf.mxu0
        %v5143 = vadd.f32 %v4982, %v5142
        %v5144 = vpop.f32.mrf.mxu0
        %v5145 = vpop.f32.mrf.mxu0
        %v5146 = vadd.f32 %v4985, %v5145
        %v5147 = vpop.f32.mrf.mxu0
        %5148 = vmatprep.mubr.bf16.mxu0 0
        %5149 = vmatmul.mubr.bf16.gmra.mxu0 %v4838
        %v5150 = vpop.f32.mrf.mxu0
        %v5151 = vadd.f32 %v4990, %v5150
        %v5152 = vpop.f32.mrf.mxu0
        %v5153 = vpop.f32.mrf.mxu0
        %v5154 = vadd.f32 %v4993, %v5153
        %v5155 = vpop.f32.mrf.mxu0
        %5156 = vmatprep.mubr.bf16.mxu0 0
        %5157 = vmatmul.mubr.bf16.gmra.mxu0 %v4841
        %v5158 = vpop.f32.mrf.mxu0
        %v5159 = vadd.f32 %v4998, %v5158
        %v5160 = vpop.f32.mrf.mxu0
        %v5161 = vpop.f32.mrf.mxu0
        %v5162 = vadd.f32 %v5001, %v5161
        %v5163 = vpop.f32.mrf.mxu0
        %5164 = vdwg.mxu0
        %v5165 = vmax.f32 %v5039, 0.0
        %v5166 = vmax.f32 %v5042, 0.0
        %v5167 = vmax.f32 %v5047, 0.0
        %v5168 = vmax.f32 %v5050, 0.0
        %v5169 = vmax.f32 %v5055, 0.0
        %v5170 = vmax.f32 %v5058, 0.0
        %v5171 = vmax.f32 %v5063, 0.0
        %v5172 = vmax.f32 %v5066, 0.0
        %v5173 = vmax.f32 %v5071, 0.0
        %v5174 = vmax.f32 %v5074, 0.0
        %v5175 = vmax.f32 %v5079, 0.0
        %v5176 = vmax.f32 %v5082, 0.0
        %v5177 = vmax.f32 %v5087, 0.0
        %v5178 = vmax.f32 %v5090, 0.0
        %v5179 = vmax.f32 %v5095, 0.0
        %v5180 = vmax.f32 %v5098, 0.0
        %v5181 = vmax.f32 %v5103, 0.0
        %v5182 = vmax.f32 %v5106, 0.0
        %v5183 = vmax.f32 %v5111, 0.0
        %v5184 = vmax.f32 %v5114, 0.0
        %v5185 = vmax.f32 %v5119, 0.0
        %v5186 = vmax.f32 %v5122, 0.0
        %v5187 = vmax.f32 %v5127, 0.0
        %v5188 = vmax.f32 %v5130, 0.0
        %v5189 = vmax.f32 %v5135, 0.0
        %v5190 = vmax.f32 %v5138, 0.0
        %v5191 = vmax.f32 %v5143, 0.0
        %v5192 = vmax.f32 %v5146, 0.0
        %v5193 = vmax.f32 %v5151, 0.0
        %v5194 = vmax.f32 %v5154, 0.0
        %v5195 = vmax.f32 %v5159, 0.0
        %v5196 = vmax.f32 %v5162, 0.0
        %v5197 = vpack.c.bf16 %v5166, %v5165
        %v5198 = vpack.c.bf16 %v5168, %v5167
        %v5199 = vpack.c.bf16 %v5170, %v5169
        %v5200 = vpack.c.bf16 %v5172, %v5171
        %v5201 = vpack.c.bf16 %v5174, %v5173
        %v5202 = vpack.c.bf16 %v5176, %v5175
        %v5203 = vpack.c.bf16 %v5178, %v5177
        %v5204 = vpack.c.bf16 %v5180, %v5179
        %v5205 = vpack.c.bf16 %v5182, %v5181
        %v5206 = vpack.c.bf16 %v5184, %v5183
        %v5207 = vpack.c.bf16 %v5186, %v5185
        %v5208 = vpack.c.bf16 %v5188, %v5187
        %v5209 = vpack.c.bf16 %v5190, %v5189
        %v5210 = vpack.c.bf16 %v5192, %v5191
        %v5211 = vpack.c.bf16 %v5194, %v5193
        %v5212 = vpack.c.bf16 %v5196, %v5195
        %v5213 = vld [vmem:[%s5] sm:$0xf]
        %v5214 = vld [vmem:[%s5 + $0x4] sm:$0xf]
        %v5215 = vld [vmem:[%s5 + $0x8] sm:$0xf]
        %v5216 = vld [vmem:[%s5 + $0xc] sm:$0xf]
        %v5217 = vld [vmem:[%s6] sm:$0x1]
        %v5219 = vlaneseq
        %v5220 = vshrl.u32 %v5219, 7
        %v5221 = vsub.s32 0, %v5220
        %v5222 = vrot.slane %v5217, %v5221
        %v5228 = vunpack.c.l.b16 %v5213
        %v5229 = vunpack.c.l.b16 %v5214
        %v5230 = vunpack.c.l.b16 %v5215
        %v5231 = vunpack.c.l.b16 %v5216
        %v5232 = vpack.c.b16 %v5229, %v5228
        %v5233 = vpack.c.b16 %v5231, %v5230
        %v5237 = vsel %vm487, %v5197, 0
        %v5240 = vsel %vm487, %v5198, 0
        %v5243 = vsel %vm487, %v5199, 0
        %v5246 = vsel %vm487, %v5200, 0
        %v5249 = vsel %vm487, %v5201, 0
        %v5252 = vsel %vm487, %v5202, 0
        %v5255 = vsel %vm487, %v5203, 0
        %v5258 = vsel %vm487, %v5204, 0
        %v5261 = vsel %vm487, %v5205, 0
        %v5264 = vsel %vm487, %v5206, 0
        %v5267 = vsel %vm487, %v5207, 0
        %v5270 = vsel %vm487, %v5208, 0
        %v5273 = vsel %vm487, %v5209, 0
        %v5276 = vsel %vm487, %v5210, 0
        %v5279 = vsel %vm487, %v5211, 0
        %v5282 = vsel %vm487, %v5212, 0
        %5284 = vmatprep.subr.bf16.mxu0 0
        %5285 = vmatpush1.bf16.msra.mxu0 0
        %5286 = vmatprep.subr.bf16.mxu0 0
        %5287 = vmatpush1.bf16.msra.mxu0 0
        %5288 = vmatprep.subr.bf16.mxu0 0
        %5289 = vmatpush1.bf16.msra.mxu0 0
        %5290 = vmatprep.subr.bf16.mxu0 0
        %5291 = vmatpush1.bf16.msra.mxu0 0
        %5292 = vmatprep.subr.bf16.mxu0 0
        %5293 = vmatpush1.bf16.msra.mxu0 0
        %5294 = vmatprep.subr.bf16.mxu0 0
        %5295 = vmatpush1.bf16.msra.mxu0 0
        %5296 = vmatprep.subr.bf16.mxu0 0
        %5297 = vmatpush1.bf16.msra.mxu0 %v5233
        %5298 = vmatprep.subr.bf16.mxu0 0
        %5299 = vmatpush1.bf16.msra.mxu0 %v5232
        %5300 = vmatprep.subr.bf16.mxu0 0
        %5301 = vmatpush2.bf16.msra.mxu0 0
        %5302 = vmatprep.subr.bf16.mxu0 0
        %5303 = vmatpush2.bf16.msra.mxu0 0
        %5304 = vmatprep.subr.bf16.mxu0 0
        %5305 = vmatpush2.bf16.msra.mxu0 0
        %5306 = vmatprep.subr.bf16.mxu0 0
        %5307 = vmatpush2.bf16.msra.mxu0 0
        %5308 = vmatprep.subr.bf16.mxu0 0
        %5309 = vmatpush2.bf16.msra.mxu0 0
        %5310 = vmatprep.subr.bf16.mxu0 0
        %5311 = vmatpush2.bf16.msra.mxu0 0
        %5312 = vmatprep.subr.bf16.mxu0 0
        %5313 = vmatpush2.bf16.msra.mxu0 0
        %5314 = vmatprep.subr.bf16.mxu0 0
        %5315 = vmatpush2.bf16.msra.mxu0 0
        %5316 = vmatprep.mubr.bf16.mxu0 0
        %5317 = vmatmul.mubr.bf16.gmra.mxu0 %v5237
        %v5318 = vpop.f32.mrf.mxu0
        %v5319 = vadd.f32 %v5222, %v5318
        %v5320 = vpop.f32.mrf.mxu0
        %v5321 = vpop.f32.mrf.mxu0
        %v5322 = vadd.f32 %v5222, %v5321
        %v5323 = vpop.f32.mrf.mxu0
        %5324 = vmatprep.mubr.bf16.mxu0 0
        %5325 = vmatmul.mubr.bf16.gmra.mxu0 %v5240
        %v5326 = vpop.f32.mrf.mxu0
        %v5327 = vadd.f32 %v5222, %v5326
        %v5328 = vpop.f32.mrf.mxu0
        %v5329 = vpop.f32.mrf.mxu0
        %v5330 = vadd.f32 %v5222, %v5329
        %v5331 = vpop.f32.mrf.mxu0
        %5332 = vmatprep.mubr.bf16.mxu0 0
        %5333 = vmatmul.mubr.bf16.gmra.mxu0 %v5243
        %v5334 = vpop.f32.mrf.mxu0
        %v5335 = vadd.f32 %v5222, %v5334
        %v5336 = vpop.f32.mrf.mxu0
        %v5337 = vpop.f32.mrf.mxu0
        %v5338 = vadd.f32 %v5222, %v5337
        %v5339 = vpop.f32.mrf.mxu0
        %5340 = vmatprep.mubr.bf16.mxu0 0
        %5341 = vmatmul.mubr.bf16.gmra.mxu0 %v5246
        %v5342 = vpop.f32.mrf.mxu0
        %v5343 = vadd.f32 %v5222, %v5342
        %v5344 = vpop.f32.mrf.mxu0
        %v5345 = vpop.f32.mrf.mxu0
        %v5346 = vadd.f32 %v5222, %v5345
        %v5347 = vpop.f32.mrf.mxu0
        %5348 = vmatprep.mubr.bf16.mxu0 0
        %5349 = vmatmul.mubr.bf16.gmra.mxu0 %v5249
        %v5350 = vpop.f32.mrf.mxu0
        %v5351 = vadd.f32 %v5222, %v5350
        %v5352 = vpop.f32.mrf.mxu0
        %v5353 = vpop.f32.mrf.mxu0
        %v5354 = vadd.f32 %v5222, %v5353
        %v5355 = vpop.f32.mrf.mxu0
        %5356 = vmatprep.mubr.bf16.mxu0 0
        %5357 = vmatmul.mubr.bf16.gmra.mxu0 %v5252
        %v5358 = vpop.f32.mrf.mxu0
        %v5359 = vadd.f32 %v5222, %v5358
        %v5360 = vpop.f32.mrf.mxu0
        %v5361 = vpop.f32.mrf.mxu0
        %v5362 = vadd.f32 %v5222, %v5361
        %v5363 = vpop.f32.mrf.mxu0
        %5364 = vmatprep.mubr.bf16.mxu0 0
        %5365 = vmatmul.mubr.bf16.gmra.mxu0 %v5255
        %v5366 = vpop.f32.mrf.mxu0
        %v5367 = vadd.f32 %v5222, %v5366
        %v5368 = vpop.f32.mrf.mxu0
        %v5369 = vpop.f32.mrf.mxu0
        %v5370 = vadd.f32 %v5222, %v5369
        %v5371 = vpop.f32.mrf.mxu0
        %5372 = vmatprep.mubr.bf16.mxu0 0
        %5373 = vmatmul.mubr.bf16.gmra.mxu0 %v5258
        %v5374 = vpop.f32.mrf.mxu0
        %v5375 = vadd.f32 %v5222, %v5374
        %v5376 = vpop.f32.mrf.mxu0
        %v5377 = vpop.f32.mrf.mxu0
        %v5378 = vadd.f32 %v5222, %v5377
        %v5379 = vpop.f32.mrf.mxu0
        %5380 = vmatprep.mubr.bf16.mxu0 0
        %5381 = vmatmul.mubr.bf16.gmra.mxu0 %v5261
        %v5382 = vpop.f32.mrf.mxu0
        %v5383 = vadd.f32 %v5222, %v5382
        %v5384 = vpop.f32.mrf.mxu0
        %v5385 = vpop.f32.mrf.mxu0
        %v5386 = vadd.f32 %v5222, %v5385
        %v5387 = vpop.f32.mrf.mxu0
        %5388 = vmatprep.mubr.bf16.mxu0 0
        %5389 = vmatmul.mubr.bf16.gmra.mxu0 %v5264
        %v5390 = vpop.f32.mrf.mxu0
        %v5391 = vadd.f32 %v5222, %v5390
        %v5392 = vpop.f32.mrf.mxu0
        %v5393 = vpop.f32.mrf.mxu0
        %v5394 = vadd.f32 %v5222, %v5393
        %v5395 = vpop.f32.mrf.mxu0
        %5396 = vmatprep.mubr.bf16.mxu0 0
        %5397 = vmatmul.mubr.bf16.gmra.mxu0 %v5267
        %v5398 = vpop.f32.mrf.mxu0
        %v5399 = vadd.f32 %v5222, %v5398
        %v5400 = vpop.f32.mrf.mxu0
        %v5401 = vpop.f32.mrf.mxu0
        %v5402 = vadd.f32 %v5222, %v5401
        %v5403 = vpop.f32.mrf.mxu0
        %5404 = vmatprep.mubr.bf16.mxu0 0
        %5405 = vmatmul.mubr.bf16.gmra.mxu0 %v5270
        %v5406 = vpop.f32.mrf.mxu0
        %v5407 = vadd.f32 %v5222, %v5406
        %v5408 = vpop.f32.mrf.mxu0
        %v5409 = vpop.f32.mrf.mxu0
        %v5410 = vadd.f32 %v5222, %v5409
        %v5411 = vpop.f32.mrf.mxu0
        %5412 = vmatprep.mubr.bf16.mxu0 0
        %5413 = vmatmul.mubr.bf16.gmra.mxu0 %v5273
        %v5414 = vpop.f32.mrf.mxu0
        %v5415 = vadd.f32 %v5222, %v5414
        %v5416 = vpop.f32.mrf.mxu0
        %v5417 = vpop.f32.mrf.mxu0
        %v5418 = vadd.f32 %v5222, %v5417
        %v5419 = vpop.f32.mrf.mxu0
        %5420 = vmatprep.mubr.bf16.mxu0 0
        %5421 = vmatmul.mubr.bf16.gmra.mxu0 %v5276
        %v5422 = vpop.f32.mrf.mxu0
        %v5423 = vadd.f32 %v5222, %v5422
        %v5424 = vpop.f32.mrf.mxu0
        %v5425 = vpop.f32.mrf.mxu0
        %v5426 = vadd.f32 %v5222, %v5425
        %v5427 = vpop.f32.mrf.mxu0
        %5428 = vmatprep.mubr.bf16.mxu0 0
        %5429 = vmatmul.mubr.bf16.gmra.mxu0 %v5279
        %v5430 = vpop.f32.mrf.mxu0
        %v5431 = vadd.f32 %v5222, %v5430
        %v5432 = vpop.f32.mrf.mxu0
        %v5433 = vpop.f32.mrf.mxu0
        %v5434 = vadd.f32 %v5222, %v5433
        %v5435 = vpop.f32.mrf.mxu0
        %5436 = vmatprep.mubr.bf16.mxu0 0
        %5437 = vmatmul.mubr.bf16.gmra.mxu0 %v5282
        %v5438 = vpop.f32.mrf.mxu0
        %v5439 = vadd.f32 %v5222, %v5438
        %v5440 = vpop.f32.mrf.mxu0
        %v5441 = vpop.f32.mrf.mxu0
        %v5442 = vadd.f32 %v5222, %v5441
        %v5443 = vpop.f32.mrf.mxu0
        %5444 = vdwg.mxu0
        %v5445 = vld [vmem:[%s7] sm:$0xf]
        %v5446 = vld [vmem:[%s7 + $0x4] sm:$0xf]
        %v5447 = vld [vmem:[%s7 + $0x8] sm:$0xf]
        %v5448 = vld [vmem:[%s7 + $0xc] sm:$0xf]
        %v5453 = vunpack.c.l.b16 %v5445
        %v5454 = vunpack.c.l.b16 %v5446
        %v5455 = vunpack.c.l.b16 %v5447
        %v5456 = vunpack.c.l.b16 %v5448
        %v5457 = vpack.c.b16 %v5454, %v5453
        %v5458 = vpack.c.b16 %v5456, %v5455
        %5461 = vmatprep.subr.bf16.mxu0 0
        %5462 = vmatpush1.bf16.msra.mxu0 0
        %5463 = vmatprep.subr.bf16.mxu0 0
        %5464 = vmatpush1.bf16.msra.mxu0 0
        %5465 = vmatprep.subr.bf16.mxu0 0
        %5466 = vmatpush1.bf16.msra.mxu0 0
        %5467 = vmatprep.subr.bf16.mxu0 0
        %5468 = vmatpush1.bf16.msra.mxu0 0
        %5469 = vmatprep.subr.bf16.mxu0 0
        %5470 = vmatpush1.bf16.msra.mxu0 0
        %5471 = vmatprep.subr.bf16.mxu0 0
        %5472 = vmatpush1.bf16.msra.mxu0 0
        %5473 = vmatprep.subr.bf16.mxu0 0
        %5474 = vmatpush1.bf16.msra.mxu0 %v5458
        %5475 = vmatprep.subr.bf16.mxu0 0
        %5476 = vmatpush1.bf16.msra.mxu0 %v5457
        %5477 = vmatprep.subr.bf16.mxu0 0
        %5478 = vmatpush2.bf16.msra.mxu0 0
        %5479 = vmatprep.subr.bf16.mxu0 0
        %5480 = vmatpush2.bf16.msra.mxu0 0
        %5481 = vmatprep.subr.bf16.mxu0 0
        %5482 = vmatpush2.bf16.msra.mxu0 0
        %5483 = vmatprep.subr.bf16.mxu0 0
        %5484 = vmatpush2.bf16.msra.mxu0 0
        %5485 = vmatprep.subr.bf16.mxu0 0
        %5486 = vmatpush2.bf16.msra.mxu0 0
        %5487 = vmatprep.subr.bf16.mxu0 0
        %5488 = vmatpush2.bf16.msra.mxu0 0
        %5489 = vmatprep.subr.bf16.mxu0 0
        %5490 = vmatpush2.bf16.msra.mxu0 0
        %5491 = vmatprep.subr.bf16.mxu0 0
        %5492 = vmatpush2.bf16.msra.mxu0 0
        %5493 = vmatprep.mubr.bf16.mxu0 0
        %5494 = vmatmul.mubr.bf16.gmra.mxu0 %v489
        %v5495 = vpop.f32.mrf.mxu0
        %v5496 = vadd.f32 0.0, %v5495
        %v5497 = vpop.f32.mrf.mxu0
        %v5498 = vpop.f32.mrf.mxu0
        %v5499 = vadd.f32 0.0, %v5498
        %v5500 = vpop.f32.mrf.mxu0
        %5501 = vmatprep.mubr.bf16.mxu0 0
        %5502 = vmatmul.mubr.bf16.gmra.mxu0 %v492
        %v5503 = vpop.f32.mrf.mxu0
        %v5504 = vadd.f32 0.0, %v5503
        %v5505 = vpop.f32.mrf.mxu0
        %v5506 = vpop.f32.mrf.mxu0
        %v5507 = vadd.f32 0.0, %v5506
        %v5508 = vpop.f32.mrf.mxu0
        %5509 = vmatprep.mubr.bf16.mxu0 0
        %5510 = vmatmul.mubr.bf16.gmra.mxu0 %v495
        %v5511 = vpop.f32.mrf.mxu0
        %v5512 = vadd.f32 0.0, %v5511
        %v5513 = vpop.f32.mrf.mxu0
        %v5514 = vpop.f32.mrf.mxu0
        %v5515 = vadd.f32 0.0, %v5514
        %v5516 = vpop.f32.mrf.mxu0
        %5517 = vmatprep.mubr.bf16.mxu0 0
        %5518 = vmatmul.mubr.bf16.gmra.mxu0 %v498
        %v5519 = vpop.f32.mrf.mxu0
        %v5520 = vadd.f32 0.0, %v5519
        %v5521 = vpop.f32.mrf.mxu0
        %v5522 = vpop.f32.mrf.mxu0
        %v5523 = vadd.f32 0.0, %v5522
        %v5524 = vpop.f32.mrf.mxu0
        %5525 = vmatprep.mubr.bf16.mxu0 0
        %5526 = vmatmul.mubr.bf16.gmra.mxu0 %v501
        %v5527 = vpop.f32.mrf.mxu0
        %v5528 = vadd.f32 0.0, %v5527
        %v5529 = vpop.f32.mrf.mxu0
        %v5530 = vpop.f32.mrf.mxu0
        %v5531 = vadd.f32 0.0, %v5530
        %v5532 = vpop.f32.mrf.mxu0
        %5533 = vmatprep.mubr.bf16.mxu0 0
        %5534 = vmatmul.mubr.bf16.gmra.mxu0 %v504
        %v5535 = vpop.f32.mrf.mxu0
        %v5536 = vadd.f32 0.0, %v5535
        %v5537 = vpop.f32.mrf.mxu0
        %v5538 = vpop.f32.mrf.mxu0
        %v5539 = vadd.f32 0.0, %v5538
        %v5540 = vpop.f32.mrf.mxu0
        %5541 = vmatprep.mubr.bf16.mxu0 0
        %5542 = vmatmul.mubr.bf16.gmra.mxu0 %v507
        %v5543 = vpop.f32.mrf.mxu0
        %v5544 = vadd.f32 0.0, %v5543
        %v5545 = vpop.f32.mrf.mxu0
        %v5546 = vpop.f32.mrf.mxu0
        %v5547 = vadd.f32 0.0, %v5546
        %v5548 = vpop.f32.mrf.mxu0
        %5549 = vmatprep.mubr.bf16.mxu0 0
        %5550 = vmatmul.mubr.bf16.gmra.mxu0 %v510
        %v5551 = vpop.f32.mrf.mxu0
        %v5552 = vadd.f32 0.0, %v5551
        %v5553 = vpop.f32.mrf.mxu0
        %v5554 = vpop.f32.mrf.mxu0
        %v5555 = vadd.f32 0.0, %v5554
        %v5556 = vpop.f32.mrf.mxu0
        %5557 = vmatprep.mubr.bf16.mxu0 0
        %5558 = vmatmul.mubr.bf16.gmra.mxu0 %v513
        %v5559 = vpop.f32.mrf.mxu0
        %v5560 = vadd.f32 0.0, %v5559
        %v5561 = vpop.f32.mrf.mxu0
        %v5562 = vpop.f32.mrf.mxu0
        %v5563 = vadd.f32 0.0, %v5562
        %v5564 = vpop.f32.mrf.mxu0
        %5565 = vmatprep.mubr.bf16.mxu0 0
        %5566 = vmatmul.mubr.bf16.gmra.mxu0 %v516
        %v5567 = vpop.f32.mrf.mxu0
        %v5568 = vadd.f32 0.0, %v5567
        %v5569 = vpop.f32.mrf.mxu0
        %v5570 = vpop.f32.mrf.mxu0
        %v5571 = vadd.f32 0.0, %v5570
        %v5572 = vpop.f32.mrf.mxu0
        %5573 = vmatprep.mubr.bf16.mxu0 0
        %5574 = vmatmul.mubr.bf16.gmra.mxu0 %v519
        %v5575 = vpop.f32.mrf.mxu0
        %v5576 = vadd.f32 0.0, %v5575
        %v5577 = vpop.f32.mrf.mxu0
        %v5578 = vpop.f32.mrf.mxu0
        %v5579 = vadd.f32 0.0, %v5578
        %v5580 = vpop.f32.mrf.mxu0
        %5581 = vmatprep.mubr.bf16.mxu0 0
        %5582 = vmatmul.mubr.bf16.gmra.mxu0 %v522
        %v5583 = vpop.f32.mrf.mxu0
        %v5584 = vadd.f32 0.0, %v5583
        %v5585 = vpop.f32.mrf.mxu0
        %v5586 = vpop.f32.mrf.mxu0
        %v5587 = vadd.f32 0.0, %v5586
        %v5588 = vpop.f32.mrf.mxu0
        %5589 = vmatprep.mubr.bf16.mxu0 0
        %5590 = vmatmul.mubr.bf16.gmra.mxu0 %v525
        %v5591 = vpop.f32.mrf.mxu0
        %v5592 = vadd.f32 0.0, %v5591
        %v5593 = vpop.f32.mrf.mxu0
        %v5594 = vpop.f32.mrf.mxu0
        %v5595 = vadd.f32 0.0, %v5594
        %v5596 = vpop.f32.mrf.mxu0
        %5597 = vmatprep.mubr.bf16.mxu0 0
        %5598 = vmatmul.mubr.bf16.gmra.mxu0 %v528
        %v5599 = vpop.f32.mrf.mxu0
        %v5600 = vadd.f32 0.0, %v5599
        %v5601 = vpop.f32.mrf.mxu0
        %v5602 = vpop.f32.mrf.mxu0
        %v5603 = vadd.f32 0.0, %v5602
        %v5604 = vpop.f32.mrf.mxu0
        %5605 = vmatprep.mubr.bf16.mxu0 0
        %5606 = vmatmul.mubr.bf16.gmra.mxu0 %v531
        %v5607 = vpop.f32.mrf.mxu0
        %v5608 = vadd.f32 0.0, %v5607
        %v5609 = vpop.f32.mrf.mxu0
        %v5610 = vpop.f32.mrf.mxu0
        %v5611 = vadd.f32 0.0, %v5610
        %v5612 = vpop.f32.mrf.mxu0
        %5613 = vmatprep.mubr.bf16.mxu0 0
        %5614 = vmatmul.mubr.bf16.gmra.mxu0 %v534
        %v5615 = vpop.f32.mrf.mxu0
        %v5616 = vadd.f32 0.0, %v5615
        %v5617 = vpop.f32.mrf.mxu0
        %v5618 = vpop.f32.mrf.mxu0
        %v5619 = vadd.f32 0.0, %v5618
        %v5620 = vpop.f32.mrf.mxu0
        %5621 = vdwg.mxu0
        %v5622 = vadd.f32 %v5319, %v5496
        %v5623 = vadd.f32 %v5322, %v5499
        %v5624 = vadd.f32 %v5327, %v5504
        %v5625 = vadd.f32 %v5330, %v5507
        %v5626 = vadd.f32 %v5335, %v5512
        %v5627 = vadd.f32 %v5338, %v5515
        %v5628 = vadd.f32 %v5343, %v5520
        %v5629 = vadd.f32 %v5346, %v5523
        %v5630 = vadd.f32 %v5351, %v5528
        %v5631 = vadd.f32 %v5354, %v5531
        %v5632 = vadd.f32 %v5359, %v5536
        %v5633 = vadd.f32 %v5362, %v5539
        %v5634 = vadd.f32 %v5367, %v5544
        %v5635 = vadd.f32 %v5370, %v5547
        %v5636 = vadd.f32 %v5375, %v5552
        %v5637 = vadd.f32 %v5378, %v5555
        %v5638 = vadd.f32 %v5383, %v5560
        %v5639 = vadd.f32 %v5386, %v5563
        %v5640 = vadd.f32 %v5391, %v5568
        %v5641 = vadd.f32 %v5394, %v5571
        %v5642 = vadd.f32 %v5399, %v5576
        %v5643 = vadd.f32 %v5402, %v5579
        %v5644 = vadd.f32 %v5407, %v5584
        %v5645 = vadd.f32 %v5410, %v5587
        %v5646 = vadd.f32 %v5415, %v5592
        %v5647 = vadd.f32 %v5418, %v5595
        %v5648 = vadd.f32 %v5423, %v5600
        %v5649 = vadd.f32 %v5426, %v5603
        %v5650 = vadd.f32 %v5431, %v5608
        %v5651 = vadd.f32 %v5434, %v5611
        %v5652 = vadd.f32 %v5439, %v5616
        %v5653 = vadd.f32 %v5442, %v5619
        %v5654 = vld [vmem:[%s8] sm:$0x1]
        %v5656 = vlaneseq
        %v5657 = vshrl.u32 %v5656, 7
        %v5658 = vsub.s32 0, %v5657
        %v5659 = vrot.slane %v5654, %v5658
        %v5661 = vadd.f32 %v5622, %v5659
        %v5662 = vadd.f32 %v5623, %v5659
        %v5663 = vadd.f32 %v5624, %v5659
        %v5664 = vadd.f32 %v5625, %v5659
        %v5665 = vadd.f32 %v5626, %v5659
        %v5666 = vadd.f32 %v5627, %v5659
        %v5667 = vadd.f32 %v5628, %v5659
        %v5668 = vadd.f32 %v5629, %v5659
        %v5669 = vadd.f32 %v5630, %v5659
        %v5670 = vadd.f32 %v5631, %v5659
        %v5671 = vadd.f32 %v5632, %v5659
        %v5672 = vadd.f32 %v5633, %v5659
        %v5673 = vadd.f32 %v5634, %v5659
        %v5674 = vadd.f32 %v5635, %v5659
        %v5675 = vadd.f32 %v5636, %v5659
        %v5676 = vadd.f32 %v5637, %v5659
        %v5677 = vadd.f32 %v5638, %v5659
        %v5678 = vadd.f32 %v5639, %v5659
        %v5679 = vadd.f32 %v5640, %v5659
        %v5680 = vadd.f32 %v5641, %v5659
        %v5681 = vadd.f32 %v5642, %v5659
        %v5682 = vadd.f32 %v5643, %v5659
        %v5683 = vadd.f32 %v5644, %v5659
        %v5684 = vadd.f32 %v5645, %v5659
        %v5685 = vadd.f32 %v5646, %v5659
        %v5686 = vadd.f32 %v5647, %v5659
        %v5687 = vadd.f32 %v5648, %v5659
        %v5688 = vadd.f32 %v5649, %v5659
        %v5689 = vadd.f32 %v5650, %v5659
        %v5690 = vadd.f32 %v5651, %v5659
        %v5691 = vadd.f32 %v5652, %v5659
        %v5692 = vadd.f32 %v5653, %v5659
        %v5693 = vmax.f32 %v5661, 0.0
        %v5694 = vmax.f32 %v5662, 0.0
        %v5695 = vmax.f32 %v5663, 0.0
        %v5696 = vmax.f32 %v5664, 0.0
        %v5697 = vmax.f32 %v5665, 0.0
        %v5698 = vmax.f32 %v5666, 0.0
        %v5699 = vmax.f32 %v5667, 0.0
        %v5700 = vmax.f32 %v5668, 0.0
        %v5701 = vmax.f32 %v5669, 0.0
        %v5702 = vmax.f32 %v5670, 0.0
        %v5703 = vmax.f32 %v5671, 0.0
        %v5704 = vmax.f32 %v5672, 0.0
        %v5705 = vmax.f32 %v5673, 0.0
        %v5706 = vmax.f32 %v5674, 0.0
        %v5707 = vmax.f32 %v5675, 0.0
        %v5708 = vmax.f32 %v5676, 0.0
        %v5709 = vmax.f32 %v5677, 0.0
        %v5710 = vmax.f32 %v5678, 0.0
        %v5711 = vmax.f32 %v5679, 0.0
        %v5712 = vmax.f32 %v5680, 0.0
        %v5713 = vmax.f32 %v5681, 0.0
        %v5714 = vmax.f32 %v5682, 0.0
        %v5715 = vmax.f32 %v5683, 0.0
        %v5716 = vmax.f32 %v5684, 0.0
        %v5717 = vmax.f32 %v5685, 0.0
        %v5718 = vmax.f32 %v5686, 0.0
        %v5719 = vmax.f32 %v5687, 0.0
        %v5720 = vmax.f32 %v5688, 0.0
        %v5721 = vmax.f32 %v5689, 0.0
        %v5722 = vmax.f32 %v5690, 0.0
        %v5723 = vmax.f32 %v5691, 0.0
        %v5724 = vmax.f32 %v5692, 0.0
        %v5725 = vpack.c.bf16 %v5694, %v5693
        %v5726 = vpack.c.bf16 %v5696, %v5695
        %v5727 = vpack.c.bf16 %v5698, %v5697
        %v5728 = vpack.c.bf16 %v5700, %v5699
        %v5729 = vpack.c.bf16 %v5702, %v5701
        %v5730 = vpack.c.bf16 %v5704, %v5703
        %v5731 = vpack.c.bf16 %v5706, %v5705
        %v5732 = vpack.c.bf16 %v5708, %v5707
        %v5733 = vpack.c.bf16 %v5710, %v5709
        %v5734 = vpack.c.bf16 %v5712, %v5711
        %v5735 = vpack.c.bf16 %v5714, %v5713
        %v5736 = vpack.c.bf16 %v5716, %v5715
        %v5737 = vpack.c.bf16 %v5718, %v5717
        %v5738 = vpack.c.bf16 %v5720, %v5719
        %v5739 = vpack.c.bf16 %v5722, %v5721
        %v5740 = vpack.c.bf16 %v5724, %v5723
        %v5757 = vunpack.c.l.b16 %v5725
        %v5758 = vunpack.c.h.b16 %v5725
        %v5759 = vunpack.c.l.b16 %v5726
        %v5760 = vunpack.c.h.b16 %v5726
        %v5761 = vunpack.c.l.b16 %v5727
        %v5762 = vunpack.c.h.b16 %v5727
        %v5763 = vunpack.c.l.b16 %v5728
        %v5764 = vunpack.c.h.b16 %v5728
        %v5765 = vunpack.c.l.b16 %v5729
        %v5766 = vunpack.c.h.b16 %v5729
        %v5767 = vunpack.c.l.b16 %v5730
        %v5768 = vunpack.c.h.b16 %v5730
        %v5769 = vunpack.c.l.b16 %v5731
        %v5770 = vunpack.c.h.b16 %v5731
        %v5771 = vunpack.c.l.b16 %v5732
        %v5772 = vunpack.c.h.b16 %v5732
        %v5773 = vunpack.c.l.b16 %v5733
        %v5774 = vunpack.c.h.b16 %v5733
        %v5775 = vunpack.c.l.b16 %v5734
        %v5776 = vunpack.c.h.b16 %v5734
        %v5777 = vunpack.c.l.b16 %v5735
        %v5778 = vunpack.c.h.b16 %v5735
        %v5779 = vunpack.c.l.b16 %v5736
        %v5780 = vunpack.c.h.b16 %v5736
        %v5781 = vunpack.c.l.b16 %v5737
        %v5782 = vunpack.c.h.b16 %v5737
        %v5783 = vunpack.c.l.b16 %v5738
        %v5784 = vunpack.c.h.b16 %v5738
        %v5785 = vunpack.c.l.b16 %v5739
        %v5786 = vunpack.c.h.b16 %v5739
        %v5787 = vunpack.c.l.b16 %v5740
        %v5788 = vunpack.c.h.b16 %v5740
        %v5789 = vpack.c.b16 %v5757, %v5757
        %v5790 = vpack.c.b16 %v5758, %v5758
        %v5791 = vpack.c.b16 %v5759, %v5759
        %v5792 = vpack.c.b16 %v5760, %v5760
        %v5793 = vpack.c.b16 %v5761, %v5761
        %v5794 = vpack.c.b16 %v5762, %v5762
        %v5795 = vpack.c.b16 %v5763, %v5763
        %v5796 = vpack.c.b16 %v5764, %v5764
        %v5797 = vpack.c.b16 %v5765, %v5765
        %v5798 = vpack.c.b16 %v5766, %v5766
        %v5799 = vpack.c.b16 %v5767, %v5767
        %v5800 = vpack.c.b16 %v5768, %v5768
        %v5801 = vpack.c.b16 %v5769, %v5769
        %v5802 = vpack.c.b16 %v5770, %v5770
        %v5803 = vpack.c.b16 %v5771, %v5771
        %v5804 = vpack.c.b16 %v5772, %v5772
        %v5805 = vpack.c.b16 %v5773, %v5773
        %v5806 = vpack.c.b16 %v5774, %v5774
        %v5807 = vpack.c.b16 %v5775, %v5775
        %v5808 = vpack.c.b16 %v5776, %v5776
        %v5809 = vpack.c.b16 %v5777, %v5777
        %v5810 = vpack.c.b16 %v5778, %v5778
        %v5811 = vpack.c.b16 %v5779, %v5779
        %v5812 = vpack.c.b16 %v5780, %v5780
        %v5813 = vpack.c.b16 %v5781, %v5781
        %v5814 = vpack.c.b16 %v5782, %v5782
        %v5815 = vpack.c.b16 %v5783, %v5783
        %v5816 = vpack.c.b16 %v5784, %v5784
        %v5817 = vpack.c.b16 %v5785, %v5785
        %v5818 = vpack.c.b16 %v5786, %v5786
        %v5819 = vpack.c.b16 %v5787, %v5787
        %v5820 = vpack.c.b16 %v5788, %v5788
        %5853 = vst [vmem:[%s350] sm:$0xf] %v5789
        %5854 = vst [vmem:[%s350 + $0x4] sm:$0xf] %v5790
        %5855 = vst [vmem:[%s350 + $0x8] sm:$0xf] %v5791
        %5856 = vst [vmem:[%s350 + $0xc] sm:$0xf] %v5792
        %5857 = vst [vmem:[%s350 + $0x10] sm:$0xf] %v5793
        %5858 = vst [vmem:[%s350 + $0x14] sm:$0xf] %v5794
        %5859 = vst [vmem:[%s350 + $0x18] sm:$0xf] %v5795
        %5860 = vst [vmem:[%s350 + $0x1c] sm:$0xf] %v5796
        %5861 = vst [vmem:[%s350 + $0x20] sm:$0xf] %v5797
        %5862 = vst [vmem:[%s350 + $0x24] sm:$0xf] %v5798
        %5863 = vst [vmem:[%s350 + $0x28] sm:$0xf] %v5799
        %5864 = vst [vmem:[%s350 + $0x2c] sm:$0xf] %v5800
        %5865 = vst [vmem:[%s350 + $0x30] sm:$0xf] %v5801
        %5866 = vst [vmem:[%s350 + $0x34] sm:$0xf] %v5802
        %5867 = vst [vmem:[%s350 + $0x38] sm:$0xf] %v5803
        %5868 = vst [vmem:[%s350 + $0x3c] sm:$0xf] %v5804
        %5869 = vst [vmem:[%s350 + $0x40] sm:$0xf] %v5805
        %5870 = vst [vmem:[%s350 + $0x44] sm:$0xf] %v5806
        %5871 = vst [vmem:[%s350 + $0x48] sm:$0xf] %v5807
        %5872 = vst [vmem:[%s350 + $0x4c] sm:$0xf] %v5808
        %5873 = vst [vmem:[%s350 + $0x50] sm:$0xf] %v5809
        %5874 = vst [vmem:[%s350 + $0x54] sm:$0xf] %v5810
        %5875 = vst [vmem:[%s350 + $0x58] sm:$0xf] %v5811
        %5876 = vst [vmem:[%s350 + $0x5c] sm:$0xf] %v5812
        %5877 = vst [vmem:[%s350 + $0x60] sm:$0xf] %v5813
        %5878 = vst [vmem:[%s350 + $0x64] sm:$0xf] %v5814
        %5879 = vst [vmem:[%s350 + $0x68] sm:$0xf] %v5815
        %5880 = vst [vmem:[%s350 + $0x6c] sm:$0xf] %v5816
        %5881 = vst [vmem:[%s350 + $0x70] sm:$0xf] %v5817
        %5882 = vst [vmem:[%s350 + $0x74] sm:$0xf] %v5818
        %5883 = vst [vmem:[%s350 + $0x78] sm:$0xf] %v5819
        %5884 = vst [vmem:[%s350 + $0x7c] sm:$0xf] %v5820
        %s5885 = sand.u32 %s228, 1
        %s5886 = scalar_lea.sflag [#allocation6], %s5885
        %s5887 = sand.u32 %s228, 1
        %s5888 = smul.addr %s5887, 128
        %s5889 = scalar_lea.vmem [#allocation7], %s5888
        // Predicated region
        $region61: #{tpu_custom_call.1} parent=55 // pred_check
          %p5890 = pneg %p238
        $region62: #{tpu_custom_call.1} parent=55 // pred_check_branch
          %5892 = sbr.rel (%p5890) target = $region64
        $region63: #{tpu_custom_call.1} parent=55 // pred_region
          %s5894 = ssub.s32 2048, 2048
          %5895 = vsyncadd %s5886, %s5894
          %s5896 = smul.addr %s26, 32
          %s5897 = smul.addr %s5896, 64
          %s5898 = scalar_lea.hbm %s9, %s5897
          %s5899 = sshll.u32 %s5889, 4
          %s5900 = int_to_ptr.vmem [resolvable:$true] %s5899
          %5905 = dma.vmem_to_hbm [thread:$0]  %s5900, 2048, %s5898, %s5886, 64, 64, 4
        $region64: #{tpu_custom_call.1} parent=55 // pred_fallthru
          _
      $region56: #{tpu_custom_call.1} parent=5 // pred_fallthru
        _
      %p5906 = scmp.le.s32.totalorder 2, %s21
      // Predicated region
      $region65: #{tpu_custom_call.1} parent=5 // pred_check
        %p5907 = pneg %p5906
      $region66: #{tpu_custom_call.1} parent=5 // pred_check_branch
        %5909 = sbr.rel (%p5907) target = $region68
      $region67: #{tpu_custom_call.1} parent=5 // pred_region
        %s5910 = ssub.s32 %s21, 2
        // Predicated region
        $region69: #{tpu_custom_call.1} parent=67 // pred_check
          %p5911 = pneg %p244
        $region70: #{tpu_custom_call.1} parent=67 // pred_check_branch
          %5913 = sbr.rel (%p5911) target = $region72
        $region71: #{tpu_custom_call.1} parent=67 // pred_region
          %s5914 = sand.u32 %s229, 1
          %s5915 = scalar_lea.sflag [#allocation6], %s5914
          %s5916 = sand.u32 %s229, 1
          %s5917 = smul.addr %s5916, 128
          %s5918 = scalar_lea.vmem [#allocation7], %s5917
          %5919 = dma.done %s5915, 2048
        $region72: #{tpu_custom_call.1} parent=67 // pred_fallthru
          _
      $region68: #{tpu_custom_call.1} parent=5 // pred_fallthru
        _
    $region6: #{tpu_custom_call.1} parent=1 // loop_footer
      %s25 = sadd.s32 1, %s21
    $region7: #{tpu_custom_call.1} parent=1 // loop_footer_branch
      %20 = sbr.rel target = $region3
    $region8: #{tpu_custom_call.1} parent=1 // loop_exit
      _
    %5920 = vsyncpa [#allocation5], 1
    %s5921 = scalar_lea.sflag [#allocation5], 1
    %5922 = vsyncpa %s5921, 1
    %5923 = vsyncpa [#allocation6], 1
    %s5924 = scalar_lea.sflag [#allocation6], 1
    %5925 = vsyncpa %s5924, 1

</llo_original>
